<compile_context>
chip_gen: v6e
topology: v6e:2x2x1
jax: 0.10.0
libtpu: 0.0.40
codegen_flags: <defaults>
</compile_context>

<pallas_src>
import math
import jax
import jax.numpy as jnp
from jax.experimental import pallas as pl
from jax.experimental.pallas import tpu as pltpu

# Dimensions implied by the module / env
OBS_DIM = 342            # env.observation_spec().shape[0]
FC1_DIMS = 1024
FC2_DIMS = 512
ACTION_SPACE = 9 * 12    # num_creatures * 12 flattened action space = 108
LOG_STD_MIN = -20.0
LOG_STD_MAX = 2.0

# Lane/MXU-aligned padded dims (zero padding contributes nothing numerically)
OBS_PAD = 384            # 342 -> next multiple of 128
ACT_PAD = 128            # 108 -> 128


def _round_up(x, m):
    return (x + m - 1) // m * m


def _default_block_m():
    """v5-family: 128 (1 vst slot, no bf16 VALU); v6e/v7x: 512."""
    try:
        kind = jax.devices()[0].device_kind.lower()
    except Exception:
        return 256
    if "v5" in kind or "v4" in kind or "v3" in kind:
        return 128
    return 512


def actor_kernel(x_ref, w1_ref, b1_ref, w2_ref, b2_ref, w3_ref, b3_ref, mu_ref):
    # fc1 + relu   (bf16 operands, f32 accumulation on the MXU)
    h1 = jnp.dot(x_ref[...], w1_ref[...], preferred_element_type=jnp.float32)
    # Cast to bf16 right away: only the bf16 copy stays live into the next dot.
    h1 = jnp.maximum(h1 + b1_ref[...], 0.0).astype(jnp.bfloat16)
    # fc2 + relu
    h2 = jnp.dot(h1, w2_ref[...], preferred_element_type=jnp.float32)
    h2 = jnp.maximum(h2 + b2_ref[...], 0.0).astype(jnp.bfloat16)
    # fc3 + tanh -> mu
    h3 = jnp.dot(h2, w3_ref[...], preferred_element_type=jnp.float32)
    mu_ref[...] = jnp.tanh(h3 + b3_ref[...]).astype(mu_ref.dtype)


def actor_forward(x, params, *, block_m=None):
    """x: (B, OBS_DIM) float32. params: output of prepare_params(). Returns (mu, std)."""
    B = x.shape[0]
    if block_m is None:
        block_m = _default_block_m()

    # Balanced tiling: number of tiles first, then the smallest 16-aligned tile
    # that covers B (avoids padding B=260 all the way to 512, etc.).
    nt = -(-B // block_m)                 # cdiv
    bm = _round_up(-(-B // nt), 16)       # multiple of 16 sublanes (bf16 packing)
    b_pad = nt * bm

    # Pad obs dim 342 -> 384 and batch -> b_pad, cast to bf16 (single pad op).
    x_p = jnp.pad(x.astype(jnp.bfloat16), ((0, b_pad - B), (0, OBS_PAD - OBS_DIM)))

    w1, b1 = params["w1"], params["b1"]
    w2, b2 = params["w2"], params["b2"]
    w3, b3 = params["w3"], params["b3"]

    grid = (nt,)

    # Weights/biases: constant block index + single buffer (they are resident
    # across all batch tiles; double-buffering them is pure VMEM waste).
    def const_spec(shape):
        return pl.BlockSpec(shape, lambda i: (0, 0), pipeline_mode=pl.Buffered(1))

    flops = 2 * b_pad * (OBS_PAD * FC1_DIMS + FC1_DIMS * FC2_DIMS + FC2_DIMS * ACT_PAD)
    bytes_accessed = (x_p.size * 2                                   # bf16 activations in
                      + (w1.size + w2.size + w3.size) * 2            # bf16 weights
                      + (b1.size + b2.size + b3.size) * 4            # f32 biases
                      + b_pad * ACT_PAD * 4)                         # f32 mu out

    mu_p = pl.pallas_call(
        actor_kernel,
        out_shape=jax.ShapeDtypeStruct((b_pad, ACT_PAD), jnp.float32),
        grid=grid,
        in_specs=[
            pl.BlockSpec((bm, OBS_PAD), lambda i: (i, 0)),
            const_spec((OBS_PAD, FC1_DIMS)),
            const_spec((1, FC1_DIMS)),
            const_spec((FC1_DIMS, FC2_DIMS)),
            const_spec((1, FC2_DIMS)),
            const_spec((FC2_DIMS, ACT_PAD)),
            const_spec((1, ACT_PAD)),
        ],
        out_specs=pl.BlockSpec((bm, ACT_PAD), lambda i: (i, 0)),
        compiler_params=pltpu.CompilerParams(
            # Shards batch tiles across TCs when nt >= 2 (no-op at grid=(1,)).
            dimension_semantics=("parallel",),
            vmem_limit_bytes=32 << 20),      # <= v7x scoped default (64 MiB physical)
        cost_estimate=pl.CostEstimate(
            flops=flops,
            transcendentals=b_pad * ACT_PAD,
            bytes_accessed=bytes_accessed),
    )(x_p, w1, b1, w2, b2, w3, b3)

    mu = mu_p[:B, :ACTION_SPACE]
    # std does not depend on x: compute once here, broadcast (no kernel traffic).
    std = jnp.broadcast_to(
        jnp.exp(jnp.clip(params["log_std"], LOG_STD_MIN, LOG_STD_MAX)), mu.shape)
    # TODO(synk): torch.distributions.Normal object itself is not representable;
    # downstream sampling/log_prob can be built from (mu, std) in plain JAX.
    return mu, std


def init_params(key):
    """Deterministic f32 init mimicking nn.Linear's U(-1/sqrt(fan_in), 1/sqrt(fan_in))."""
    ks = jax.random.split(key, 6)

    def linear(kw, kb, fan_in, fan_out):
        bound = 1.0 / math.sqrt(fan_in)
        w = jax.random.uniform(kw, (fan_in, fan_out), jnp.float32, -bound, bound)
        b = jax.random.uniform(kb, (1, fan_out), jnp.float32, -bound, bound)
        return w, b

    w1, b1 = linear(ks[0], ks[1], OBS_DIM, FC1_DIMS)
    w2, b2 = linear(ks[2], ks[3], FC1_DIMS, FC2_DIMS)
    w3, b3 = linear(ks[4], ks[5], FC2_DIMS, ACTION_SPACE)
    log_std = jnp.ones((1, ACTION_SPACE), jnp.float32) * 0.01
    return {"w1": w1, "b1": b1, "w2": w2, "b2": b2,
            "w3": w3, "b3": b3, "log_std": log_std}


def prepare_params(raw):
    """Pad to MXU-friendly shapes (K 342->384, N 108->128) and cast weights to bf16.
    Done ONCE; keep the result device-resident across actor calls so padding,
    cast and the weight HBM upload are not re-done per step."""
    w1 = jnp.zeros((OBS_PAD, FC1_DIMS), jnp.float32).at[:OBS_DIM, :].set(raw["w1"])
    w3 = jnp.zeros((FC2_DIMS, ACT_PAD), jnp.float32).at[:, :ACTION_SPACE].set(raw["w3"])
    b3 = jnp.zeros((1, ACT_PAD), jnp.float32).at[:, :ACTION_SPACE].set(raw["b3"])
    return {
        "w1": w1.astype(jnp.bfloat16), "b1": raw["b1"],
        "w2": raw["w2"].astype(jnp.bfloat16), "b2": raw["b2"],
        "w3": w3.astype(jnp.bfloat16), "b3": b3,
        "log_std": raw["log_std"],
    }


def reference_forward(x, p):
    """Pure f32 reference matching the PyTorch module."""
    h1 = jnp.maximum(x @ p["w1"] + p["b1"], 0.0)
    h2 = jnp.maximum(h1 @ p["w2"] + p["b2"], 0.0)
    mu = jnp.tanh(h2 @ p["w3"] + p["b3"])
    std = jnp.broadcast_to(jnp.exp(jnp.clip(p["log_std"], LOG_STD_MIN, LOG_STD_MAX)),
                           mu.shape)
    return mu, std


if __name__ == "__main__":
    key = jax.random.PRNGKey(0)
    pkey, xkey = jax.random.split(key)
    raw_params = init_params(pkey)
    params = prepare_params(raw_params)
    params = jax.device_put(params)          # weights stay device-resident

    B = 2
    x = jax.random.normal(xkey, (B, OBS_DIM), jnp.float32)

    fwd = jax.jit(actor_forward)
    mu, std = fwd(x, params)
    jax.block_until_ready((mu, std))

    mu_ref, std_ref = reference_forward(x, raw_params)
    assert mu.shape == (B, ACTION_SPACE) and std.shape == (B, ACTION_SPACE)
    # bf16 weights/activations -> relaxed tolerance (tanh output bounded in [-1, 1]).
    assert jnp.allclose(mu, mu_ref, atol=3e-2, rtol=3e-2), \
        float(jnp.max(jnp.abs(mu - mu_ref)))
    # std path is pure f32 in the wrapper -> exact.
    assert jnp.allclose(std, std_ref, atol=1e-6, rtol=1e-6)

    print("KERNEL_OK")
</pallas_src>

<mosaic_0001>
module attributes {stable_mosaic.version = 11 : i64} {
  func.func @actor_kernel(%arg0: i32, %arg1: memref<16x384xbf16, #tpu.memory_space<vmem>>, %arg2: memref<384x1024xbf16, #tpu.memory_space<vmem>>, %arg3: memref<1x1024xf32, #tpu.memory_space<vmem>>, %arg4: memref<1024x512xbf16, #tpu.memory_space<vmem>>, %arg5: memref<1x512xf32, #tpu.memory_space<vmem>>, %arg6: memref<512x128xbf16, #tpu.memory_space<vmem>>, %arg7: memref<1x128xf32, #tpu.memory_space<vmem>>, %arg8: memref<16x128xf32, #tpu.memory_space<vmem>>) attributes {dimension_semantics = [#tpu.dimension_semantics<parallel>], iteration_bounds = array<i64: 1>, scalar_prefetch = 0 : i64, scratch_operands = 0 : i64, tpu.core_type = #tpu.core_type<tc>, window_params = [{transform_indices = @transform_0, window_bounds = array<i64: 16, 384>}, {pipeline_mode = #tpu.pipeline_mode<synchronous>, transform_indices = @transform_1, window_bounds = array<i64: 384, 1024>}, {pipeline_mode = #tpu.pipeline_mode<synchronous>, transform_indices = @transform_2, window_bounds = array<i64: 1, 1024>}, {pipeline_mode = #tpu.pipeline_mode<synchronous>, transform_indices = @transform_3, window_bounds = array<i64: 1024, 512>}, {pipeline_mode = #tpu.pipeline_mode<synchronous>, transform_indices = @transform_4, window_bounds = array<i64: 1, 512>}, {pipeline_mode = #tpu.pipeline_mode<synchronous>, transform_indices = @transform_5, window_bounds = array<i64: 512, 128>}, {pipeline_mode = #tpu.pipeline_mode<synchronous>, transform_indices = @transform_6, window_bounds = array<i64: 1, 128>}, {transform_indices = @transform_7, window_bounds = array<i64: 16, 128>}]} {
    %c0 = arith.constant 0 : index
    %c0_0 = arith.constant 0 : index
    %0 = vector.load %arg1[%c0, %c0_0] : memref<16x384xbf16, #tpu.memory_space<vmem>>, vector<16x384xbf16>
    %c0_1 = arith.constant 0 : index
    %c0_2 = arith.constant 0 : index
    %1 = vector.load %arg2[%c0_1, %c0_2] : memref<384x1024xbf16, #tpu.memory_space<vmem>>, vector<384x1024xbf16>
    %cst = arith.constant dense<0.000000e+00> : vector<16x1024xf32>
    %2 = tpu.matmul %0, %1, %cst {dimension_numbers = #tpu.dot_dimension_numbers<[1], [0], [0], [1], [0, 0, 1, 1], [], []>} : vector<16x384xbf16>, vector<384x1024xbf16>, vector<16x1024xf32> -> vector<16x1024xf32>
    %c0_3 = arith.constant 0 : index
    %c0_4 = arith.constant 0 : index
    %3 = vector.load %arg3[%c0_3, %c0_4] : memref<1x1024xf32, #tpu.memory_space<vmem>>, vector<1x1024xf32>
    %4 = vector.broadcast %3 : vector<1x1024xf32> to vector<16x1024xf32>
    %5 = arith.addf %2, %4 : vector<16x1024xf32>
    %cst_5 = arith.constant 0.000000e+00 : f32
    %6 = vector.broadcast %cst_5 : f32 to vector<16x1024xf32>
    %7 = arith.maximumf %5, %6 : vector<16x1024xf32>
    %8 = arith.truncf %7 : vector<16x1024xf32> to vector<16x1024xbf16>
    %c0_6 = arith.constant 0 : index
    %c0_7 = arith.constant 0 : index
    %9 = vector.load %arg4[%c0_6, %c0_7] : memref<1024x512xbf16, #tpu.memory_space<vmem>>, vector<1024x512xbf16>
    %cst_8 = arith.constant dense<0.000000e+00> : vector<16x512xf32>
    %10 = tpu.matmul %8, %9, %cst_8 {dimension_numbers = #tpu.dot_dimension_numbers<[1], [0], [0], [1], [0, 0, 1, 1], [], []>} : vector<16x1024xbf16>, vector<1024x512xbf16>, vector<16x512xf32> -> vector<16x512xf32>
    %c0_9 = arith.constant 0 : index
    %c0_10 = arith.constant 0 : index
    %11 = vector.load %arg5[%c0_9, %c0_10] : memref<1x512xf32, #tpu.memory_space<vmem>>, vector<1x512xf32>
    %12 = vector.broadcast %11 : vector<1x512xf32> to vector<16x512xf32>
    %13 = arith.addf %10, %12 : vector<16x512xf32>
    %cst_11 = arith.constant 0.000000e+00 : f32
    %14 = vector.broadcast %cst_11 : f32 to vector<16x512xf32>
    %15 = arith.maximumf %13, %14 : vector<16x512xf32>
    %16 = arith.truncf %15 : vector<16x512xf32> to vector<16x512xbf16>
    %c0_12 = arith.constant 0 : index
    %c0_13 = arith.constant 0 : index
    %17 = vector.load %arg6[%c0_12, %c0_13] : memref<512x128xbf16, #tpu.memory_space<vmem>>, vector<512x128xbf16>
    %cst_14 = arith.constant dense<0.000000e+00> : vector<16x128xf32>
    %18 = tpu.matmul %16, %17, %cst_14 {dimension_numbers = #tpu.dot_dimension_numbers<[1], [0], [0], [1], [0, 0, 1, 1], [], []>} : vector<16x512xbf16>, vector<512x128xbf16>, vector<16x128xf32> -> vector<16x128xf32>
    %c0_15 = arith.constant 0 : index
    %c0_16 = arith.constant 0 : index
    %19 = vector.load %arg7[%c0_15, %c0_16] : memref<1x128xf32, #tpu.memory_space<vmem>>, vector<1x128xf32>
    %20 = vector.broadcast %19 : vector<1x128xf32> to vector<16x128xf32>
    %21 = arith.addf %18, %20 : vector<16x128xf32>
    %22 = math.tanh %21 : vector<16x128xf32>
    %c0_17 = arith.constant 0 : index
    %c0_18 = arith.constant 0 : index
    %23 = vector.load %arg8[%c0_17, %c0_18] : memref<16x128xf32, #tpu.memory_space<vmem>>, vector<16x128xf32>
    tpu.vector_store %arg8[%c0_17, %c0_18], %22 {strides = array<i32>} : memref<16x128xf32, #tpu.memory_space<vmem>>, vector<16x128xf32>,
    return
  }
  func.func @transform_0(%arg0: i32) -> (i32, i32) {
    %c0_i32 = arith.constant 0 : i32
    %c0_i32_0 = arith.constant 0 : i32
    return %arg0, %c0_i32 : i32, i32
  }
  func.func @transform_1(%arg0: i32) -> (i32, i32) {
    %c0_i32 = arith.constant 0 : i32
    %c0_i32_0 = arith.constant 0 : i32
    %c0_i32_1 = arith.constant 0 : i32
    return %c0_i32, %c0_i32_0 : i32, i32
  }
  func.func @transform_2(%arg0: i32) -> (i32, i32) {
    %c0_i32 = arith.constant 0 : i32
    %c0_i32_0 = arith.constant 0 : i32
    %c0_i32_1 = arith.constant 0 : i32
    return %c0_i32, %c0_i32_0 : i32, i32
  }
  func.func @transform_3(%arg0: i32) -> (i32, i32) {
    %c0_i32 = arith.constant 0 : i32
    %c0_i32_0 = arith.constant 0 : i32
    %c0_i32_1 = arith.constant 0 : i32
    return %c0_i32, %c0_i32_0 : i32, i32
  }
  func.func @transform_4(%arg0: i32) -> (i32, i32) {
    %c0_i32 = arith.constant 0 : i32
    %c0_i32_0 = arith.constant 0 : i32
    %c0_i32_1 = arith.constant 0 : i32
    return %c0_i32, %c0_i32_0 : i32, i32
  }
  func.func @transform_5(%arg0: i32) -> (i32, i32) {
    %c0_i32 = arith.constant 0 : i32
    %c0_i32_0 = arith.constant 0 : i32
    %c0_i32_1 = arith.constant 0 : i32
    return %c0_i32, %c0_i32_0 : i32, i32
  }
  func.func @transform_6(%arg0: i32) -> (i32, i32) {
    %c0_i32 = arith.constant 0 : i32
    %c0_i32_0 = arith.constant 0 : i32
    %c0_i32_1 = arith.constant 0 : i32
    return %c0_i32, %c0_i32_0 : i32, i32
  }
  func.func @transform_7(%arg0: i32) -> (i32, i32) {
    %c0_i32 = arith.constant 0 : i32
    %c0_i32_0 = arith.constant 0 : i32
    return %arg0, %c0_i32 : i32, i32
  }
}

</mosaic_0001>

<llo_original>
// kernel: actor_forward.1
$region0: #{actor_forward.1}
  #allocation0 [shape = 'u32[]', space=smem, size = 0x4, offset = 0x4, fixed_abs, tag = 'smem constant byte address 0x4 - core index']
  #allocation1 [shape = 'u32[144,128]{1,0:T(1,128)}', space=vmem, size = 0x12000, scoped, tag = 'internal scratch']
  %s0 = inlined_call_operand.vmem [shape: bf16[16,384], index: 0, kind: input, shape index: {}]
  %s1 = inlined_call_operand.hbm [shape: bf16[384,1024], index: 1, kind: input, shape index: {}]
  %s2 = inlined_call_operand.vmem [shape: f32[1,1024], index: 2, kind: input, shape index: {}]
  %s3 = inlined_call_operand.hbm [shape: bf16[1024,512], index: 3, kind: input, shape index: {}]
  %s4 = inlined_call_operand.vmem [shape: f32[1,512], index: 4, kind: input, shape index: {}]
  %s5 = inlined_call_operand.hbm [shape: bf16[512,128], index: 5, kind: input, shape index: {}]
  %s6 = inlined_call_operand.vmem [shape: f32[1,128], index: 6, kind: input, shape index: {}]
  %s7 = inlined_call_operand.vmem [shape: f32[16,128], index: 7, kind: output, shape index: {}]
  %s8 = sld [smem:[#allocation0]]
  $region50: #{actor_forward.1} parent=0
    _
  %s10 = ssub.s32 1, %s8
  %s11 = scalar_select 0, %s10, %s8
  $region1: #{actor_forward.1} parent=0
    #allocation2 [shape = 'u8[786432]{0}', space=vmem, size = 0xc0000, scoped, tag = 'input window, operand 1, single buffered']
    #allocation3 [shape = 's32[1]{0}', space=sflag, size = 0x4, scoped, tag = 'scoped memory for actor_forward.1']
    #allocation4 [shape = 'u8[1048576]{0}', space=vmem, size = 0x100000, scoped, tag = 'input window, operand 3, single buffered']
    #allocation5 [shape = 's32[1]{0}', space=sflag, size = 0x4, scoped, tag = 'scoped memory for actor_forward.1']
    #allocation6 [shape = 'u8[131072]{0}', space=vmem, size = 0x20000, scoped, tag = 'input window, operand 5, single buffered']
    %12 = vsyncpa [#allocation3], 0
    %13 = vsyncpa [#allocation5], 0
    // Predicated region
    $region2: #{actor_forward.1} parent=1 // pred_check
      _
    $region3: #{actor_forward.1} parent=1 // pred_check_branch
      %15 = sbr.rel (0) target = $region5
    $region4: #{actor_forward.1} parent=1 // pred_region
      _
    $region5: #{actor_forward.1} parent=1 // pred_fallthru
      _
    // Predicated region
    $region6: #{actor_forward.1} parent=1 // pred_check
      _
    $region7: #{actor_forward.1} parent=1 // pred_check_branch
      %17 = sbr.rel (0) target = $region9
    $region8: #{actor_forward.1} parent=1 // pred_region
      %s19 = ssub.s32 24576, 24576
      %20 = vsyncadd [#allocation3], %s19
      %s21 = sshll.u32 [#allocation2], 4
      %s22 = int_to_ptr.vmem [resolvable:$true] %s21
      %27 = dma.hbm_to_vmem [thread:$0]  %s1, 24576, %s22, [#allocation3], 512, 512, 32
    $region9: #{actor_forward.1} parent=1 // pred_fallthru
      _
    // Predicated region
    $region10: #{actor_forward.1} parent=1 // pred_check
      _
    $region11: #{actor_forward.1} parent=1 // pred_check_branch
      %29 = sbr.rel (0) target = $region13
    $region12: #{actor_forward.1} parent=1 // pred_region
      _
    $region13: #{actor_forward.1} parent=1 // pred_fallthru
      _
    // Predicated region
    $region14: #{actor_forward.1} parent=1 // pred_check
      _
    $region15: #{actor_forward.1} parent=1 // pred_check_branch
      %31 = sbr.rel (0) target = $region17
    $region16: #{actor_forward.1} parent=1 // pred_region
      %s33 = ssub.s32 32768, 32768
      %34 = vsyncadd [#allocation5], %s33
      %s35 = sshll.u32 [#allocation4], 4
      %s36 = int_to_ptr.vmem [resolvable:$true] %s35
      %41 = dma.hbm_to_vmem [thread:$0]  %s3, 32768, %s36, [#allocation5], 256, 256, 16
    $region17: #{actor_forward.1} parent=1 // pred_fallthru
      _
    // Predicated region
    $region18: #{actor_forward.1} parent=1 // pred_check
      _
    $region19: #{actor_forward.1} parent=1 // pred_check_branch
      %43 = sbr.rel (0) target = $region21
    $region20: #{actor_forward.1} parent=1 // pred_region
      _
    $region21: #{actor_forward.1} parent=1 // pred_fallthru
      _
    // Predicated region
    $region22: #{actor_forward.1} parent=1 // pred_check
      _
    $region23: #{actor_forward.1} parent=1 // pred_check_branch
      %45 = sbr.rel (0) target = $region25
    $region24: #{actor_forward.1} parent=1 // pred_region
      %s47 = ssub.s32 4096, 4096
      %48 = vsyncadd [#allocation5], %s47
      %s49 = sshll.u32 [#allocation6], 4
      %s50 = int_to_ptr.vmem [resolvable:$true] %s49
      %55 = dma.hbm_to_vmem [thread:$0]  %s5, 4096, %s50, [#allocation5], 64, 64, 4
    $region25: #{actor_forward.1} parent=1 // pred_fallthru
      _
    // Predicated region
    $region26: #{actor_forward.1} parent=1 // pred_check
      _
    $region27: #{actor_forward.1} parent=1 // pred_check_branch
      %57 = sbr.rel (0) target = $region29
    $region28: #{actor_forward.1} parent=1 // pred_region
      _
    $region29: #{actor_forward.1} parent=1 // pred_fallthru
      _
    // Predicated region
    $region30: #{actor_forward.1} parent=1 // pred_check
      _
    $region31: #{actor_forward.1} parent=1 // pred_check_branch
      %59 = sbr.rel (0) target = $region33
    $region32: #{actor_forward.1} parent=1 // pred_region
      %60 = dma.done [#allocation3], 24576
    $region33: #{actor_forward.1} parent=1 // pred_fallthru
      _
    // Predicated region
    $region34: #{actor_forward.1} parent=1 // pred_check
      _
    $region35: #{actor_forward.1} parent=1 // pred_check_branch
      %62 = sbr.rel (0) target = $region37
    $region36: #{actor_forward.1} parent=1 // pred_region
      %63 = dma.done [#allocation5], 32768
    $region37: #{actor_forward.1} parent=1 // pred_fallthru
      _
    // Predicated region
    $region38: #{actor_forward.1} parent=1 // pred_check
      _
    $region39: #{actor_forward.1} parent=1 // pred_check_branch
      %65 = sbr.rel (0) target = $region41
    $region40: #{actor_forward.1} parent=1 // pred_region
      %66 = dma.done [#allocation5], 4096
    $region41: #{actor_forward.1} parent=1 // pred_fallthru
      _
    %v68 = vld [vmem:[%s0] sm:$0xff]
    %v69 = vld [vmem:[%s0 + $0x8] sm:$0xf]
    %v70 = vld [vmem:[%s0 + $0xc] sm:$0xff]
    %v71 = vld [vmem:[%s0 + $0x14] sm:$0xf]
    %v72 = vld [vmem:[#allocation2] sm:$0xff]
    %v73 = vld [vmem:[#allocation2 + $0x8] sm:$0xff]
    %v74 = vld [vmem:[#allocation2 + $0x10] sm:$0xff]
    %v75 = vld [vmem:[#allocation2 + $0x18] sm:$0xff]
    %v76 = vld [vmem:[#allocation2 + $0x20] sm:$0xff]
    %v77 = vld [vmem:[#allocation2 + $0x28] sm:$0xff]
    %v78 = vld [vmem:[#allocation2 + $0x30] sm:$0xff]
    %v79 = vld [vmem:[#allocation2 + $0x38] sm:$0xff]
    %v80 = vld [vmem:[#allocation2 + $0x40] sm:$0xff]
    %v81 = vld [vmem:[#allocation2 + $0x48] sm:$0xff]
    %v82 = vld [vmem:[#allocation2 + $0x50] sm:$0xff]
    %v83 = vld [vmem:[#allocation2 + $0x58] sm:$0xff]
    %v84 = vld [vmem:[#allocation2 + $0x60] sm:$0xff]
    %v85 = vld [vmem:[#allocation2 + $0x68] sm:$0xff]
    %v86 = vld [vmem:[#allocation2 + $0x70] sm:$0xff]
    %v87 = vld [vmem:[#allocation2 + $0x78] sm:$0xff]
    %v88 = vld [vmem:[#allocation2 + $0x80] sm:$0xff]
    %v89 = vld [vmem:[#allocation2 + $0x88] sm:$0xff]
    %v90 = vld [vmem:[#allocation2 + $0x90] sm:$0xff]
    %v91 = vld [vmem:[#allocation2 + $0x98] sm:$0xff]
    %v92 = vld [vmem:[#allocation2 + $0xa0] sm:$0xff]
    %v93 = vld [vmem:[#allocation2 + $0xa8] sm:$0xff]
    %v94 = vld [vmem:[#allocation2 + $0xb0] sm:$0xff]
    %v95 = vld [vmem:[#allocation2 + $0xb8] sm:$0xff]
    %v96 = vld [vmem:[#allocation2 + $0xc0] sm:$0xff]
    %v97 = vld [vmem:[#allocation2 + $0xc8] sm:$0xff]
    %v98 = vld [vmem:[#allocation2 + $0xd0] sm:$0xff]
    %v99 = vld [vmem:[#allocation2 + $0xd8] sm:$0xff]
    %v100 = vld [vmem:[#allocation2 + $0xe0] sm:$0xff]
    %v101 = vld [vmem:[#allocation2 + $0xe8] sm:$0xff]
    %v102 = vld [vmem:[#allocation2 + $0xf0] sm:$0xff]
    %v103 = vld [vmem:[#allocation2 + $0xf8] sm:$0xff]
    %v104 = vld [vmem:[#allocation2 + $0x100] sm:$0xff]
    %v105 = vld [vmem:[#allocation2 + $0x108] sm:$0xff]
    %v106 = vld [vmem:[#allocation2 + $0x110] sm:$0xff]
    %v107 = vld [vmem:[#allocation2 + $0x118] sm:$0xff]
    %v108 = vld [vmem:[#allocation2 + $0x120] sm:$0xff]
    %v109 = vld [vmem:[#allocation2 + $0x128] sm:$0xff]
    %v110 = vld [vmem:[#allocation2 + $0x130] sm:$0xff]
    %v111 = vld [vmem:[#allocation2 + $0x138] sm:$0xff]
    %v112 = vld [vmem:[#allocation2 + $0x140] sm:$0xff]
    %v113 = vld [vmem:[#allocation2 + $0x148] sm:$0xff]
    %v114 = vld [vmem:[#allocation2 + $0x150] sm:$0xff]
    %v115 = vld [vmem:[#allocation2 + $0x158] sm:$0xff]
    %v116 = vld [vmem:[#allocation2 + $0x160] sm:$0xff]
    %v117 = vld [vmem:[#allocation2 + $0x168] sm:$0xff]
    %v118 = vld [vmem:[#allocation2 + $0x170] sm:$0xff]
    %v119 = vld [vmem:[#allocation2 + $0x178] sm:$0xff]
    %v120 = vld [vmem:[#allocation2 + $0x180] sm:$0xff]
    %v121 = vld [vmem:[#allocation2 + $0x188] sm:$0xff]
    %v122 = vld [vmem:[#allocation2 + $0x190] sm:$0xff]
    %v123 = vld [vmem:[#allocation2 + $0x198] sm:$0xff]
    %v124 = vld [vmem:[#allocation2 + $0x1a0] sm:$0xff]
    %v125 = vld [vmem:[#allocation2 + $0x1a8] sm:$0xff]
    %v126 = vld [vmem:[#allocation2 + $0x1b0] sm:$0xff]
    %v127 = vld [vmem:[#allocation2 + $0x1b8] sm:$0xff]
    %v128 = vld [vmem:[#allocation2 + $0x1c0] sm:$0xff]
    %v129 = vld [vmem:[#allocation2 + $0x1c8] sm:$0xff]
    %v130 = vld [vmem:[#allocation2 + $0x1d0] sm:$0xff]
    %v131 = vld [vmem:[#allocation2 + $0x1d8] sm:$0xff]
    %v132 = vld [vmem:[#allocation2 + $0x1e0] sm:$0xff]
    %v133 = vld [vmem:[#allocation2 + $0x1e8] sm:$0xff]
    %v134 = vld [vmem:[#allocation2 + $0x1f0] sm:$0xff]
    %v135 = vld [vmem:[#allocation2 + $0x1f8] sm:$0xff]
    %v136 = vld [vmem:[#allocation2 + $0x200] sm:$0xff]
    %v137 = vld [vmem:[#allocation2 + $0x208] sm:$0xff]
    %v138 = vld [vmem:[#allocation2 + $0x210] sm:$0xff]
    %v139 = vld [vmem:[#allocation2 + $0x218] sm:$0xff]
    %v140 = vld [vmem:[#allocation2 + $0x220] sm:$0xff]
    %v141 = vld [vmem:[#allocation2 + $0x228] sm:$0xff]
    %v142 = vld [vmem:[#allocation2 + $0x230] sm:$0xff]
    %v143 = vld [vmem:[#allocation2 + $0x238] sm:$0xff]
    %v144 = vld [vmem:[#allocation2 + $0x240] sm:$0xff]
    %v145 = vld [vmem:[#allocation2 + $0x248] sm:$0xff]
    %v146 = vld [vmem:[#allocation2 + $0x250] sm:$0xff]
    %v147 = vld [vmem:[#allocation2 + $0x258] sm:$0xff]
    %v148 = vld [vmem:[#allocation2 + $0x260] sm:$0xff]
    %v149 = vld [vmem:[#allocation2 + $0x268] sm:$0xff]
    %v150 = vld [vmem:[#allocation2 + $0x270] sm:$0xff]
    %v151 = vld [vmem:[#allocation2 + $0x278] sm:$0xff]
    %v152 = vld [vmem:[#allocation2 + $0x280] sm:$0xff]
    %v153 = vld [vmem:[#allocation2 + $0x288] sm:$0xff]
    %v154 = vld [vmem:[#allocation2 + $0x290] sm:$0xff]
    %v155 = vld [vmem:[#allocation2 + $0x298] sm:$0xff]
    %v156 = vld [vmem:[#allocation2 + $0x2a0] sm:$0xff]
    %v157 = vld [vmem:[#allocation2 + $0x2a8] sm:$0xff]
    %v158 = vld [vmem:[#allocation2 + $0x2b0] sm:$0xff]
    %v159 = vld [vmem:[#allocation2 + $0x2b8] sm:$0xff]
    %v160 = vld [vmem:[#allocation2 + $0x2c0] sm:$0xff]
    %v161 = vld [vmem:[#allocation2 + $0x2c8] sm:$0xff]
    %v162 = vld [vmem:[#allocation2 + $0x2d0] sm:$0xff]
    %v163 = vld [vmem:[#allocation2 + $0x2d8] sm:$0xff]
    %v164 = vld [vmem:[#allocation2 + $0x2e0] sm:$0xff]
    %v165 = vld [vmem:[#allocation2 + $0x2e8] sm:$0xff]
    %v166 = vld [vmem:[#allocation2 + $0x2f0] sm:$0xff]
    %v167 = vld [vmem:[#allocation2 + $0x2f8] sm:$0xff]
    %v168 = vld [vmem:[#allocation2 + $0x300] sm:$0xff]
    %v169 = vld [vmem:[#allocation2 + $0x308] sm:$0xff]
    %v170 = vld [vmem:[#allocation2 + $0x310] sm:$0xff]
    %v171 = vld [vmem:[#allocation2 + $0x318] sm:$0xff]
    %v172 = vld [vmem:[#allocation2 + $0x320] sm:$0xff]
    %v173 = vld [vmem:[#allocation2 + $0x328] sm:$0xff]
    %v174 = vld [vmem:[#allocation2 + $0x330] sm:$0xff]
    %v175 = vld [vmem:[#allocation2 + $0x338] sm:$0xff]
    %v176 = vld [vmem:[#allocation2 + $0x340] sm:$0xff]
    %v177 = vld [vmem:[#allocation2 + $0x348] sm:$0xff]
    %v178 = vld [vmem:[#allocation2 + $0x350] sm:$0xff]
    %v179 = vld [vmem:[#allocation2 + $0x358] sm:$0xff]
    %v180 = vld [vmem:[#allocation2 + $0x360] sm:$0xff]
    %v181 = vld [vmem:[#allocation2 + $0x368] sm:$0xff]
    %v182 = vld [vmem:[#allocation2 + $0x370] sm:$0xff]
    %v183 = vld [vmem:[#allocation2 + $0x378] sm:$0xff]
    %v184 = vld [vmem:[#allocation2 + $0x380] sm:$0xff]
    %v185 = vld [vmem:[#allocation2 + $0x388] sm:$0xff]
    %v186 = vld [vmem:[#allocation2 + $0x390] sm:$0xff]
    %v187 = vld [vmem:[#allocation2 + $0x398] sm:$0xff]
    %v188 = vld [vmem:[#allocation2 + $0x3a0] sm:$0xff]
    %v189 = vld [vmem:[#allocation2 + $0x3a8] sm:$0xff]
    %v190 = vld [vmem:[#allocation2 + $0x3b0] sm:$0xff]
    %v191 = vld [vmem:[#allocation2 + $0x3b8] sm:$0xff]
    %v192 = vld [vmem:[#allocation2 + $0x3c0] sm:$0xff]
    %v193 = vld [vmem:[#allocation2 + $0x3c8] sm:$0xff]
    %v194 = vld [vmem:[#allocation2 + $0x3d0] sm:$0xff]
    %v195 = vld [vmem:[#allocation2 + $0x3d8] sm:$0xff]
    %v196 = vld [vmem:[#allocation2 + $0x3e0] sm:$0xff]
    %v197 = vld [vmem:[#allocation2 + $0x3e8] sm:$0xff]
    %v198 = vld [vmem:[#allocation2 + $0x3f0] sm:$0xff]
    %v199 = vld [vmem:[#allocation2 + $0x3f8] sm:$0xff]
    %v200 = vld [vmem:[#allocation2 + $0x400] sm:$0xff]
    %v201 = vld [vmem:[#allocation2 + $0x408] sm:$0xff]
    %v202 = vld [vmem:[#allocation2 + $0x410] sm:$0xff]
    %v203 = vld [vmem:[#allocation2 + $0x418] sm:$0xff]
    %v204 = vld [vmem:[#allocation2 + $0x420] sm:$0xff]
    %v205 = vld [vmem:[#allocation2 + $0x428] sm:$0xff]
    %v206 = vld [vmem:[#allocation2 + $0x430] sm:$0xff]
    %v207 = vld [vmem:[#allocation2 + $0x438] sm:$0xff]
    %v208 = vld [vmem:[#allocation2 + $0x440] sm:$0xff]
    %v209 = vld [vmem:[#allocation2 + $0x448] sm:$0xff]
    %v210 = vld [vmem:[#allocation2 + $0x450] sm:$0xff]
    %v211 = vld [vmem:[#allocation2 + $0x458] sm:$0xff]
    %v212 = vld [vmem:[#allocation2 + $0x460] sm:$0xff]
    %v213 = vld [vmem:[#allocation2 + $0x468] sm:$0xff]
    %v214 = vld [vmem:[#allocation2 + $0x470] sm:$0xff]
    %v215 = vld [vmem:[#allocation2 + $0x478] sm:$0xff]
    %v216 = vld [vmem:[#allocation2 + $0x480] sm:$0xff]
    %v217 = vld [vmem:[#allocation2 + $0x488] sm:$0xff]
    %v218 = vld [vmem:[#allocation2 + $0x490] sm:$0xff]
    %v219 = vld [vmem:[#allocation2 + $0x498] sm:$0xff]
    %v220 = vld [vmem:[#allocation2 + $0x4a0] sm:$0xff]
    %v221 = vld [vmem:[#allocation2 + $0x4a8] sm:$0xff]
    %v222 = vld [vmem:[#allocation2 + $0x4b0] sm:$0xff]
    %v223 = vld [vmem:[#allocation2 + $0x4b8] sm:$0xff]
    %v224 = vld [vmem:[#allocation2 + $0x4c0] sm:$0xff]
    %v225 = vld [vmem:[#allocation2 + $0x4c8] sm:$0xff]
    %v226 = vld [vmem:[#allocation2 + $0x4d0] sm:$0xff]
    %v227 = vld [vmem:[#allocation2 + $0x4d8] sm:$0xff]
    %v228 = vld [vmem:[#allocation2 + $0x4e0] sm:$0xff]
    %v229 = vld [vmem:[#allocation2 + $0x4e8] sm:$0xff]
    %v230 = vld [vmem:[#allocation2 + $0x4f0] sm:$0xff]
    %v231 = vld [vmem:[#allocation2 + $0x4f8] sm:$0xff]
    %v232 = vld [vmem:[#allocation2 + $0x500] sm:$0xff]
    %v233 = vld [vmem:[#allocation2 + $0x508] sm:$0xff]
    %v234 = vld [vmem:[#allocation2 + $0x510] sm:$0xff]
    %v235 = vld [vmem:[#allocation2 + $0x518] sm:$0xff]
    %v236 = vld [vmem:[#allocation2 + $0x520] sm:$0xff]
    %v237 = vld [vmem:[#allocation2 + $0x528] sm:$0xff]
    %v238 = vld [vmem:[#allocation2 + $0x530] sm:$0xff]
    %v239 = vld [vmem:[#allocation2 + $0x538] sm:$0xff]
    %v240 = vld [vmem:[#allocation2 + $0x540] sm:$0xff]
    %v241 = vld [vmem:[#allocation2 + $0x548] sm:$0xff]
    %v242 = vld [vmem:[#allocation2 + $0x550] sm:$0xff]
    %v243 = vld [vmem:[#allocation2 + $0x558] sm:$0xff]
    %v244 = vld [vmem:[#allocation2 + $0x560] sm:$0xff]
    %v245 = vld [vmem:[#allocation2 + $0x568] sm:$0xff]
    %v246 = vld [vmem:[#allocation2 + $0x570] sm:$0xff]
    %v247 = vld [vmem:[#allocation2 + $0x578] sm:$0xff]
    %v248 = vld [vmem:[#allocation2 + $0x580] sm:$0xff]
    %v249 = vld [vmem:[#allocation2 + $0x588] sm:$0xff]
    %v250 = vld [vmem:[#allocation2 + $0x590] sm:$0xff]
    %v251 = vld [vmem:[#allocation2 + $0x598] sm:$0xff]
    %v252 = vld [vmem:[#allocation2 + $0x5a0] sm:$0xff]
    %v253 = vld [vmem:[#allocation2 + $0x5a8] sm:$0xff]
    %v254 = vld [vmem:[#allocation2 + $0x5b0] sm:$0xff]
    %v255 = vld [vmem:[#allocation2 + $0x5b8] sm:$0xff]
    %v256 = vld [vmem:[#allocation2 + $0x5c0] sm:$0xff]
    %v257 = vld [vmem:[#allocation2 + $0x5c8] sm:$0xff]
    %v258 = vld [vmem:[#allocation2 + $0x5d0] sm:$0xff]
    %v259 = vld [vmem:[#allocation2 + $0x5d8] sm:$0xff]
    %v260 = vld [vmem:[#allocation2 + $0x5e0] sm:$0xff]
    %v261 = vld [vmem:[#allocation2 + $0x5e8] sm:$0xff]
    %v262 = vld [vmem:[#allocation2 + $0x5f0] sm:$0xff]
    %v263 = vld [vmem:[#allocation2 + $0x5f8] sm:$0xff]
    %v264 = vld [vmem:[%s2] sm:$0xff]
    %v266 = vlaneseq
    %v267 = vshrl.u32 %v266, 7
    %v268 = vsub.s32 0, %v267
    %v269 = vrot.slane %v264, %v268
    %v270 = vlaneseq
    %v271 = vshrl.u32 %v270, 7
    %v272 = vsub.s32 1, %v271
    %v273 = vrot.slane %v264, %v272
    %v274 = vlaneseq
    %v275 = vshrl.u32 %v274, 7
    %v276 = vsub.s32 2, %v275
    %v277 = vrot.slane %v264, %v276
    %v278 = vlaneseq
    %v279 = vshrl.u32 %v278, 7
    %v280 = vsub.s32 3, %v279
    %v281 = vrot.slane %v264, %v280
    %v282 = vlaneseq
    %v283 = vshrl.u32 %v282, 7
    %v284 = vsub.s32 4, %v283
    %v285 = vrot.slane %v264, %v284
    %v286 = vlaneseq
    %v287 = vshrl.u32 %v286, 7
    %v288 = vsub.s32 5, %v287
    %v289 = vrot.slane %v264, %v288
    %v290 = vlaneseq
    %v291 = vshrl.u32 %v290, 7
    %v292 = vsub.s32 6, %v291
    %v293 = vrot.slane %v264, %v292
    %v294 = vlaneseq
    %v295 = vshrl.u32 %v294, 7
    %v296 = vsub.s32 7, %v295
    %v297 = vrot.slane %v264, %v296
    %v310 = vunpack.c.l.b16 %v68
    %v311 = vunpack.c.h.b16 %v68
    %v312 = vunpack.c.l.b16 %v69
    %v313 = vunpack.c.l.b16 %v70
    %v314 = vunpack.c.h.b16 %v70
    %v315 = vunpack.c.l.b16 %v71
    %v316 = vpack.c.b16 %v313, %v310
    %v317 = vpack.c.b16 %v314, %v311
    %v318 = vpack.c.b16 %v315, %v312
    %v514 = vunpack.c.l.b16 %v72
    %v515 = vunpack.c.h.b16 %v72
    %v516 = vunpack.c.l.b16 %v73
    %v517 = vunpack.c.h.b16 %v73
    %v518 = vunpack.c.l.b16 %v74
    %v519 = vunpack.c.h.b16 %v74
    %v520 = vunpack.c.l.b16 %v75
    %v521 = vunpack.c.h.b16 %v75
    %v522 = vunpack.c.l.b16 %v76
    %v523 = vunpack.c.h.b16 %v76
    %v524 = vunpack.c.l.b16 %v77
    %v525 = vunpack.c.h.b16 %v77
    %v526 = vunpack.c.l.b16 %v78
    %v527 = vunpack.c.h.b16 %v78
    %v528 = vunpack.c.l.b16 %v79
    %v529 = vunpack.c.h.b16 %v79
    %v530 = vunpack.c.l.b16 %v80
    %v531 = vunpack.c.h.b16 %v80
    %v532 = vunpack.c.l.b16 %v81
    %v533 = vunpack.c.h.b16 %v81
    %v534 = vunpack.c.l.b16 %v82
    %v535 = vunpack.c.h.b16 %v82
    %v536 = vunpack.c.l.b16 %v83
    %v537 = vunpack.c.h.b16 %v83
    %v538 = vunpack.c.l.b16 %v84
    %v539 = vunpack.c.h.b16 %v84
    %v540 = vunpack.c.l.b16 %v85
    %v541 = vunpack.c.h.b16 %v85
    %v542 = vunpack.c.l.b16 %v86
    %v543 = vunpack.c.h.b16 %v86
    %v544 = vunpack.c.l.b16 %v87
    %v545 = vunpack.c.h.b16 %v87
    %v546 = vunpack.c.l.b16 %v88
    %v547 = vunpack.c.h.b16 %v88
    %v548 = vunpack.c.l.b16 %v89
    %v549 = vunpack.c.h.b16 %v89
    %v550 = vunpack.c.l.b16 %v90
    %v551 = vunpack.c.h.b16 %v90
    %v552 = vunpack.c.l.b16 %v91
    %v553 = vunpack.c.h.b16 %v91
    %v554 = vunpack.c.l.b16 %v92
    %v555 = vunpack.c.h.b16 %v92
    %v556 = vunpack.c.l.b16 %v93
    %v557 = vunpack.c.h.b16 %v93
    %v558 = vunpack.c.l.b16 %v94
    %v559 = vunpack.c.h.b16 %v94
    %v560 = vunpack.c.l.b16 %v95
    %v561 = vunpack.c.h.b16 %v95
    %v562 = vunpack.c.l.b16 %v96
    %v563 = vunpack.c.h.b16 %v96
    %v564 = vunpack.c.l.b16 %v97
    %v565 = vunpack.c.h.b16 %v97
    %v566 = vunpack.c.l.b16 %v98
    %v567 = vunpack.c.h.b16 %v98
    %v568 = vunpack.c.l.b16 %v99
    %v569 = vunpack.c.h.b16 %v99
    %v570 = vunpack.c.l.b16 %v100
    %v571 = vunpack.c.h.b16 %v100
    %v572 = vunpack.c.l.b16 %v101
    %v573 = vunpack.c.h.b16 %v101
    %v574 = vunpack.c.l.b16 %v102
    %v575 = vunpack.c.h.b16 %v102
    %v576 = vunpack.c.l.b16 %v103
    %v577 = vunpack.c.h.b16 %v103
    %v578 = vunpack.c.l.b16 %v104
    %v579 = vunpack.c.h.b16 %v104
    %v580 = vunpack.c.l.b16 %v105
    %v581 = vunpack.c.h.b16 %v105
    %v582 = vunpack.c.l.b16 %v106
    %v583 = vunpack.c.h.b16 %v106
    %v584 = vunpack.c.l.b16 %v107
    %v585 = vunpack.c.h.b16 %v107
    %v586 = vunpack.c.l.b16 %v108
    %v587 = vunpack.c.h.b16 %v108
    %v588 = vunpack.c.l.b16 %v109
    %v589 = vunpack.c.h.b16 %v109
    %v590 = vunpack.c.l.b16 %v110
    %v591 = vunpack.c.h.b16 %v110
    %v592 = vunpack.c.l.b16 %v111
    %v593 = vunpack.c.h.b16 %v111
    %v594 = vunpack.c.l.b16 %v112
    %v595 = vunpack.c.h.b16 %v112
    %v596 = vunpack.c.l.b16 %v113
    %v597 = vunpack.c.h.b16 %v113
    %v598 = vunpack.c.l.b16 %v114
    %v599 = vunpack.c.h.b16 %v114
    %v600 = vunpack.c.l.b16 %v115
    %v601 = vunpack.c.h.b16 %v115
    %v602 = vunpack.c.l.b16 %v116
    %v603 = vunpack.c.h.b16 %v116
    %v604 = vunpack.c.l.b16 %v117
    %v605 = vunpack.c.h.b16 %v117
    %v606 = vunpack.c.l.b16 %v118
    %v607 = vunpack.c.h.b16 %v118
    %v608 = vunpack.c.l.b16 %v119
    %v609 = vunpack.c.h.b16 %v119
    %v610 = vunpack.c.l.b16 %v120
    %v611 = vunpack.c.h.b16 %v120
    %v612 = vunpack.c.l.b16 %v121
    %v613 = vunpack.c.h.b16 %v121
    %v614 = vunpack.c.l.b16 %v122
    %v615 = vunpack.c.h.b16 %v122
    %v616 = vunpack.c.l.b16 %v123
    %v617 = vunpack.c.h.b16 %v123
    %v618 = vunpack.c.l.b16 %v124
    %v619 = vunpack.c.h.b16 %v124
    %v620 = vunpack.c.l.b16 %v125
    %v621 = vunpack.c.h.b16 %v125
    %v622 = vunpack.c.l.b16 %v126
    %v623 = vunpack.c.h.b16 %v126
    %v624 = vunpack.c.l.b16 %v127
    %v625 = vunpack.c.h.b16 %v127
    %v626 = vunpack.c.l.b16 %v128
    %v627 = vunpack.c.h.b16 %v128
    %v628 = vunpack.c.l.b16 %v129
    %v629 = vunpack.c.h.b16 %v129
    %v630 = vunpack.c.l.b16 %v130
    %v631 = vunpack.c.h.b16 %v130
    %v632 = vunpack.c.l.b16 %v131
    %v633 = vunpack.c.h.b16 %v131
    %v634 = vunpack.c.l.b16 %v132
    %v635 = vunpack.c.h.b16 %v132
    %v636 = vunpack.c.l.b16 %v133
    %v637 = vunpack.c.h.b16 %v133
    %v638 = vunpack.c.l.b16 %v134
    %v639 = vunpack.c.h.b16 %v134
    %v640 = vunpack.c.l.b16 %v135
    %v641 = vunpack.c.h.b16 %v135
    %v642 = vunpack.c.l.b16 %v136
    %v643 = vunpack.c.h.b16 %v136
    %v644 = vunpack.c.l.b16 %v137
    %v645 = vunpack.c.h.b16 %v137
    %v646 = vunpack.c.l.b16 %v138
    %v647 = vunpack.c.h.b16 %v138
    %v648 = vunpack.c.l.b16 %v139
    %v649 = vunpack.c.h.b16 %v139
    %v650 = vunpack.c.l.b16 %v140
    %v651 = vunpack.c.h.b16 %v140
    %v652 = vunpack.c.l.b16 %v141
    %v653 = vunpack.c.h.b16 %v141
    %v654 = vunpack.c.l.b16 %v142
    %v655 = vunpack.c.h.b16 %v142
    %v656 = vunpack.c.l.b16 %v143
    %v657 = vunpack.c.h.b16 %v143
    %v658 = vunpack.c.l.b16 %v144
    %v659 = vunpack.c.h.b16 %v144
    %v660 = vunpack.c.l.b16 %v145
    %v661 = vunpack.c.h.b16 %v145
    %v662 = vunpack.c.l.b16 %v146
    %v663 = vunpack.c.h.b16 %v146
    %v664 = vunpack.c.l.b16 %v147
    %v665 = vunpack.c.h.b16 %v147
    %v666 = vunpack.c.l.b16 %v148
    %v667 = vunpack.c.h.b16 %v148
    %v668 = vunpack.c.l.b16 %v149
    %v669 = vunpack.c.h.b16 %v149
    %v670 = vunpack.c.l.b16 %v150
    %v671 = vunpack.c.h.b16 %v150
    %v672 = vunpack.c.l.b16 %v151
    %v673 = vunpack.c.h.b16 %v151
    %v674 = vunpack.c.l.b16 %v152
    %v675 = vunpack.c.h.b16 %v152
    %v676 = vunpack.c.l.b16 %v153
    %v677 = vunpack.c.h.b16 %v153
    %v678 = vunpack.c.l.b16 %v154
    %v679 = vunpack.c.h.b16 %v154
    %v680 = vunpack.c.l.b16 %v155
    %v681 = vunpack.c.h.b16 %v155
    %v682 = vunpack.c.l.b16 %v156
    %v683 = vunpack.c.h.b16 %v156
    %v684 = vunpack.c.l.b16 %v157
    %v685 = vunpack.c.h.b16 %v157
    %v686 = vunpack.c.l.b16 %v158
    %v687 = vunpack.c.h.b16 %v158
    %v688 = vunpack.c.l.b16 %v159
    %v689 = vunpack.c.h.b16 %v159
    %v690 = vunpack.c.l.b16 %v160
    %v691 = vunpack.c.h.b16 %v160
    %v692 = vunpack.c.l.b16 %v161
    %v693 = vunpack.c.h.b16 %v161
    %v694 = vunpack.c.l.b16 %v162
    %v695 = vunpack.c.h.b16 %v162
    %v696 = vunpack.c.l.b16 %v163
    %v697 = vunpack.c.h.b16 %v163
    %v698 = vunpack.c.l.b16 %v164
    %v699 = vunpack.c.h.b16 %v164
    %v700 = vunpack.c.l.b16 %v165
    %v701 = vunpack.c.h.b16 %v165
    %v702 = vunpack.c.l.b16 %v166
    %v703 = vunpack.c.h.b16 %v166
    %v704 = vunpack.c.l.b16 %v167
    %v705 = vunpack.c.h.b16 %v167
    %v706 = vunpack.c.l.b16 %v168
    %v707 = vunpack.c.h.b16 %v168
    %v708 = vunpack.c.l.b16 %v169
    %v709 = vunpack.c.h.b16 %v169
    %v710 = vunpack.c.l.b16 %v170
    %v711 = vunpack.c.h.b16 %v170
    %v712 = vunpack.c.l.b16 %v171
    %v713 = vunpack.c.h.b16 %v171
    %v714 = vunpack.c.l.b16 %v172
    %v715 = vunpack.c.h.b16 %v172
    %v716 = vunpack.c.l.b16 %v173
    %v717 = vunpack.c.h.b16 %v173
    %v718 = vunpack.c.l.b16 %v174
    %v719 = vunpack.c.h.b16 %v174
    %v720 = vunpack.c.l.b16 %v175
    %v721 = vunpack.c.h.b16 %v175
    %v722 = vunpack.c.l.b16 %v176
    %v723 = vunpack.c.h.b16 %v176
    %v724 = vunpack.c.l.b16 %v177
    %v725 = vunpack.c.h.b16 %v177
    %v726 = vunpack.c.l.b16 %v178
    %v727 = vunpack.c.h.b16 %v178
    %v728 = vunpack.c.l.b16 %v179
    %v729 = vunpack.c.h.b16 %v179
    %v730 = vunpack.c.l.b16 %v180
    %v731 = vunpack.c.h.b16 %v180
    %v732 = vunpack.c.l.b16 %v181
    %v733 = vunpack.c.h.b16 %v181
    %v734 = vunpack.c.l.b16 %v182
    %v735 = vunpack.c.h.b16 %v182
    %v736 = vunpack.c.l.b16 %v183
    %v737 = vunpack.c.h.b16 %v183
    %v738 = vunpack.c.l.b16 %v184
    %v739 = vunpack.c.h.b16 %v184
    %v740 = vunpack.c.l.b16 %v185
    %v741 = vunpack.c.h.b16 %v185
    %v742 = vunpack.c.l.b16 %v186
    %v743 = vunpack.c.h.b16 %v186
    %v744 = vunpack.c.l.b16 %v187
    %v745 = vunpack.c.h.b16 %v187
    %v746 = vunpack.c.l.b16 %v188
    %v747 = vunpack.c.h.b16 %v188
    %v748 = vunpack.c.l.b16 %v189
    %v749 = vunpack.c.h.b16 %v189
    %v750 = vunpack.c.l.b16 %v190
    %v751 = vunpack.c.h.b16 %v190
    %v752 = vunpack.c.l.b16 %v191
    %v753 = vunpack.c.h.b16 %v191
    %v754 = vunpack.c.l.b16 %v192
    %v755 = vunpack.c.h.b16 %v192
    %v756 = vunpack.c.l.b16 %v193
    %v757 = vunpack.c.h.b16 %v193
    %v758 = vunpack.c.l.b16 %v194
    %v759 = vunpack.c.h.b16 %v194
    %v760 = vunpack.c.l.b16 %v195
    %v761 = vunpack.c.h.b16 %v195
    %v762 = vunpack.c.l.b16 %v196
    %v763 = vunpack.c.h.b16 %v196
    %v764 = vunpack.c.l.b16 %v197
    %v765 = vunpack.c.h.b16 %v197
    %v766 = vunpack.c.l.b16 %v198
    %v767 = vunpack.c.h.b16 %v198
    %v768 = vunpack.c.l.b16 %v199
    %v769 = vunpack.c.h.b16 %v199
    %v770 = vunpack.c.l.b16 %v200
    %v771 = vunpack.c.h.b16 %v200
    %v772 = vunpack.c.l.b16 %v201
    %v773 = vunpack.c.h.b16 %v201
    %v774 = vunpack.c.l.b16 %v202
    %v775 = vunpack.c.h.b16 %v202
    %v776 = vunpack.c.l.b16 %v203
    %v777 = vunpack.c.h.b16 %v203
    %v778 = vunpack.c.l.b16 %v204
    %v779 = vunpack.c.h.b16 %v204
    %v780 = vunpack.c.l.b16 %v205
    %v781 = vunpack.c.h.b16 %v205
    %v782 = vunpack.c.l.b16 %v206
    %v783 = vunpack.c.h.b16 %v206
    %v784 = vunpack.c.l.b16 %v207
    %v785 = vunpack.c.h.b16 %v207
    %v786 = vunpack.c.l.b16 %v208
    %v787 = vunpack.c.h.b16 %v208
    %v788 = vunpack.c.l.b16 %v209
    %v789 = vunpack.c.h.b16 %v209
    %v790 = vunpack.c.l.b16 %v210
    %v791 = vunpack.c.h.b16 %v210
    %v792 = vunpack.c.l.b16 %v211
    %v793 = vunpack.c.h.b16 %v211
    %v794 = vunpack.c.l.b16 %v212
    %v795 = vunpack.c.h.b16 %v212
    %v796 = vunpack.c.l.b16 %v213
    %v797 = vunpack.c.h.b16 %v213
    %v798 = vunpack.c.l.b16 %v214
    %v799 = vunpack.c.h.b16 %v214
    %v800 = vunpack.c.l.b16 %v215
    %v801 = vunpack.c.h.b16 %v215
    %v802 = vunpack.c.l.b16 %v216
    %v803 = vunpack.c.h.b16 %v216
    %v804 = vunpack.c.l.b16 %v217
    %v805 = vunpack.c.h.b16 %v217
    %v806 = vunpack.c.l.b16 %v218
    %v807 = vunpack.c.h.b16 %v218
    %v808 = vunpack.c.l.b16 %v219
    %v809 = vunpack.c.h.b16 %v219
    %v810 = vunpack.c.l.b16 %v220
    %v811 = vunpack.c.h.b16 %v220
    %v812 = vunpack.c.l.b16 %v221
    %v813 = vunpack.c.h.b16 %v221
    %v814 = vunpack.c.l.b16 %v222
    %v815 = vunpack.c.h.b16 %v222
    %v816 = vunpack.c.l.b16 %v223
    %v817 = vunpack.c.h.b16 %v223
    %v818 = vunpack.c.l.b16 %v224
    %v819 = vunpack.c.h.b16 %v224
    %v820 = vunpack.c.l.b16 %v225
    %v821 = vunpack.c.h.b16 %v225
    %v822 = vunpack.c.l.b16 %v226
    %v823 = vunpack.c.h.b16 %v226
    %v824 = vunpack.c.l.b16 %v227
    %v825 = vunpack.c.h.b16 %v227
    %v826 = vunpack.c.l.b16 %v228
    %v827 = vunpack.c.h.b16 %v228
    %v828 = vunpack.c.l.b16 %v229
    %v829 = vunpack.c.h.b16 %v229
    %v830 = vunpack.c.l.b16 %v230
    %v831 = vunpack.c.h.b16 %v230
    %v832 = vunpack.c.l.b16 %v231
    %v833 = vunpack.c.h.b16 %v231
    %v834 = vunpack.c.l.b16 %v232
    %v835 = vunpack.c.h.b16 %v232
    %v836 = vunpack.c.l.b16 %v233
    %v837 = vunpack.c.h.b16 %v233
    %v838 = vunpack.c.l.b16 %v234
    %v839 = vunpack.c.h.b16 %v234
    %v840 = vunpack.c.l.b16 %v235
    %v841 = vunpack.c.h.b16 %v235
    %v842 = vunpack.c.l.b16 %v236
    %v843 = vunpack.c.h.b16 %v236
    %v844 = vunpack.c.l.b16 %v237
    %v845 = vunpack.c.h.b16 %v237
    %v846 = vunpack.c.l.b16 %v238
    %v847 = vunpack.c.h.b16 %v238
    %v848 = vunpack.c.l.b16 %v239
    %v849 = vunpack.c.h.b16 %v239
    %v850 = vunpack.c.l.b16 %v240
    %v851 = vunpack.c.h.b16 %v240
    %v852 = vunpack.c.l.b16 %v241
    %v853 = vunpack.c.h.b16 %v241
    %v854 = vunpack.c.l.b16 %v242
    %v855 = vunpack.c.h.b16 %v242
    %v856 = vunpack.c.l.b16 %v243
    %v857 = vunpack.c.h.b16 %v243
    %v858 = vunpack.c.l.b16 %v244
    %v859 = vunpack.c.h.b16 %v244
    %v860 = vunpack.c.l.b16 %v245
    %v861 = vunpack.c.h.b16 %v245
    %v862 = vunpack.c.l.b16 %v246
    %v863 = vunpack.c.h.b16 %v246
    %v864 = vunpack.c.l.b16 %v247
    %v865 = vunpack.c.h.b16 %v247
    %v866 = vunpack.c.l.b16 %v248
    %v867 = vunpack.c.h.b16 %v248
    %v868 = vunpack.c.l.b16 %v249
    %v869 = vunpack.c.h.b16 %v249
    %v870 = vunpack.c.l.b16 %v250
    %v871 = vunpack.c.h.b16 %v250
    %v872 = vunpack.c.l.b16 %v251
    %v873 = vunpack.c.h.b16 %v251
    %v874 = vunpack.c.l.b16 %v252
    %v875 = vunpack.c.h.b16 %v252
    %v876 = vunpack.c.l.b16 %v253
    %v877 = vunpack.c.h.b16 %v253
    %v878 = vunpack.c.l.b16 %v254
    %v879 = vunpack.c.h.b16 %v254
    %v880 = vunpack.c.l.b16 %v255
    %v881 = vunpack.c.h.b16 %v255
    %v882 = vunpack.c.l.b16 %v256
    %v883 = vunpack.c.h.b16 %v256
    %v884 = vunpack.c.l.b16 %v257
    %v885 = vunpack.c.h.b16 %v257
    %v886 = vunpack.c.l.b16 %v258
    %v887 = vunpack.c.h.b16 %v258
    %v888 = vunpack.c.l.b16 %v259
    %v889 = vunpack.c.h.b16 %v259
    %v890 = vunpack.c.l.b16 %v260
    %v891 = vunpack.c.h.b16 %v260
    %v892 = vunpack.c.l.b16 %v261
    %v893 = vunpack.c.h.b16 %v261
    %v894 = vunpack.c.l.b16 %v262
    %v895 = vunpack.c.h.b16 %v262
    %v896 = vunpack.c.l.b16 %v263
    %v897 = vunpack.c.h.b16 %v263
    %v898 = vpack.c.b16 %v522, %v514
    %v899 = vpack.c.b16 %v523, %v515
    %v900 = vpack.c.b16 %v524, %v516
    %v901 = vpack.c.b16 %v525, %v517
    %v902 = vpack.c.b16 %v526, %v518
    %v903 = vpack.c.b16 %v527, %v519
    %v904 = vpack.c.b16 %v528, %v520
    %v905 = vpack.c.b16 %v529, %v521
    %v906 = vpack.c.b16 %v538, %v530
    %v907 = vpack.c.b16 %v539, %v531
    %v908 = vpack.c.b16 %v540, %v532
    %v909 = vpack.c.b16 %v541, %v533
    %v910 = vpack.c.b16 %v542, %v534
    %v911 = vpack.c.b16 %v543, %v535
    %v912 = vpack.c.b16 %v544, %v536
    %v913 = vpack.c.b16 %v545, %v537
    %v914 = vpack.c.b16 %v554, %v546
    %v915 = vpack.c.b16 %v555, %v547
    %v916 = vpack.c.b16 %v556, %v548
    %v917 = vpack.c.b16 %v557, %v549
    %v918 = vpack.c.b16 %v558, %v550
    %v919 = vpack.c.b16 %v559, %v551
    %v920 = vpack.c.b16 %v560, %v552
    %v921 = vpack.c.b16 %v561, %v553
    %v922 = vpack.c.b16 %v570, %v562
    %v923 = vpack.c.b16 %v571, %v563
    %v924 = vpack.c.b16 %v572, %v564
    %v925 = vpack.c.b16 %v573, %v565
    %v926 = vpack.c.b16 %v574, %v566
    %v927 = vpack.c.b16 %v575, %v567
    %v928 = vpack.c.b16 %v576, %v568
    %v929 = vpack.c.b16 %v577, %v569
    %v930 = vpack.c.b16 %v586, %v578
    %v931 = vpack.c.b16 %v587, %v579
    %v932 = vpack.c.b16 %v588, %v580
    %v933 = vpack.c.b16 %v589, %v581
    %v934 = vpack.c.b16 %v590, %v582
    %v935 = vpack.c.b16 %v591, %v583
    %v936 = vpack.c.b16 %v592, %v584
    %v937 = vpack.c.b16 %v593, %v585
    %v938 = vpack.c.b16 %v602, %v594
    %v939 = vpack.c.b16 %v603, %v595
    %v940 = vpack.c.b16 %v604, %v596
    %v941 = vpack.c.b16 %v605, %v597
    %v942 = vpack.c.b16 %v606, %v598
    %v943 = vpack.c.b16 %v607, %v599
    %v944 = vpack.c.b16 %v608, %v600
    %v945 = vpack.c.b16 %v609, %v601
    %v946 = vpack.c.b16 %v618, %v610
    %v947 = vpack.c.b16 %v619, %v611
    %v948 = vpack.c.b16 %v620, %v612
    %v949 = vpack.c.b16 %v621, %v613
    %v950 = vpack.c.b16 %v622, %v614
    %v951 = vpack.c.b16 %v623, %v615
    %v952 = vpack.c.b16 %v624, %v616
    %v953 = vpack.c.b16 %v625, %v617
    %v954 = vpack.c.b16 %v634, %v626
    %v955 = vpack.c.b16 %v635, %v627
    %v956 = vpack.c.b16 %v636, %v628
    %v957 = vpack.c.b16 %v637, %v629
    %v958 = vpack.c.b16 %v638, %v630
    %v959 = vpack.c.b16 %v639, %v631
    %v960 = vpack.c.b16 %v640, %v632
    %v961 = vpack.c.b16 %v641, %v633
    %v962 = vpack.c.b16 %v650, %v642
    %v963 = vpack.c.b16 %v651, %v643
    %v964 = vpack.c.b16 %v652, %v644
    %v965 = vpack.c.b16 %v653, %v645
    %v966 = vpack.c.b16 %v654, %v646
    %v967 = vpack.c.b16 %v655, %v647
    %v968 = vpack.c.b16 %v656, %v648
    %v969 = vpack.c.b16 %v657, %v649
    %v970 = vpack.c.b16 %v666, %v658
    %v971 = vpack.c.b16 %v667, %v659
    %v972 = vpack.c.b16 %v668, %v660
    %v973 = vpack.c.b16 %v669, %v661
    %v974 = vpack.c.b16 %v670, %v662
    %v975 = vpack.c.b16 %v671, %v663
    %v976 = vpack.c.b16 %v672, %v664
    %v977 = vpack.c.b16 %v673, %v665
    %v978 = vpack.c.b16 %v682, %v674
    %v979 = vpack.c.b16 %v683, %v675
    %v980 = vpack.c.b16 %v684, %v676
    %v981 = vpack.c.b16 %v685, %v677
    %v982 = vpack.c.b16 %v686, %v678
    %v983 = vpack.c.b16 %v687, %v679
    %v984 = vpack.c.b16 %v688, %v680
    %v985 = vpack.c.b16 %v689, %v681
    %v986 = vpack.c.b16 %v698, %v690
    %v987 = vpack.c.b16 %v699, %v691
    %v988 = vpack.c.b16 %v700, %v692
    %v989 = vpack.c.b16 %v701, %v693
    %v990 = vpack.c.b16 %v702, %v694
    %v991 = vpack.c.b16 %v703, %v695
    %v992 = vpack.c.b16 %v704, %v696
    %v993 = vpack.c.b16 %v705, %v697
    %v994 = vpack.c.b16 %v714, %v706
    %v995 = vpack.c.b16 %v715, %v707
    %v996 = vpack.c.b16 %v716, %v708
    %v997 = vpack.c.b16 %v717, %v709
    %v998 = vpack.c.b16 %v718, %v710
    %v999 = vpack.c.b16 %v719, %v711
    %v1000 = vpack.c.b16 %v720, %v712
    %v1001 = vpack.c.b16 %v721, %v713
    %v1002 = vpack.c.b16 %v730, %v722
    %v1003 = vpack.c.b16 %v731, %v723
    %v1004 = vpack.c.b16 %v732, %v724
    %v1005 = vpack.c.b16 %v733, %v725
    %v1006 = vpack.c.b16 %v734, %v726
    %v1007 = vpack.c.b16 %v735, %v727
    %v1008 = vpack.c.b16 %v736, %v728
    %v1009 = vpack.c.b16 %v737, %v729
    %v1010 = vpack.c.b16 %v746, %v738
    %v1011 = vpack.c.b16 %v747, %v739
    %v1012 = vpack.c.b16 %v748, %v740
    %v1013 = vpack.c.b16 %v749, %v741
    %v1014 = vpack.c.b16 %v750, %v742
    %v1015 = vpack.c.b16 %v751, %v743
    %v1016 = vpack.c.b16 %v752, %v744
    %v1017 = vpack.c.b16 %v753, %v745
    %v1018 = vpack.c.b16 %v762, %v754
    %v1019 = vpack.c.b16 %v763, %v755
    %v1020 = vpack.c.b16 %v764, %v756
    %v1021 = vpack.c.b16 %v765, %v757
    %v1022 = vpack.c.b16 %v766, %v758
    %v1023 = vpack.c.b16 %v767, %v759
    %v1024 = vpack.c.b16 %v768, %v760
    %v1025 = vpack.c.b16 %v769, %v761
    %v1026 = vpack.c.b16 %v778, %v770
    %v1027 = vpack.c.b16 %v779, %v771
    %v1028 = vpack.c.b16 %v780, %v772
    %v1029 = vpack.c.b16 %v781, %v773
    %v1030 = vpack.c.b16 %v782, %v774
    %v1031 = vpack.c.b16 %v783, %v775
    %v1032 = vpack.c.b16 %v784, %v776
    %v1033 = vpack.c.b16 %v785, %v777
    %v1034 = vpack.c.b16 %v794, %v786
    %v1035 = vpack.c.b16 %v795, %v787
    %v1036 = vpack.c.b16 %v796, %v788
    %v1037 = vpack.c.b16 %v797, %v789
    %v1038 = vpack.c.b16 %v798, %v790
    %v1039 = vpack.c.b16 %v799, %v791
    %v1040 = vpack.c.b16 %v800, %v792
    %v1041 = vpack.c.b16 %v801, %v793
    %v1042 = vpack.c.b16 %v810, %v802
    %v1043 = vpack.c.b16 %v811, %v803
    %v1044 = vpack.c.b16 %v812, %v804
    %v1045 = vpack.c.b16 %v813, %v805
    %v1046 = vpack.c.b16 %v814, %v806
    %v1047 = vpack.c.b16 %v815, %v807
    %v1048 = vpack.c.b16 %v816, %v808
    %v1049 = vpack.c.b16 %v817, %v809
    %v1050 = vpack.c.b16 %v826, %v818
    %v1051 = vpack.c.b16 %v827, %v819
    %v1052 = vpack.c.b16 %v828, %v820
    %v1053 = vpack.c.b16 %v829, %v821
    %v1054 = vpack.c.b16 %v830, %v822
    %v1055 = vpack.c.b16 %v831, %v823
    %v1056 = vpack.c.b16 %v832, %v824
    %v1057 = vpack.c.b16 %v833, %v825
    %v1058 = vpack.c.b16 %v842, %v834
    %v1059 = vpack.c.b16 %v843, %v835
    %v1060 = vpack.c.b16 %v844, %v836
    %v1061 = vpack.c.b16 %v845, %v837
    %v1062 = vpack.c.b16 %v846, %v838
    %v1063 = vpack.c.b16 %v847, %v839
    %v1064 = vpack.c.b16 %v848, %v840
    %v1065 = vpack.c.b16 %v849, %v841
    %v1066 = vpack.c.b16 %v858, %v850
    %v1067 = vpack.c.b16 %v859, %v851
    %v1068 = vpack.c.b16 %v860, %v852
    %v1069 = vpack.c.b16 %v861, %v853
    %v1070 = vpack.c.b16 %v862, %v854
    %v1071 = vpack.c.b16 %v863, %v855
    %v1072 = vpack.c.b16 %v864, %v856
    %v1073 = vpack.c.b16 %v865, %v857
    %v1074 = vpack.c.b16 %v874, %v866
    %v1075 = vpack.c.b16 %v875, %v867
    %v1076 = vpack.c.b16 %v876, %v868
    %v1077 = vpack.c.b16 %v877, %v869
    %v1078 = vpack.c.b16 %v878, %v870
    %v1079 = vpack.c.b16 %v879, %v871
    %v1080 = vpack.c.b16 %v880, %v872
    %v1081 = vpack.c.b16 %v881, %v873
    %v1082 = vpack.c.b16 %v890, %v882
    %v1083 = vpack.c.b16 %v891, %v883
    %v1084 = vpack.c.b16 %v892, %v884
    %v1085 = vpack.c.b16 %v893, %v885
    %v1086 = vpack.c.b16 %v894, %v886
    %v1087 = vpack.c.b16 %v895, %v887
    %v1088 = vpack.c.b16 %v896, %v888
    %v1089 = vpack.c.b16 %v897, %v889
    %1282 = vmatprep.subr.bf16.mxu0 %v955
    %1283 = vmatpush1.bf16.msra.mxu0 %v954
    %1284 = vmatprep.subr.bf16.mxu0 %v947
    %1285 = vmatpush1.bf16.msra.mxu0 %v946
    %1286 = vmatprep.subr.bf16.mxu0 %v939
    %1287 = vmatpush1.bf16.msra.mxu0 %v938
    %1288 = vmatprep.subr.bf16.mxu0 %v931
    %1289 = vmatpush1.bf16.msra.mxu0 %v930
    %1290 = vmatprep.subr.bf16.mxu0 %v923
    %1291 = vmatpush1.bf16.msra.mxu0 %v922
    %1292 = vmatprep.subr.bf16.mxu0 %v915
    %1293 = vmatpush1.bf16.msra.mxu0 %v914
    %1294 = vmatprep.subr.bf16.mxu0 %v907
    %1295 = vmatpush1.bf16.msra.mxu0 %v906
    %1296 = vmatprep.subr.bf16.mxu0 %v899
    %1297 = vmatpush1.bf16.msra.mxu0 %v898
    %1298 = vmatprep.subr.bf16.mxu0 %v1019
    %1299 = vmatpush2.bf16.msra.mxu0 %v1018
    %1300 = vmatprep.subr.bf16.mxu0 %v1011
    %1301 = vmatpush2.bf16.msra.mxu0 %v1010
    %1302 = vmatprep.subr.bf16.mxu0 %v1003
    %1303 = vmatpush2.bf16.msra.mxu0 %v1002
    %1304 = vmatprep.subr.bf16.mxu0 %v995
    %1305 = vmatpush2.bf16.msra.mxu0 %v994
    %1306 = vmatprep.subr.bf16.mxu0 %v987
    %1307 = vmatpush2.bf16.msra.mxu0 %v986
    %1308 = vmatprep.subr.bf16.mxu0 %v979
    %1309 = vmatpush2.bf16.msra.mxu0 %v978
    %1310 = vmatprep.subr.bf16.mxu0 %v971
    %1311 = vmatpush2.bf16.msra.mxu0 %v970
    %1312 = vmatprep.subr.bf16.mxu0 %v963
    %1313 = vmatpush2.bf16.msra.mxu0 %v962
    %1314 = vmatprep.mubr.bf16.mxu0 %v317
    %1315 = vmatmul.mubr.bf16.gmra.mxu0 %v316
    %v1316 = vpop.f32.mrf.mxu0
    %v1317 = vadd.f32 %v269, %v1316
    %v1318 = vpop.f32.mrf.mxu0
    %v1319 = vadd.f32 %v273, %v1318
    %v1320 = vpop.f32.mrf.mxu0
    %v1321 = vadd.f32 %v269, %v1320
    %v1322 = vpop.f32.mrf.mxu0
    %v1323 = vadd.f32 %v273, %v1322
    %1324 = vdwg.mxu0
    %1325 = vmatprep.subr.bf16.mxu0 %v1083
    %1326 = vmatpush1.bf16.msra.mxu0 %v1082
    %1327 = vmatprep.subr.bf16.mxu0 %v1075
    %1328 = vmatpush1.bf16.msra.mxu0 %v1074
    %1329 = vmatprep.subr.bf16.mxu0 %v1067
    %1330 = vmatpush1.bf16.msra.mxu0 %v1066
    %1331 = vmatprep.subr.bf16.mxu0 %v1059
    %1332 = vmatpush1.bf16.msra.mxu0 %v1058
    %1333 = vmatprep.subr.bf16.mxu0 %v1051
    %1334 = vmatpush1.bf16.msra.mxu0 %v1050
    %1335 = vmatprep.subr.bf16.mxu0 %v1043
    %1336 = vmatpush1.bf16.msra.mxu0 %v1042
    %1337 = vmatprep.subr.bf16.mxu0 %v1035
    %1338 = vmatpush1.bf16.msra.mxu0 %v1034
    %1339 = vmatprep.subr.bf16.mxu0 %v1027
    %1340 = vmatpush1.bf16.msra.mxu0 %v1026
    %1341 = vmatprep.subr.bf16.mxu0 0
    %1342 = vmatpush2.bf16.msra.mxu0 0
    %1343 = vmatprep.subr.bf16.mxu0 0
    %1344 = vmatpush2.bf16.msra.mxu0 0
    %1345 = vmatprep.subr.bf16.mxu0 0
    %1346 = vmatpush2.bf16.msra.mxu0 0
    %1347 = vmatprep.subr.bf16.mxu0 0
    %1348 = vmatpush2.bf16.msra.mxu0 0
    %1349 = vmatprep.subr.bf16.mxu0 0
    %1350 = vmatpush2.bf16.msra.mxu0 0
    %1351 = vmatprep.subr.bf16.mxu0 0
    %1352 = vmatpush2.bf16.msra.mxu0 0
    %1353 = vmatprep.subr.bf16.mxu0 0
    %1354 = vmatpush2.bf16.msra.mxu0 0
    %1355 = vmatprep.subr.bf16.mxu0 0
    %1356 = vmatpush2.bf16.msra.mxu0 0
    %1357 = vmatprep.mubr.bf16.mxu0 0
    %1358 = vmatmul.mubr.bf16.gmra.mxu0 %v318
    %v1359 = vpop.f32.mrf.mxu0
    %v1360 = vadd.f32 %v1317, %v1359
    %v1361 = vpop.f32.mrf.mxu0
    %v1362 = vadd.f32 %v1319, %v1361
    %v1363 = vpop.f32.mrf.mxu0
    %v1364 = vadd.f32 %v1321, %v1363
    %v1365 = vpop.f32.mrf.mxu0
    %v1366 = vadd.f32 %v1323, %v1365
    %1367 = vdwg.mxu0
    %1368 = vmatprep.subr.bf16.mxu0 %v957
    %1369 = vmatpush1.bf16.msra.mxu0 %v956
    %1370 = vmatprep.subr.bf16.mxu0 %v949
    %1371 = vmatpush1.bf16.msra.mxu0 %v948
    %1372 = vmatprep.subr.bf16.mxu0 %v941
    %1373 = vmatpush1.bf16.msra.mxu0 %v940
    %1374 = vmatprep.subr.bf16.mxu0 %v933
    %1375 = vmatpush1.bf16.msra.mxu0 %v932
    %1376 = vmatprep.subr.bf16.mxu0 %v925
    %1377 = vmatpush1.bf16.msra.mxu0 %v924
    %1378 = vmatprep.subr.bf16.mxu0 %v917
    %1379 = vmatpush1.bf16.msra.mxu0 %v916
    %1380 = vmatprep.subr.bf16.mxu0 %v909
    %1381 = vmatpush1.bf16.msra.mxu0 %v908
    %1382 = vmatprep.subr.bf16.mxu0 %v901
    %1383 = vmatpush1.bf16.msra.mxu0 %v900
    %1384 = vmatprep.subr.bf16.mxu0 %v1021
    %1385 = vmatpush2.bf16.msra.mxu0 %v1020
    %1386 = vmatprep.subr.bf16.mxu0 %v1013
    %1387 = vmatpush2.bf16.msra.mxu0 %v1012
    %1388 = vmatprep.subr.bf16.mxu0 %v1005
    %1389 = vmatpush2.bf16.msra.mxu0 %v1004
    %1390 = vmatprep.subr.bf16.mxu0 %v997
    %1391 = vmatpush2.bf16.msra.mxu0 %v996
    %1392 = vmatprep.subr.bf16.mxu0 %v989
    %1393 = vmatpush2.bf16.msra.mxu0 %v988
    %1394 = vmatprep.subr.bf16.mxu0 %v981
    %1395 = vmatpush2.bf16.msra.mxu0 %v980
    %1396 = vmatprep.subr.bf16.mxu0 %v973
    %1397 = vmatpush2.bf16.msra.mxu0 %v972
    %1398 = vmatprep.subr.bf16.mxu0 %v965
    %1399 = vmatpush2.bf16.msra.mxu0 %v964
    %1400 = vmatprep.mubr.bf16.mxu0 %v317
    %1401 = vmatmul.mubr.bf16.gmra.mxu0 %v316
    %v1402 = vpop.f32.mrf.mxu0
    %v1403 = vadd.f32 %v277, %v1402
    %v1404 = vpop.f32.mrf.mxu0
    %v1405 = vadd.f32 %v281, %v1404
    %v1406 = vpop.f32.mrf.mxu0
    %v1407 = vadd.f32 %v277, %v1406
    %v1408 = vpop.f32.mrf.mxu0
    %v1409 = vadd.f32 %v281, %v1408
    %1410 = vdwg.mxu0
    %1411 = vmatprep.subr.bf16.mxu0 %v1085
    %1412 = vmatpush1.bf16.msra.mxu0 %v1084
    %1413 = vmatprep.subr.bf16.mxu0 %v1077
    %1414 = vmatpush1.bf16.msra.mxu0 %v1076
    %1415 = vmatprep.subr.bf16.mxu0 %v1069
    %1416 = vmatpush1.bf16.msra.mxu0 %v1068
    %1417 = vmatprep.subr.bf16.mxu0 %v1061
    %1418 = vmatpush1.bf16.msra.mxu0 %v1060
    %1419 = vmatprep.subr.bf16.mxu0 %v1053
    %1420 = vmatpush1.bf16.msra.mxu0 %v1052
    %1421 = vmatprep.subr.bf16.mxu0 %v1045
    %1422 = vmatpush1.bf16.msra.mxu0 %v1044
    %1423 = vmatprep.subr.bf16.mxu0 %v1037
    %1424 = vmatpush1.bf16.msra.mxu0 %v1036
    %1425 = vmatprep.subr.bf16.mxu0 %v1029
    %1426 = vmatpush1.bf16.msra.mxu0 %v1028
    %1427 = vmatprep.subr.bf16.mxu0 0
    %1428 = vmatpush2.bf16.msra.mxu0 0
    %1429 = vmatprep.subr.bf16.mxu0 0
    %1430 = vmatpush2.bf16.msra.mxu0 0
    %1431 = vmatprep.subr.bf16.mxu0 0
    %1432 = vmatpush2.bf16.msra.mxu0 0
    %1433 = vmatprep.subr.bf16.mxu0 0
    %1434 = vmatpush2.bf16.msra.mxu0 0
    %1435 = vmatprep.subr.bf16.mxu0 0
    %1436 = vmatpush2.bf16.msra.mxu0 0
    %1437 = vmatprep.subr.bf16.mxu0 0
    %1438 = vmatpush2.bf16.msra.mxu0 0
    %1439 = vmatprep.subr.bf16.mxu0 0
    %1440 = vmatpush2.bf16.msra.mxu0 0
    %1441 = vmatprep.subr.bf16.mxu0 0
    %1442 = vmatpush2.bf16.msra.mxu0 0
    %1443 = vmatprep.mubr.bf16.mxu0 0
    %1444 = vmatmul.mubr.bf16.gmra.mxu0 %v318
    %v1445 = vpop.f32.mrf.mxu0
    %v1446 = vadd.f32 %v1403, %v1445
    %v1447 = vpop.f32.mrf.mxu0
    %v1448 = vadd.f32 %v1405, %v1447
    %v1449 = vpop.f32.mrf.mxu0
    %v1450 = vadd.f32 %v1407, %v1449
    %v1451 = vpop.f32.mrf.mxu0
    %v1452 = vadd.f32 %v1409, %v1451
    %1453 = vdwg.mxu0
    %1454 = vmatprep.subr.bf16.mxu0 %v959
    %1455 = vmatpush1.bf16.msra.mxu0 %v958
    %1456 = vmatprep.subr.bf16.mxu0 %v951
    %1457 = vmatpush1.bf16.msra.mxu0 %v950
    %1458 = vmatprep.subr.bf16.mxu0 %v943
    %1459 = vmatpush1.bf16.msra.mxu0 %v942
    %1460 = vmatprep.subr.bf16.mxu0 %v935
    %1461 = vmatpush1.bf16.msra.mxu0 %v934
    %1462 = vmatprep.subr.bf16.mxu0 %v927
    %1463 = vmatpush1.bf16.msra.mxu0 %v926
    %1464 = vmatprep.subr.bf16.mxu0 %v919
    %1465 = vmatpush1.bf16.msra.mxu0 %v918
    %1466 = vmatprep.subr.bf16.mxu0 %v911
    %1467 = vmatpush1.bf16.msra.mxu0 %v910
    %1468 = vmatprep.subr.bf16.mxu0 %v903
    %1469 = vmatpush1.bf16.msra.mxu0 %v902
    %1470 = vmatprep.subr.bf16.mxu0 %v1023
    %1471 = vmatpush2.bf16.msra.mxu0 %v1022
    %1472 = vmatprep.subr.bf16.mxu0 %v1015
    %1473 = vmatpush2.bf16.msra.mxu0 %v1014
    %1474 = vmatprep.subr.bf16.mxu0 %v1007
    %1475 = vmatpush2.bf16.msra.mxu0 %v1006
    %1476 = vmatprep.subr.bf16.mxu0 %v999
    %1477 = vmatpush2.bf16.msra.mxu0 %v998
    %1478 = vmatprep.subr.bf16.mxu0 %v991
    %1479 = vmatpush2.bf16.msra.mxu0 %v990
    %1480 = vmatprep.subr.bf16.mxu0 %v983
    %1481 = vmatpush2.bf16.msra.mxu0 %v982
    %1482 = vmatprep.subr.bf16.mxu0 %v975
    %1483 = vmatpush2.bf16.msra.mxu0 %v974
    %1484 = vmatprep.subr.bf16.mxu0 %v967
    %1485 = vmatpush2.bf16.msra.mxu0 %v966
    %1486 = vmatprep.mubr.bf16.mxu0 %v317
    %1487 = vmatmul.mubr.bf16.gmra.mxu0 %v316
    %v1488 = vpop.f32.mrf.mxu0
    %v1489 = vadd.f32 %v285, %v1488
    %v1490 = vpop.f32.mrf.mxu0
    %v1491 = vadd.f32 %v289, %v1490
    %v1492 = vpop.f32.mrf.mxu0
    %v1493 = vadd.f32 %v285, %v1492
    %v1494 = vpop.f32.mrf.mxu0
    %v1495 = vadd.f32 %v289, %v1494
    %1496 = vdwg.mxu0
    %1497 = vmatprep.subr.bf16.mxu0 %v1087
    %1498 = vmatpush1.bf16.msra.mxu0 %v1086
    %1499 = vmatprep.subr.bf16.mxu0 %v1079
    %1500 = vmatpush1.bf16.msra.mxu0 %v1078
    %1501 = vmatprep.subr.bf16.mxu0 %v1071
    %1502 = vmatpush1.bf16.msra.mxu0 %v1070
    %1503 = vmatprep.subr.bf16.mxu0 %v1063
    %1504 = vmatpush1.bf16.msra.mxu0 %v1062
    %1505 = vmatprep.subr.bf16.mxu0 %v1055
    %1506 = vmatpush1.bf16.msra.mxu0 %v1054
    %1507 = vmatprep.subr.bf16.mxu0 %v1047
    %1508 = vmatpush1.bf16.msra.mxu0 %v1046
    %1509 = vmatprep.subr.bf16.mxu0 %v1039
    %1510 = vmatpush1.bf16.msra.mxu0 %v1038
    %1511 = vmatprep.subr.bf16.mxu0 %v1031
    %1512 = vmatpush1.bf16.msra.mxu0 %v1030
    %1513 = vmatprep.subr.bf16.mxu0 0
    %1514 = vmatpush2.bf16.msra.mxu0 0
    %1515 = vmatprep.subr.bf16.mxu0 0
    %1516 = vmatpush2.bf16.msra.mxu0 0
    %1517 = vmatprep.subr.bf16.mxu0 0
    %1518 = vmatpush2.bf16.msra.mxu0 0
    %1519 = vmatprep.subr.bf16.mxu0 0
    %1520 = vmatpush2.bf16.msra.mxu0 0
    %1521 = vmatprep.subr.bf16.mxu0 0
    %1522 = vmatpush2.bf16.msra.mxu0 0
    %1523 = vmatprep.subr.bf16.mxu0 0
    %1524 = vmatpush2.bf16.msra.mxu0 0
    %1525 = vmatprep.subr.bf16.mxu0 0
    %1526 = vmatpush2.bf16.msra.mxu0 0
    %1527 = vmatprep.subr.bf16.mxu0 0
    %1528 = vmatpush2.bf16.msra.mxu0 0
    %1529 = vmatprep.mubr.bf16.mxu0 0
    %1530 = vmatmul.mubr.bf16.gmra.mxu0 %v318
    %v1531 = vpop.f32.mrf.mxu0
    %v1532 = vadd.f32 %v1489, %v1531
    %v1533 = vpop.f32.mrf.mxu0
    %v1534 = vadd.f32 %v1491, %v1533
    %v1535 = vpop.f32.mrf.mxu0
    %v1536 = vadd.f32 %v1493, %v1535
    %v1537 = vpop.f32.mrf.mxu0
    %v1538 = vadd.f32 %v1495, %v1537
    %1539 = vdwg.mxu0
    %1540 = vmatprep.subr.bf16.mxu0 %v961
    %1541 = vmatpush1.bf16.msra.mxu0 %v960
    %1542 = vmatprep.subr.bf16.mxu0 %v953
    %1543 = vmatpush1.bf16.msra.mxu0 %v952
    %1544 = vmatprep.subr.bf16.mxu0 %v945
    %1545 = vmatpush1.bf16.msra.mxu0 %v944
    %1546 = vmatprep.subr.bf16.mxu0 %v937
    %1547 = vmatpush1.bf16.msra.mxu0 %v936
    %1548 = vmatprep.subr.bf16.mxu0 %v929
    %1549 = vmatpush1.bf16.msra.mxu0 %v928
    %1550 = vmatprep.subr.bf16.mxu0 %v921
    %1551 = vmatpush1.bf16.msra.mxu0 %v920
    %1552 = vmatprep.subr.bf16.mxu0 %v913
    %1553 = vmatpush1.bf16.msra.mxu0 %v912
    %1554 = vmatprep.subr.bf16.mxu0 %v905
    %1555 = vmatpush1.bf16.msra.mxu0 %v904
    %1556 = vmatprep.subr.bf16.mxu0 %v1025
    %1557 = vmatpush2.bf16.msra.mxu0 %v1024
    %1558 = vmatprep.subr.bf16.mxu0 %v1017
    %1559 = vmatpush2.bf16.msra.mxu0 %v1016
    %1560 = vmatprep.subr.bf16.mxu0 %v1009
    %1561 = vmatpush2.bf16.msra.mxu0 %v1008
    %1562 = vmatprep.subr.bf16.mxu0 %v1001
    %1563 = vmatpush2.bf16.msra.mxu0 %v1000
    %1564 = vmatprep.subr.bf16.mxu0 %v993
    %1565 = vmatpush2.bf16.msra.mxu0 %v992
    %1566 = vmatprep.subr.bf16.mxu0 %v985
    %1567 = vmatpush2.bf16.msra.mxu0 %v984
    %1568 = vmatprep.subr.bf16.mxu0 %v977
    %1569 = vmatpush2.bf16.msra.mxu0 %v976
    %1570 = vmatprep.subr.bf16.mxu0 %v969
    %1571 = vmatpush2.bf16.msra.mxu0 %v968
    %1572 = vmatprep.mubr.bf16.mxu0 %v317
    %1573 = vmatmul.mubr.bf16.gmra.mxu0 %v316
    %v1574 = vpop.f32.mrf.mxu0
    %v1575 = vadd.f32 %v293, %v1574
    %v1576 = vpop.f32.mrf.mxu0
    %v1577 = vadd.f32 %v297, %v1576
    %v1578 = vpop.f32.mrf.mxu0
    %v1579 = vadd.f32 %v293, %v1578
    %v1580 = vpop.f32.mrf.mxu0
    %v1581 = vadd.f32 %v297, %v1580
    %1582 = vdwg.mxu0
    %1583 = vmatprep.subr.bf16.mxu0 %v1089
    %1584 = vmatpush1.bf16.msra.mxu0 %v1088
    %1585 = vmatprep.subr.bf16.mxu0 %v1081
    %1586 = vmatpush1.bf16.msra.mxu0 %v1080
    %1587 = vmatprep.subr.bf16.mxu0 %v1073
    %1588 = vmatpush1.bf16.msra.mxu0 %v1072
    %1589 = vmatprep.subr.bf16.mxu0 %v1065
    %1590 = vmatpush1.bf16.msra.mxu0 %v1064
    %1591 = vmatprep.subr.bf16.mxu0 %v1057
    %1592 = vmatpush1.bf16.msra.mxu0 %v1056
    %1593 = vmatprep.subr.bf16.mxu0 %v1049
    %1594 = vmatpush1.bf16.msra.mxu0 %v1048
    %1595 = vmatprep.subr.bf16.mxu0 %v1041
    %1596 = vmatpush1.bf16.msra.mxu0 %v1040
    %1597 = vmatprep.subr.bf16.mxu0 %v1033
    %1598 = vmatpush1.bf16.msra.mxu0 %v1032
    %1599 = vmatprep.subr.bf16.mxu0 0
    %1600 = vmatpush2.bf16.msra.mxu0 0
    %1601 = vmatprep.subr.bf16.mxu0 0
    %1602 = vmatpush2.bf16.msra.mxu0 0
    %1603 = vmatprep.subr.bf16.mxu0 0
    %1604 = vmatpush2.bf16.msra.mxu0 0
    %1605 = vmatprep.subr.bf16.mxu0 0
    %1606 = vmatpush2.bf16.msra.mxu0 0
    %1607 = vmatprep.subr.bf16.mxu0 0
    %1608 = vmatpush2.bf16.msra.mxu0 0
    %1609 = vmatprep.subr.bf16.mxu0 0
    %1610 = vmatpush2.bf16.msra.mxu0 0
    %1611 = vmatprep.subr.bf16.mxu0 0
    %1612 = vmatpush2.bf16.msra.mxu0 0
    %1613 = vmatprep.subr.bf16.mxu0 0
    %1614 = vmatpush2.bf16.msra.mxu0 0
    %1615 = vmatprep.mubr.bf16.mxu0 0
    %1616 = vmatmul.mubr.bf16.gmra.mxu0 %v318
    %v1617 = vpop.f32.mrf.mxu0
    %v1618 = vadd.f32 %v1575, %v1617
    %v1619 = vpop.f32.mrf.mxu0
    %v1620 = vadd.f32 %v1577, %v1619
    %v1621 = vpop.f32.mrf.mxu0
    %v1622 = vadd.f32 %v1579, %v1621
    %v1623 = vpop.f32.mrf.mxu0
    %v1624 = vadd.f32 %v1581, %v1623
    %1625 = vdwg.mxu0
    %v1626 = vmax.f32 %v1360, 0.0
    %v1627 = vmax.f32 %v1362, 0.0
    %v1628 = vmax.f32 %v1446, 0.0
    %v1629 = vmax.f32 %v1448, 0.0
    %v1630 = vmax.f32 %v1532, 0.0
    %v1631 = vmax.f32 %v1534, 0.0
    %v1632 = vmax.f32 %v1618, 0.0
    %v1633 = vmax.f32 %v1620, 0.0
    %v1634 = vmax.f32 %v1364, 0.0
    %v1635 = vmax.f32 %v1366, 0.0
    %v1636 = vmax.f32 %v1450, 0.0
    %v1637 = vmax.f32 %v1452, 0.0
    %v1638 = vmax.f32 %v1536, 0.0
    %v1639 = vmax.f32 %v1538, 0.0
    %v1640 = vmax.f32 %v1622, 0.0
    %v1641 = vmax.f32 %v1624, 0.0
    %v1642 = vpack.c.bf16 %v1634, %v1626
    %v1643 = vpack.c.bf16 %v1635, %v1627
    %v1644 = vpack.c.bf16 %v1636, %v1628
    %v1645 = vpack.c.bf16 %v1637, %v1629
    %v1646 = vpack.c.bf16 %v1638, %v1630
    %v1647 = vpack.c.bf16 %v1639, %v1631
    %v1648 = vpack.c.bf16 %v1640, %v1632
    %v1649 = vpack.c.bf16 %v1641, %v1633
    %v1650 = vld [vmem:[#allocation4] sm:$0xff]
    %v1651 = vld [vmem:[#allocation4 + $0x8] sm:$0xff]
    %v1652 = vld [vmem:[#allocation4 + $0x10] sm:$0xff]
    %v1653 = vld [vmem:[#allocation4 + $0x18] sm:$0xff]
    %v1654 = vld [vmem:[#allocation4 + $0x20] sm:$0xff]
    %v1655 = vld [vmem:[#allocation4 + $0x28] sm:$0xff]
    %v1656 = vld [vmem:[#allocation4 + $0x30] sm:$0xff]
    %v1657 = vld [vmem:[#allocation4 + $0x38] sm:$0xff]
    %v1658 = vld [vmem:[#allocation4 + $0x40] sm:$0xff]
    %v1659 = vld [vmem:[#allocation4 + $0x48] sm:$0xff]
    %v1660 = vld [vmem:[#allocation4 + $0x50] sm:$0xff]
    %v1661 = vld [vmem:[#allocation4 + $0x58] sm:$0xff]
    %v1662 = vld [vmem:[#allocation4 + $0x60] sm:$0xff]
    %v1663 = vld [vmem:[#allocation4 + $0x68] sm:$0xff]
    %v1664 = vld [vmem:[#allocation4 + $0x70] sm:$0xff]
    %v1665 = vld [vmem:[#allocation4 + $0x78] sm:$0xff]
    %v1666 = vld [vmem:[#allocation4 + $0x80] sm:$0xff]
    %v1667 = vld [vmem:[#allocation4 + $0x88] sm:$0xff]
    %v1668 = vld [vmem:[#allocation4 + $0x90] sm:$0xff]
    %v1669 = vld [vmem:[#allocation4 + $0x98] sm:$0xff]
    %v1670 = vld [vmem:[#allocation4 + $0xa0] sm:$0xff]
    %v1671 = vld [vmem:[#allocation4 + $0xa8] sm:$0xff]
    %v1672 = vld [vmem:[#allocation4 + $0xb0] sm:$0xff]
    %v1673 = vld [vmem:[#allocation4 + $0xb8] sm:$0xff]
    %v1674 = vld [vmem:[#allocation4 + $0xc0] sm:$0xff]
    %v1675 = vld [vmem:[#allocation4 + $0xc8] sm:$0xff]
    %v1676 = vld [vmem:[#allocation4 + $0xd0] sm:$0xff]
    %v1677 = vld [vmem:[#allocation4 + $0xd8] sm:$0xff]
    %v1678 = vld [vmem:[#allocation4 + $0xe0] sm:$0xff]
    %v1679 = vld [vmem:[#allocation4 + $0xe8] sm:$0xff]
    %v1680 = vld [vmem:[#allocation4 + $0xf0] sm:$0xff]
    %v1681 = vld [vmem:[#allocation4 + $0xf8] sm:$0xff]
    %v1682 = vld [vmem:[#allocation4 + $0x100] sm:$0xff]
    %v1683 = vld [vmem:[#allocation4 + $0x108] sm:$0xff]
    %v1684 = vld [vmem:[#allocation4 + $0x110] sm:$0xff]
    %v1685 = vld [vmem:[#allocation4 + $0x118] sm:$0xff]
    %v1686 = vld [vmem:[#allocation4 + $0x120] sm:$0xff]
    %v1687 = vld [vmem:[#allocation4 + $0x128] sm:$0xff]
    %v1688 = vld [vmem:[#allocation4 + $0x130] sm:$0xff]
    %v1689 = vld [vmem:[#allocation4 + $0x138] sm:$0xff]
    %v1690 = vld [vmem:[#allocation4 + $0x140] sm:$0xff]
    %v1691 = vld [vmem:[#allocation4 + $0x148] sm:$0xff]
    %v1692 = vld [vmem:[#allocation4 + $0x150] sm:$0xff]
    %v1693 = vld [vmem:[#allocation4 + $0x158] sm:$0xff]
    %v1694 = vld [vmem:[#allocation4 + $0x160] sm:$0xff]
    %v1695 = vld [vmem:[#allocation4 + $0x168] sm:$0xff]
    %v1696 = vld [vmem:[#allocation4 + $0x170] sm:$0xff]
    %v1697 = vld [vmem:[#allocation4 + $0x178] sm:$0xff]
    %v1698 = vld [vmem:[#allocation4 + $0x180] sm:$0xff]
    %v1699 = vld [vmem:[#allocation4 + $0x188] sm:$0xff]
    %v1700 = vld [vmem:[#allocation4 + $0x190] sm:$0xff]
    %v1701 = vld [vmem:[#allocation4 + $0x198] sm:$0xff]
    %v1702 = vld [vmem:[#allocation4 + $0x1a0] sm:$0xff]
    %v1703 = vld [vmem:[#allocation4 + $0x1a8] sm:$0xff]
    %v1704 = vld [vmem:[#allocation4 + $0x1b0] sm:$0xff]
    %v1705 = vld [vmem:[#allocation4 + $0x1b8] sm:$0xff]
    %v1706 = vld [vmem:[#allocation4 + $0x1c0] sm:$0xff]
    %v1707 = vld [vmem:[#allocation4 + $0x1c8] sm:$0xff]
    %v1708 = vld [vmem:[#allocation4 + $0x1d0] sm:$0xff]
    %v1709 = vld [vmem:[#allocation4 + $0x1d8] sm:$0xff]
    %v1710 = vld [vmem:[#allocation4 + $0x1e0] sm:$0xff]
    %v1711 = vld [vmem:[#allocation4 + $0x1e8] sm:$0xff]
    %v1712 = vld [vmem:[#allocation4 + $0x1f0] sm:$0xff]
    %v1713 = vld [vmem:[#allocation4 + $0x1f8] sm:$0xff]
    %v1714 = vld [vmem:[#allocation4 + $0x200] sm:$0xff]
    %v1715 = vld [vmem:[#allocation4 + $0x208] sm:$0xff]
    %v1716 = vld [vmem:[#allocation4 + $0x210] sm:$0xff]
    %v1717 = vld [vmem:[#allocation4 + $0x218] sm:$0xff]
    %v1718 = vld [vmem:[#allocation4 + $0x220] sm:$0xff]
    %v1719 = vld [vmem:[#allocation4 + $0x228] sm:$0xff]
    %v1720 = vld [vmem:[#allocation4 + $0x230] sm:$0xff]
    %v1721 = vld [vmem:[#allocation4 + $0x238] sm:$0xff]
    %v1722 = vld [vmem:[#allocation4 + $0x240] sm:$0xff]
    %v1723 = vld [vmem:[#allocation4 + $0x248] sm:$0xff]
    %v1724 = vld [vmem:[#allocation4 + $0x250] sm:$0xff]
    %v1725 = vld [vmem:[#allocation4 + $0x258] sm:$0xff]
    %v1726 = vld [vmem:[#allocation4 + $0x260] sm:$0xff]
    %v1727 = vld [vmem:[#allocation4 + $0x268] sm:$0xff]
    %v1728 = vld [vmem:[#allocation4 + $0x270] sm:$0xff]
    %v1729 = vld [vmem:[#allocation4 + $0x278] sm:$0xff]
    %v1730 = vld [vmem:[#allocation4 + $0x280] sm:$0xff]
    %v1731 = vld [vmem:[#allocation4 + $0x288] sm:$0xff]
    %v1732 = vld [vmem:[#allocation4 + $0x290] sm:$0xff]
    %v1733 = vld [vmem:[#allocation4 + $0x298] sm:$0xff]
    %v1734 = vld [vmem:[#allocation4 + $0x2a0] sm:$0xff]
    %v1735 = vld [vmem:[#allocation4 + $0x2a8] sm:$0xff]
    %v1736 = vld [vmem:[#allocation4 + $0x2b0] sm:$0xff]
    %v1737 = vld [vmem:[#allocation4 + $0x2b8] sm:$0xff]
    %v1738 = vld [vmem:[#allocation4 + $0x2c0] sm:$0xff]
    %v1739 = vld [vmem:[#allocation4 + $0x2c8] sm:$0xff]
    %v1740 = vld [vmem:[#allocation4 + $0x2d0] sm:$0xff]
    %v1741 = vld [vmem:[#allocation4 + $0x2d8] sm:$0xff]
    %v1742 = vld [vmem:[#allocation4 + $0x2e0] sm:$0xff]
    %v1743 = vld [vmem:[#allocation4 + $0x2e8] sm:$0xff]
    %v1744 = vld [vmem:[#allocation4 + $0x2f0] sm:$0xff]
    %v1745 = vld [vmem:[#allocation4 + $0x2f8] sm:$0xff]
    %v1746 = vld [vmem:[#allocation4 + $0x300] sm:$0xff]
    %v1747 = vld [vmem:[#allocation4 + $0x308] sm:$0xff]
    %v1748 = vld [vmem:[#allocation4 + $0x310] sm:$0xff]
    %v1749 = vld [vmem:[#allocation4 + $0x318] sm:$0xff]
    %v1750 = vld [vmem:[#allocation4 + $0x320] sm:$0xff]
    %v1751 = vld [vmem:[#allocation4 + $0x328] sm:$0xff]
    %v1752 = vld [vmem:[#allocation4 + $0x330] sm:$0xff]
    %v1753 = vld [vmem:[#allocation4 + $0x338] sm:$0xff]
    %v1754 = vld [vmem:[#allocation4 + $0x340] sm:$0xff]
    %v1755 = vld [vmem:[#allocation4 + $0x348] sm:$0xff]
    %v1756 = vld [vmem:[#allocation4 + $0x350] sm:$0xff]
    %v1757 = vld [vmem:[#allocation4 + $0x358] sm:$0xff]
    %v1758 = vld [vmem:[#allocation4 + $0x360] sm:$0xff]
    %v1759 = vld [vmem:[#allocation4 + $0x368] sm:$0xff]
    %v1760 = vld [vmem:[#allocation4 + $0x370] sm:$0xff]
    %v1761 = vld [vmem:[#allocation4 + $0x378] sm:$0xff]
    %v1762 = vld [vmem:[#allocation4 + $0x380] sm:$0xff]
    %v1763 = vld [vmem:[#allocation4 + $0x388] sm:$0xff]
    %v1764 = vld [vmem:[#allocation4 + $0x390] sm:$0xff]
    %v1765 = vld [vmem:[#allocation4 + $0x398] sm:$0xff]
    %v1766 = vld [vmem:[#allocation4 + $0x3a0] sm:$0xff]
    %v1767 = vld [vmem:[#allocation4 + $0x3a8] sm:$0xff]
    %v1768 = vld [vmem:[#allocation4 + $0x3b0] sm:$0xff]
    %v1769 = vld [vmem:[#allocation4 + $0x3b8] sm:$0xff]
    %v1770 = vld [vmem:[#allocation4 + $0x3c0] sm:$0xff]
    %v1771 = vld [vmem:[#allocation4 + $0x3c8] sm:$0xff]
    %v1772 = vld [vmem:[#allocation4 + $0x3d0] sm:$0xff]
    %v1773 = vld [vmem:[#allocation4 + $0x3d8] sm:$0xff]
    %v1774 = vld [vmem:[#allocation4 + $0x3e0] sm:$0xff]
    %v1775 = vld [vmem:[#allocation4 + $0x3e8] sm:$0xff]
    %v1776 = vld [vmem:[#allocation4 + $0x3f0] sm:$0xff]
    %v1777 = vld [vmem:[#allocation4 + $0x3f8] sm:$0xff]
    %v1778 = vld [vmem:[#allocation4 + $0x400] sm:$0xff]
    %v1779 = vld [vmem:[#allocation4 + $0x408] sm:$0xff]
    %v1780 = vld [vmem:[#allocation4 + $0x410] sm:$0xff]
    %v1781 = vld [vmem:[#allocation4 + $0x418] sm:$0xff]
    %v1782 = vld [vmem:[#allocation4 + $0x420] sm:$0xff]
    %v1783 = vld [vmem:[#allocation4 + $0x428] sm:$0xff]
    %v1784 = vld [vmem:[#allocation4 + $0x430] sm:$0xff]
    %v1785 = vld [vmem:[#allocation4 + $0x438] sm:$0xff]
    %v1786 = vld [vmem:[#allocation4 + $0x440] sm:$0xff]
    %v1787 = vld [vmem:[#allocation4 + $0x448] sm:$0xff]
    %v1788 = vld [vmem:[#allocation4 + $0x450] sm:$0xff]
    %v1789 = vld [vmem:[#allocation4 + $0x458] sm:$0xff]
    %v1790 = vld [vmem:[#allocation4 + $0x460] sm:$0xff]
    %v1791 = vld [vmem:[#allocation4 + $0x468] sm:$0xff]
    %v1792 = vld [vmem:[#allocation4 + $0x470] sm:$0xff]
    %v1793 = vld [vmem:[#allocation4 + $0x478] sm:$0xff]
    %v1794 = vld [vmem:[#allocation4 + $0x480] sm:$0xff]
    %v1795 = vld [vmem:[#allocation4 + $0x488] sm:$0xff]
    %v1796 = vld [vmem:[#allocation4 + $0x490] sm:$0xff]
    %v1797 = vld [vmem:[#allocation4 + $0x498] sm:$0xff]
    %v1798 = vld [vmem:[#allocation4 + $0x4a0] sm:$0xff]
    %v1799 = vld [vmem:[#allocation4 + $0x4a8] sm:$0xff]
    %v1800 = vld [vmem:[#allocation4 + $0x4b0] sm:$0xff]
    %v1801 = vld [vmem:[#allocation4 + $0x4b8] sm:$0xff]
    %v1802 = vld [vmem:[#allocation4 + $0x4c0] sm:$0xff]
    %v1803 = vld [vmem:[#allocation4 + $0x4c8] sm:$0xff]
    %v1804 = vld [vmem:[#allocation4 + $0x4d0] sm:$0xff]
    %v1805 = vld [vmem:[#allocation4 + $0x4d8] sm:$0xff]
    %v1806 = vld [vmem:[#allocation4 + $0x4e0] sm:$0xff]
    %v1807 = vld [vmem:[#allocation4 + $0x4e8] sm:$0xff]
    %v1808 = vld [vmem:[#allocation4 + $0x4f0] sm:$0xff]
    %v1809 = vld [vmem:[#allocation4 + $0x4f8] sm:$0xff]
    %v1810 = vld [vmem:[#allocation4 + $0x500] sm:$0xff]
    %v1811 = vld [vmem:[#allocation4 + $0x508] sm:$0xff]
    %v1812 = vld [vmem:[#allocation4 + $0x510] sm:$0xff]
    %v1813 = vld [vmem:[#allocation4 + $0x518] sm:$0xff]
    %v1814 = vld [vmem:[#allocation4 + $0x520] sm:$0xff]
    %v1815 = vld [vmem:[#allocation4 + $0x528] sm:$0xff]
    %v1816 = vld [vmem:[#allocation4 + $0x530] sm:$0xff]
    %v1817 = vld [vmem:[#allocation4 + $0x538] sm:$0xff]
    %v1818 = vld [vmem:[#allocation4 + $0x540] sm:$0xff]
    %v1819 = vld [vmem:[#allocation4 + $0x548] sm:$0xff]
    %v1820 = vld [vmem:[#allocation4 + $0x550] sm:$0xff]
    %v1821 = vld [vmem:[#allocation4 + $0x558] sm:$0xff]
    %v1822 = vld [vmem:[#allocation4 + $0x560] sm:$0xff]
    %v1823 = vld [vmem:[#allocation4 + $0x568] sm:$0xff]
    %v1824 = vld [vmem:[#allocation4 + $0x570] sm:$0xff]
    %v1825 = vld [vmem:[#allocation4 + $0x578] sm:$0xff]
    %v1826 = vld [vmem:[#allocation4 + $0x580] sm:$0xff]
    %v1827 = vld [vmem:[#allocation4 + $0x588] sm:$0xff]
    %v1828 = vld [vmem:[#allocation4 + $0x590] sm:$0xff]
    %v1829 = vld [vmem:[#allocation4 + $0x598] sm:$0xff]
    %v1830 = vld [vmem:[#allocation4 + $0x5a0] sm:$0xff]
    %v1831 = vld [vmem:[#allocation4 + $0x5a8] sm:$0xff]
    %v1832 = vld [vmem:[#allocation4 + $0x5b0] sm:$0xff]
    %v1833 = vld [vmem:[#allocation4 + $0x5b8] sm:$0xff]
    %v1834 = vld [vmem:[#allocation4 + $0x5c0] sm:$0xff]
    %v1835 = vld [vmem:[#allocation4 + $0x5c8] sm:$0xff]
    %v1836 = vld [vmem:[#allocation4 + $0x5d0] sm:$0xff]
    %v1837 = vld [vmem:[#allocation4 + $0x5d8] sm:$0xff]
    %v1838 = vld [vmem:[#allocation4 + $0x5e0] sm:$0xff]
    %v1839 = vld [vmem:[#allocation4 + $0x5e8] sm:$0xff]
    %v1840 = vld [vmem:[#allocation4 + $0x5f0] sm:$0xff]
    %v1841 = vld [vmem:[#allocation4 + $0x5f8] sm:$0xff]
    %v1842 = vld [vmem:[#allocation4 + $0x600] sm:$0xff]
    %v1843 = vld [vmem:[#allocation4 + $0x608] sm:$0xff]
    %v1844 = vld [vmem:[#allocation4 + $0x610] sm:$0xff]
    %v1845 = vld [vmem:[#allocation4 + $0x618] sm:$0xff]
    %v1846 = vld [vmem:[#allocation4 + $0x620] sm:$0xff]
    %v1847 = vld [vmem:[#allocation4 + $0x628] sm:$0xff]
    %v1848 = vld [vmem:[#allocation4 + $0x630] sm:$0xff]
    %v1849 = vld [vmem:[#allocation4 + $0x638] sm:$0xff]
    %v1850 = vld [vmem:[#allocation4 + $0x640] sm:$0xff]
    %v1851 = vld [vmem:[#allocation4 + $0x648] sm:$0xff]
    %v1852 = vld [vmem:[#allocation4 + $0x650] sm:$0xff]
    %v1853 = vld [vmem:[#allocation4 + $0x658] sm:$0xff]
    %v1854 = vld [vmem:[#allocation4 + $0x660] sm:$0xff]
    %v1855 = vld [vmem:[#allocation4 + $0x668] sm:$0xff]
    %v1856 = vld [vmem:[#allocation4 + $0x670] sm:$0xff]
    %v1857 = vld [vmem:[#allocation4 + $0x678] sm:$0xff]
    %v1858 = vld [vmem:[#allocation4 + $0x680] sm:$0xff]
    %v1859 = vld [vmem:[#allocation4 + $0x688] sm:$0xff]
    %v1860 = vld [vmem:[#allocation4 + $0x690] sm:$0xff]
    %v1861 = vld [vmem:[#allocation4 + $0x698] sm:$0xff]
    %v1862 = vld [vmem:[#allocation4 + $0x6a0] sm:$0xff]
    %v1863 = vld [vmem:[#allocation4 + $0x6a8] sm:$0xff]
    %v1864 = vld [vmem:[#allocation4 + $0x6b0] sm:$0xff]
    %v1865 = vld [vmem:[#allocation4 + $0x6b8] sm:$0xff]
    %v1866 = vld [vmem:[#allocation4 + $0x6c0] sm:$0xff]
    %v1867 = vld [vmem:[#allocation4 + $0x6c8] sm:$0xff]
    %v1868 = vld [vmem:[#allocation4 + $0x6d0] sm:$0xff]
    %v1869 = vld [vmem:[#allocation4 + $0x6d8] sm:$0xff]
    %v1870 = vld [vmem:[#allocation4 + $0x6e0] sm:$0xff]
    %v1871 = vld [vmem:[#allocation4 + $0x6e8] sm:$0xff]
    %v1872 = vld [vmem:[#allocation4 + $0x6f0] sm:$0xff]
    %v1873 = vld [vmem:[#allocation4 + $0x6f8] sm:$0xff]
    %v1874 = vld [vmem:[#allocation4 + $0x700] sm:$0xff]
    %v1875 = vld [vmem:[#allocation4 + $0x708] sm:$0xff]
    %v1876 = vld [vmem:[#allocation4 + $0x710] sm:$0xff]
    %v1877 = vld [vmem:[#allocation4 + $0x718] sm:$0xff]
    %v1878 = vld [vmem:[#allocation4 + $0x720] sm:$0xff]
    %v1879 = vld [vmem:[#allocation4 + $0x728] sm:$0xff]
    %v1880 = vld [vmem:[#allocation4 + $0x730] sm:$0xff]
    %v1881 = vld [vmem:[#allocation4 + $0x738] sm:$0xff]
    %v1882 = vld [vmem:[#allocation4 + $0x740] sm:$0xff]
    %v1883 = vld [vmem:[#allocation4 + $0x748] sm:$0xff]
    %v1884 = vld [vmem:[#allocation4 + $0x750] sm:$0xff]
    %v1885 = vld [vmem:[#allocation4 + $0x758] sm:$0xff]
    %v1886 = vld [vmem:[#allocation4 + $0x760] sm:$0xff]
    %v1887 = vld [vmem:[#allocation4 + $0x768] sm:$0xff]
    %v1888 = vld [vmem:[#allocation4 + $0x770] sm:$0xff]
    %v1889 = vld [vmem:[#allocation4 + $0x778] sm:$0xff]
    %v1890 = vld [vmem:[#allocation4 + $0x780] sm:$0xff]
    %v1891 = vld [vmem:[#allocation4 + $0x788] sm:$0xff]
    %v1892 = vld [vmem:[#allocation4 + $0x790] sm:$0xff]
    %v1893 = vld [vmem:[#allocation4 + $0x798] sm:$0xff]
    %v1894 = vld [vmem:[#allocation4 + $0x7a0] sm:$0xff]
    %v1895 = vld [vmem:[#allocation4 + $0x7a8] sm:$0xff]
    %v1896 = vld [vmem:[#allocation4 + $0x7b0] sm:$0xff]
    %v1897 = vld [vmem:[#allocation4 + $0x7b8] sm:$0xff]
    %v1898 = vld [vmem:[#allocation4 + $0x7c0] sm:$0xff]
    %v1899 = vld [vmem:[#allocation4 + $0x7c8] sm:$0xff]
    %v1900 = vld [vmem:[#allocation4 + $0x7d0] sm:$0xff]
    %v1901 = vld [vmem:[#allocation4 + $0x7d8] sm:$0xff]
    %v1902 = vld [vmem:[#allocation4 + $0x7e0] sm:$0xff]
    %v1903 = vld [vmem:[#allocation4 + $0x7e8] sm:$0xff]
    %v1904 = vld [vmem:[#allocation4 + $0x7f0] sm:$0xff]
    %v1905 = vld [vmem:[#allocation4 + $0x7f8] sm:$0xff]
    %v1906 = vld [vmem:[%s4] sm:$0xf]
    %v1908 = vlaneseq
    %v1909 = vshrl.u32 %v1908, 7
    %v1910 = vsub.s32 0, %v1909
    %v1911 = vrot.slane %v1906, %v1910
    %v1912 = vlaneseq
    %v1913 = vshrl.u32 %v1912, 7
    %v1914 = vsub.s32 1, %v1913
    %v1915 = vrot.slane %v1906, %v1914
    %v1916 = vlaneseq
    %v1917 = vshrl.u32 %v1916, 7
    %v1918 = vsub.s32 2, %v1917
    %v1919 = vrot.slane %v1906, %v1918
    %v1920 = vlaneseq
    %v1921 = vshrl.u32 %v1920, 7
    %v1922 = vsub.s32 3, %v1921
    %v1923 = vrot.slane %v1906, %v1922
    %v2184 = vunpack.c.l.b16 %v1650
    %v2185 = vunpack.c.h.b16 %v1650
    %v2186 = vunpack.c.l.b16 %v1651
    %v2187 = vunpack.c.h.b16 %v1651
    %v2188 = vunpack.c.l.b16 %v1652
    %v2189 = vunpack.c.h.b16 %v1652
    %v2190 = vunpack.c.l.b16 %v1653
    %v2191 = vunpack.c.h.b16 %v1653
    %v2192 = vunpack.c.l.b16 %v1654
    %v2193 = vunpack.c.h.b16 %v1654
    %v2194 = vunpack.c.l.b16 %v1655
    %v2195 = vunpack.c.h.b16 %v1655
    %v2196 = vunpack.c.l.b16 %v1656
    %v2197 = vunpack.c.h.b16 %v1656
    %v2198 = vunpack.c.l.b16 %v1657
    %v2199 = vunpack.c.h.b16 %v1657
    %v2200 = vunpack.c.l.b16 %v1658
    %v2201 = vunpack.c.h.b16 %v1658
    %v2202 = vunpack.c.l.b16 %v1659
    %v2203 = vunpack.c.h.b16 %v1659
    %v2204 = vunpack.c.l.b16 %v1660
    %v2205 = vunpack.c.h.b16 %v1660
    %v2206 = vunpack.c.l.b16 %v1661
    %v2207 = vunpack.c.h.b16 %v1661
    %v2208 = vunpack.c.l.b16 %v1662
    %v2209 = vunpack.c.h.b16 %v1662
    %v2210 = vunpack.c.l.b16 %v1663
    %v2211 = vunpack.c.h.b16 %v1663
    %v2212 = vunpack.c.l.b16 %v1664
    %v2213 = vunpack.c.h.b16 %v1664
    %v2214 = vunpack.c.l.b16 %v1665
    %v2215 = vunpack.c.h.b16 %v1665
    %v2216 = vunpack.c.l.b16 %v1666
    %v2217 = vunpack.c.h.b16 %v1666
    %v2218 = vunpack.c.l.b16 %v1667
    %v2219 = vunpack.c.h.b16 %v1667
    %v2220 = vunpack.c.l.b16 %v1668
    %v2221 = vunpack.c.h.b16 %v1668
    %v2222 = vunpack.c.l.b16 %v1669
    %v2223 = vunpack.c.h.b16 %v1669
    %v2224 = vunpack.c.l.b16 %v1670
    %v2225 = vunpack.c.h.b16 %v1670
    %v2226 = vunpack.c.l.b16 %v1671
    %v2227 = vunpack.c.h.b16 %v1671
    %v2228 = vunpack.c.l.b16 %v1672
    %v2229 = vunpack.c.h.b16 %v1672
    %v2230 = vunpack.c.l.b16 %v1673
    %v2231 = vunpack.c.h.b16 %v1673
    %v2232 = vunpack.c.l.b16 %v1674
    %v2233 = vunpack.c.h.b16 %v1674
    %v2234 = vunpack.c.l.b16 %v1675
    %v2235 = vunpack.c.h.b16 %v1675
    %v2236 = vunpack.c.l.b16 %v1676
    %v2237 = vunpack.c.h.b16 %v1676
    %v2238 = vunpack.c.l.b16 %v1677
    %v2239 = vunpack.c.h.b16 %v1677
    %v2240 = vunpack.c.l.b16 %v1678
    %v2241 = vunpack.c.h.b16 %v1678
    %v2242 = vunpack.c.l.b16 %v1679
    %v2243 = vunpack.c.h.b16 %v1679
    %v2244 = vunpack.c.l.b16 %v1680
    %v2245 = vunpack.c.h.b16 %v1680
    %v2246 = vunpack.c.l.b16 %v1681
    %v2247 = vunpack.c.h.b16 %v1681
    %v2248 = vunpack.c.l.b16 %v1682
    %v2249 = vunpack.c.h.b16 %v1682
    %v2250 = vunpack.c.l.b16 %v1683
    %v2251 = vunpack.c.h.b16 %v1683
    %v2252 = vunpack.c.l.b16 %v1684
    %v2253 = vunpack.c.h.b16 %v1684
    %v2254 = vunpack.c.l.b16 %v1685
    %v2255 = vunpack.c.h.b16 %v1685
    %v2256 = vunpack.c.l.b16 %v1686
    %v2257 = vunpack.c.h.b16 %v1686
    %v2258 = vunpack.c.l.b16 %v1687
    %v2259 = vunpack.c.h.b16 %v1687
    %v2260 = vunpack.c.l.b16 %v1688
    %v2261 = vunpack.c.h.b16 %v1688
    %v2262 = vunpack.c.l.b16 %v1689
    %v2263 = vunpack.c.h.b16 %v1689
    %v2264 = vunpack.c.l.b16 %v1690
    %v2265 = vunpack.c.h.b16 %v1690
    %v2266 = vunpack.c.l.b16 %v1691
    %v2267 = vunpack.c.h.b16 %v1691
    %v2268 = vunpack.c.l.b16 %v1692
    %v2269 = vunpack.c.h.b16 %v1692
    %v2270 = vunpack.c.l.b16 %v1693
    %v2271 = vunpack.c.h.b16 %v1693
    %v2272 = vunpack.c.l.b16 %v1694
    %v2273 = vunpack.c.h.b16 %v1694
    %v2274 = vunpack.c.l.b16 %v1695
    %v2275 = vunpack.c.h.b16 %v1695
    %v2276 = vunpack.c.l.b16 %v1696
    %v2277 = vunpack.c.h.b16 %v1696
    %v2278 = vunpack.c.l.b16 %v1697
    %v2279 = vunpack.c.h.b16 %v1697
    %v2280 = vunpack.c.l.b16 %v1698
    %v2281 = vunpack.c.h.b16 %v1698
    %v2282 = vunpack.c.l.b16 %v1699
    %v2283 = vunpack.c.h.b16 %v1699
    %v2284 = vunpack.c.l.b16 %v1700
    %v2285 = vunpack.c.h.b16 %v1700
    %v2286 = vunpack.c.l.b16 %v1701
    %v2287 = vunpack.c.h.b16 %v1701
    %v2288 = vunpack.c.l.b16 %v1702
    %v2289 = vunpack.c.h.b16 %v1702
    %v2290 = vunpack.c.l.b16 %v1703
    %v2291 = vunpack.c.h.b16 %v1703
    %v2292 = vunpack.c.l.b16 %v1704
    %v2293 = vunpack.c.h.b16 %v1704
    %v2294 = vunpack.c.l.b16 %v1705
    %v2295 = vunpack.c.h.b16 %v1705
    %v2296 = vunpack.c.l.b16 %v1706
    %v2297 = vunpack.c.h.b16 %v1706
    %v2298 = vunpack.c.l.b16 %v1707
    %v2299 = vunpack.c.h.b16 %v1707
    %v2300 = vunpack.c.l.b16 %v1708
    %v2301 = vunpack.c.h.b16 %v1708
    %v2302 = vunpack.c.l.b16 %v1709
    %v2303 = vunpack.c.h.b16 %v1709
    %v2304 = vunpack.c.l.b16 %v1710
    %v2305 = vunpack.c.h.b16 %v1710
    %v2306 = vunpack.c.l.b16 %v1711
    %v2307 = vunpack.c.h.b16 %v1711
    %v2308 = vunpack.c.l.b16 %v1712
    %v2309 = vunpack.c.h.b16 %v1712
    %v2310 = vunpack.c.l.b16 %v1713
    %v2311 = vunpack.c.h.b16 %v1713
    %v2312 = vunpack.c.l.b16 %v1714
    %v2313 = vunpack.c.h.b16 %v1714
    %v2314 = vunpack.c.l.b16 %v1715
    %v2315 = vunpack.c.h.b16 %v1715
    %v2316 = vunpack.c.l.b16 %v1716
    %v2317 = vunpack.c.h.b16 %v1716
    %v2318 = vunpack.c.l.b16 %v1717
    %v2319 = vunpack.c.h.b16 %v1717
    %v2320 = vunpack.c.l.b16 %v1718
    %v2321 = vunpack.c.h.b16 %v1718
    %v2322 = vunpack.c.l.b16 %v1719
    %v2323 = vunpack.c.h.b16 %v1719
    %v2324 = vunpack.c.l.b16 %v1720
    %v2325 = vunpack.c.h.b16 %v1720
    %v2326 = vunpack.c.l.b16 %v1721
    %v2327 = vunpack.c.h.b16 %v1721
    %v2328 = vunpack.c.l.b16 %v1722
    %v2329 = vunpack.c.h.b16 %v1722
    %v2330 = vunpack.c.l.b16 %v1723
    %v2331 = vunpack.c.h.b16 %v1723
    %v2332 = vunpack.c.l.b16 %v1724
    %v2333 = vunpack.c.h.b16 %v1724
    %v2334 = vunpack.c.l.b16 %v1725
    %v2335 = vunpack.c.h.b16 %v1725
    %v2336 = vunpack.c.l.b16 %v1726
    %v2337 = vunpack.c.h.b16 %v1726
    %v2338 = vunpack.c.l.b16 %v1727
    %v2339 = vunpack.c.h.b16 %v1727
    %v2340 = vunpack.c.l.b16 %v1728
    %v2341 = vunpack.c.h.b16 %v1728
    %v2342 = vunpack.c.l.b16 %v1729
    %v2343 = vunpack.c.h.b16 %v1729
    %v2344 = vunpack.c.l.b16 %v1730
    %v2345 = vunpack.c.h.b16 %v1730
    %v2346 = vunpack.c.l.b16 %v1731
    %v2347 = vunpack.c.h.b16 %v1731
    %v2348 = vunpack.c.l.b16 %v1732
    %v2349 = vunpack.c.h.b16 %v1732
    %v2350 = vunpack.c.l.b16 %v1733
    %v2351 = vunpack.c.h.b16 %v1733
    %v2352 = vunpack.c.l.b16 %v1734
    %v2353 = vunpack.c.h.b16 %v1734
    %v2354 = vunpack.c.l.b16 %v1735
    %v2355 = vunpack.c.h.b16 %v1735
    %v2356 = vunpack.c.l.b16 %v1736
    %v2357 = vunpack.c.h.b16 %v1736
    %v2358 = vunpack.c.l.b16 %v1737
    %v2359 = vunpack.c.h.b16 %v1737
    %v2360 = vunpack.c.l.b16 %v1738
    %v2361 = vunpack.c.h.b16 %v1738
    %v2362 = vunpack.c.l.b16 %v1739
    %v2363 = vunpack.c.h.b16 %v1739
    %v2364 = vunpack.c.l.b16 %v1740
    %v2365 = vunpack.c.h.b16 %v1740
    %v2366 = vunpack.c.l.b16 %v1741
    %v2367 = vunpack.c.h.b16 %v1741
    %v2368 = vunpack.c.l.b16 %v1742
    %v2369 = vunpack.c.h.b16 %v1742
    %v2370 = vunpack.c.l.b16 %v1743
    %v2371 = vunpack.c.h.b16 %v1743
    %v2372 = vunpack.c.l.b16 %v1744
    %v2373 = vunpack.c.h.b16 %v1744
    %v2374 = vunpack.c.l.b16 %v1745
    %v2375 = vunpack.c.h.b16 %v1745
    %v2376 = vunpack.c.l.b16 %v1746
    %v2377 = vunpack.c.h.b16 %v1746
    %v2378 = vunpack.c.l.b16 %v1747
    %v2379 = vunpack.c.h.b16 %v1747
    %v2380 = vunpack.c.l.b16 %v1748
    %v2381 = vunpack.c.h.b16 %v1748
    %v2382 = vunpack.c.l.b16 %v1749
    %v2383 = vunpack.c.h.b16 %v1749
    %v2384 = vunpack.c.l.b16 %v1750
    %v2385 = vunpack.c.h.b16 %v1750
    %v2386 = vunpack.c.l.b16 %v1751
    %v2387 = vunpack.c.h.b16 %v1751
    %v2388 = vunpack.c.l.b16 %v1752
    %v2389 = vunpack.c.h.b16 %v1752
    %v2390 = vunpack.c.l.b16 %v1753
    %v2391 = vunpack.c.h.b16 %v1753
    %v2392 = vunpack.c.l.b16 %v1754
    %v2393 = vunpack.c.h.b16 %v1754
    %v2394 = vunpack.c.l.b16 %v1755
    %v2395 = vunpack.c.h.b16 %v1755
    %v2396 = vunpack.c.l.b16 %v1756
    %v2397 = vunpack.c.h.b16 %v1756
    %v2398 = vunpack.c.l.b16 %v1757
    %v2399 = vunpack.c.h.b16 %v1757
    %v2400 = vunpack.c.l.b16 %v1758
    %v2401 = vunpack.c.h.b16 %v1758
    %v2402 = vunpack.c.l.b16 %v1759
    %v2403 = vunpack.c.h.b16 %v1759
    %v2404 = vunpack.c.l.b16 %v1760
    %v2405 = vunpack.c.h.b16 %v1760
    %v2406 = vunpack.c.l.b16 %v1761
    %v2407 = vunpack.c.h.b16 %v1761
    %v2408 = vunpack.c.l.b16 %v1762
    %v2409 = vunpack.c.h.b16 %v1762
    %v2410 = vunpack.c.l.b16 %v1763
    %v2411 = vunpack.c.h.b16 %v1763
    %v2412 = vunpack.c.l.b16 %v1764
    %v2413 = vunpack.c.h.b16 %v1764
    %v2414 = vunpack.c.l.b16 %v1765
    %v2415 = vunpack.c.h.b16 %v1765
    %v2416 = vunpack.c.l.b16 %v1766
    %v2417 = vunpack.c.h.b16 %v1766
    %v2418 = vunpack.c.l.b16 %v1767
    %v2419 = vunpack.c.h.b16 %v1767
    %v2420 = vunpack.c.l.b16 %v1768
    %v2421 = vunpack.c.h.b16 %v1768
    %v2422 = vunpack.c.l.b16 %v1769
    %v2423 = vunpack.c.h.b16 %v1769
    %v2424 = vunpack.c.l.b16 %v1770
    %v2425 = vunpack.c.h.b16 %v1770
    %v2426 = vunpack.c.l.b16 %v1771
    %v2427 = vunpack.c.h.b16 %v1771
    %v2428 = vunpack.c.l.b16 %v1772
    %v2429 = vunpack.c.h.b16 %v1772
    %v2430 = vunpack.c.l.b16 %v1773
    %v2431 = vunpack.c.h.b16 %v1773
    %v2432 = vunpack.c.l.b16 %v1774
    %v2433 = vunpack.c.h.b16 %v1774
    %v2434 = vunpack.c.l.b16 %v1775
    %v2435 = vunpack.c.h.b16 %v1775
    %v2436 = vunpack.c.l.b16 %v1776
    %v2437 = vunpack.c.h.b16 %v1776
    %v2438 = vunpack.c.l.b16 %v1777
    %v2439 = vunpack.c.h.b16 %v1777
    %v2440 = vunpack.c.l.b16 %v1778
    %v2441 = vunpack.c.h.b16 %v1778
    %v2442 = vunpack.c.l.b16 %v1779
    %v2443 = vunpack.c.h.b16 %v1779
    %v2444 = vunpack.c.l.b16 %v1780
    %v2445 = vunpack.c.h.b16 %v1780
    %v2446 = vunpack.c.l.b16 %v1781
    %v2447 = vunpack.c.h.b16 %v1781
    %v2448 = vunpack.c.l.b16 %v1782
    %v2449 = vunpack.c.h.b16 %v1782
    %v2450 = vunpack.c.l.b16 %v1783
    %v2451 = vunpack.c.h.b16 %v1783
    %v2452 = vunpack.c.l.b16 %v1784
    %v2453 = vunpack.c.h.b16 %v1784
    %v2454 = vunpack.c.l.b16 %v1785
    %v2455 = vunpack.c.h.b16 %v1785
    %v2456 = vunpack.c.l.b16 %v1786
    %v2457 = vunpack.c.h.b16 %v1786
    %v2458 = vunpack.c.l.b16 %v1787
    %v2459 = vunpack.c.h.b16 %v1787
    %v2460 = vunpack.c.l.b16 %v1788
    %v2461 = vunpack.c.h.b16 %v1788
    %v2462 = vunpack.c.l.b16 %v1789
    %v2463 = vunpack.c.h.b16 %v1789
    %v2464 = vunpack.c.l.b16 %v1790
    %v2465 = vunpack.c.h.b16 %v1790
    %v2466 = vunpack.c.l.b16 %v1791
    %v2467 = vunpack.c.h.b16 %v1791
    %v2468 = vunpack.c.l.b16 %v1792
    %v2469 = vunpack.c.h.b16 %v1792
    %v2470 = vunpack.c.l.b16 %v1793
    %v2471 = vunpack.c.h.b16 %v1793
    %v2472 = vunpack.c.l.b16 %v1794
    %v2473 = vunpack.c.h.b16 %v1794
    %v2474 = vunpack.c.l.b16 %v1795
    %v2475 = vunpack.c.h.b16 %v1795
    %v2476 = vunpack.c.l.b16 %v1796
    %v2477 = vunpack.c.h.b16 %v1796
    %v2478 = vunpack.c.l.b16 %v1797
    %v2479 = vunpack.c.h.b16 %v1797
    %v2480 = vunpack.c.l.b16 %v1798
    %v2481 = vunpack.c.h.b16 %v1798
    %v2482 = vunpack.c.l.b16 %v1799
    %v2483 = vunpack.c.h.b16 %v1799
    %v2484 = vunpack.c.l.b16 %v1800
    %v2485 = vunpack.c.h.b16 %v1800
    %v2486 = vunpack.c.l.b16 %v1801
    %v2487 = vunpack.c.h.b16 %v1801
    %v2488 = vunpack.c.l.b16 %v1802
    %v2489 = vunpack.c.h.b16 %v1802
    %v2490 = vunpack.c.l.b16 %v1803
    %v2491 = vunpack.c.h.b16 %v1803
    %v2492 = vunpack.c.l.b16 %v1804
    %v2493 = vunpack.c.h.b16 %v1804
    %v2494 = vunpack.c.l.b16 %v1805
    %v2495 = vunpack.c.h.b16 %v1805
    %v2496 = vunpack.c.l.b16 %v1806
    %v2497 = vunpack.c.h.b16 %v1806
    %v2498 = vunpack.c.l.b16 %v1807
    %v2499 = vunpack.c.h.b16 %v1807
    %v2500 = vunpack.c.l.b16 %v1808
    %v2501 = vunpack.c.h.b16 %v1808
    %v2502 = vunpack.c.l.b16 %v1809
    %v2503 = vunpack.c.h.b16 %v1809
    %v2504 = vunpack.c.l.b16 %v1810
    %v2505 = vunpack.c.h.b16 %v1810
    %v2506 = vunpack.c.l.b16 %v1811
    %v2507 = vunpack.c.h.b16 %v1811
    %v2508 = vunpack.c.l.b16 %v1812
    %v2509 = vunpack.c.h.b16 %v1812
    %v2510 = vunpack.c.l.b16 %v1813
    %v2511 = vunpack.c.h.b16 %v1813
    %v2512 = vunpack.c.l.b16 %v1814
    %v2513 = vunpack.c.h.b16 %v1814
    %v2514 = vunpack.c.l.b16 %v1815
    %v2515 = vunpack.c.h.b16 %v1815
    %v2516 = vunpack.c.l.b16 %v1816
    %v2517 = vunpack.c.h.b16 %v1816
    %v2518 = vunpack.c.l.b16 %v1817
    %v2519 = vunpack.c.h.b16 %v1817
    %v2520 = vunpack.c.l.b16 %v1818
    %v2521 = vunpack.c.h.b16 %v1818
    %v2522 = vunpack.c.l.b16 %v1819
    %v2523 = vunpack.c.h.b16 %v1819
    %v2524 = vunpack.c.l.b16 %v1820
    %v2525 = vunpack.c.h.b16 %v1820
    %v2526 = vunpack.c.l.b16 %v1821
    %v2527 = vunpack.c.h.b16 %v1821
    %v2528 = vunpack.c.l.b16 %v1822
    %v2529 = vunpack.c.h.b16 %v1822
    %v2530 = vunpack.c.l.b16 %v1823
    %v2531 = vunpack.c.h.b16 %v1823
    %v2532 = vunpack.c.l.b16 %v1824
    %v2533 = vunpack.c.h.b16 %v1824
    %v2534 = vunpack.c.l.b16 %v1825
    %v2535 = vunpack.c.h.b16 %v1825
    %v2536 = vunpack.c.l.b16 %v1826
    %v2537 = vunpack.c.h.b16 %v1826
    %v2538 = vunpack.c.l.b16 %v1827
    %v2539 = vunpack.c.h.b16 %v1827
    %v2540 = vunpack.c.l.b16 %v1828
    %v2541 = vunpack.c.h.b16 %v1828
    %v2542 = vunpack.c.l.b16 %v1829
    %v2543 = vunpack.c.h.b16 %v1829
    %v2544 = vunpack.c.l.b16 %v1830
    %v2545 = vunpack.c.h.b16 %v1830
    %v2546 = vunpack.c.l.b16 %v1831
    %v2547 = vunpack.c.h.b16 %v1831
    %v2548 = vunpack.c.l.b16 %v1832
    %v2549 = vunpack.c.h.b16 %v1832
    %v2550 = vunpack.c.l.b16 %v1833
    %v2551 = vunpack.c.h.b16 %v1833
    %v2552 = vunpack.c.l.b16 %v1834
    %v2553 = vunpack.c.h.b16 %v1834
    %v2554 = vunpack.c.l.b16 %v1835
    %v2555 = vunpack.c.h.b16 %v1835
    %v2556 = vunpack.c.l.b16 %v1836
    %v2557 = vunpack.c.h.b16 %v1836
    %v2558 = vunpack.c.l.b16 %v1837
    %v2559 = vunpack.c.h.b16 %v1837
    %v2560 = vunpack.c.l.b16 %v1838
    %v2561 = vunpack.c.h.b16 %v1838
    %v2562 = vunpack.c.l.b16 %v1839
    %v2563 = vunpack.c.h.b16 %v1839
    %v2564 = vunpack.c.l.b16 %v1840
    %v2565 = vunpack.c.h.b16 %v1840
    %v2566 = vunpack.c.l.b16 %v1841
    %v2567 = vunpack.c.h.b16 %v1841
    %v2568 = vunpack.c.l.b16 %v1842
    %v2569 = vunpack.c.h.b16 %v1842
    %v2570 = vunpack.c.l.b16 %v1843
    %v2571 = vunpack.c.h.b16 %v1843
    %v2572 = vunpack.c.l.b16 %v1844
    %v2573 = vunpack.c.h.b16 %v1844
    %v2574 = vunpack.c.l.b16 %v1845
    %v2575 = vunpack.c.h.b16 %v1845
    %v2576 = vunpack.c.l.b16 %v1846
    %v2577 = vunpack.c.h.b16 %v1846
    %v2578 = vunpack.c.l.b16 %v1847
    %v2579 = vunpack.c.h.b16 %v1847
    %v2580 = vunpack.c.l.b16 %v1848
    %v2581 = vunpack.c.h.b16 %v1848
    %v2582 = vunpack.c.l.b16 %v1849
    %v2583 = vunpack.c.h.b16 %v1849
    %v2584 = vunpack.c.l.b16 %v1850
    %v2585 = vunpack.c.h.b16 %v1850
    %v2586 = vunpack.c.l.b16 %v1851
    %v2587 = vunpack.c.h.b16 %v1851
    %v2588 = vunpack.c.l.b16 %v1852
    %v2589 = vunpack.c.h.b16 %v1852
    %v2590 = vunpack.c.l.b16 %v1853
    %v2591 = vunpack.c.h.b16 %v1853
    %v2592 = vunpack.c.l.b16 %v1854
    %v2593 = vunpack.c.h.b16 %v1854
    %v2594 = vunpack.c.l.b16 %v1855
    %v2595 = vunpack.c.h.b16 %v1855
    %v2596 = vunpack.c.l.b16 %v1856
    %v2597 = vunpack.c.h.b16 %v1856
    %v2598 = vunpack.c.l.b16 %v1857
    %v2599 = vunpack.c.h.b16 %v1857
    %v2600 = vunpack.c.l.b16 %v1858
    %v2601 = vunpack.c.h.b16 %v1858
    %v2602 = vunpack.c.l.b16 %v1859
    %v2603 = vunpack.c.h.b16 %v1859
    %v2604 = vunpack.c.l.b16 %v1860
    %v2605 = vunpack.c.h.b16 %v1860
    %v2606 = vunpack.c.l.b16 %v1861
    %v2607 = vunpack.c.h.b16 %v1861
    %v2608 = vunpack.c.l.b16 %v1862
    %v2609 = vunpack.c.h.b16 %v1862
    %v2610 = vunpack.c.l.b16 %v1863
    %v2611 = vunpack.c.h.b16 %v1863
    %v2612 = vunpack.c.l.b16 %v1864
    %v2613 = vunpack.c.h.b16 %v1864
    %v2614 = vunpack.c.l.b16 %v1865
    %v2615 = vunpack.c.h.b16 %v1865
    %v2616 = vunpack.c.l.b16 %v1866
    %v2617 = vunpack.c.h.b16 %v1866
    %v2618 = vunpack.c.l.b16 %v1867
    %v2619 = vunpack.c.h.b16 %v1867
    %v2620 = vunpack.c.l.b16 %v1868
    %v2621 = vunpack.c.h.b16 %v1868
    %v2622 = vunpack.c.l.b16 %v1869
    %v2623 = vunpack.c.h.b16 %v1869
    %v2624 = vunpack.c.l.b16 %v1870
    %v2625 = vunpack.c.h.b16 %v1870
    %v2626 = vunpack.c.l.b16 %v1871
    %v2627 = vunpack.c.h.b16 %v1871
    %v2628 = vunpack.c.l.b16 %v1872
    %v2629 = vunpack.c.h.b16 %v1872
    %v2630 = vunpack.c.l.b16 %v1873
    %v2631 = vunpack.c.h.b16 %v1873
    %v2632 = vunpack.c.l.b16 %v1874
    %v2633 = vunpack.c.h.b16 %v1874
    %v2634 = vunpack.c.l.b16 %v1875
    %v2635 = vunpack.c.h.b16 %v1875
    %v2636 = vunpack.c.l.b16 %v1876
    %v2637 = vunpack.c.h.b16 %v1876
    %v2638 = vunpack.c.l.b16 %v1877
    %v2639 = vunpack.c.h.b16 %v1877
    %v2640 = vunpack.c.l.b16 %v1878
    %v2641 = vunpack.c.h.b16 %v1878
    %v2642 = vunpack.c.l.b16 %v1879
    %v2643 = vunpack.c.h.b16 %v1879
    %v2644 = vunpack.c.l.b16 %v1880
    %v2645 = vunpack.c.h.b16 %v1880
    %v2646 = vunpack.c.l.b16 %v1881
    %v2647 = vunpack.c.h.b16 %v1881
    %v2648 = vunpack.c.l.b16 %v1882
    %v2649 = vunpack.c.h.b16 %v1882
    %v2650 = vunpack.c.l.b16 %v1883
    %v2651 = vunpack.c.h.b16 %v1883
    %v2652 = vunpack.c.l.b16 %v1884
    %v2653 = vunpack.c.h.b16 %v1884
    %v2654 = vunpack.c.l.b16 %v1885
    %v2655 = vunpack.c.h.b16 %v1885
    %v2656 = vunpack.c.l.b16 %v1886
    %v2657 = vunpack.c.h.b16 %v1886
    %v2658 = vunpack.c.l.b16 %v1887
    %v2659 = vunpack.c.h.b16 %v1887
    %v2660 = vunpack.c.l.b16 %v1888
    %v2661 = vunpack.c.h.b16 %v1888
    %v2662 = vunpack.c.l.b16 %v1889
    %v2663 = vunpack.c.h.b16 %v1889
    %v2664 = vunpack.c.l.b16 %v1890
    %v2665 = vunpack.c.h.b16 %v1890
    %v2666 = vunpack.c.l.b16 %v1891
    %v2667 = vunpack.c.h.b16 %v1891
    %v2668 = vunpack.c.l.b16 %v1892
    %v2669 = vunpack.c.h.b16 %v1892
    %v2670 = vunpack.c.l.b16 %v1893
    %v2671 = vunpack.c.h.b16 %v1893
    %v2672 = vunpack.c.l.b16 %v1894
    %v2673 = vunpack.c.h.b16 %v1894
    %v2674 = vunpack.c.l.b16 %v1895
    %v2675 = vunpack.c.h.b16 %v1895
    %v2676 = vunpack.c.l.b16 %v1896
    %v2677 = vunpack.c.h.b16 %v1896
    %v2678 = vunpack.c.l.b16 %v1897
    %v2679 = vunpack.c.h.b16 %v1897
    %v2680 = vunpack.c.l.b16 %v1898
    %v2681 = vunpack.c.h.b16 %v1898
    %v2682 = vunpack.c.l.b16 %v1899
    %v2683 = vunpack.c.h.b16 %v1899
    %v2684 = vunpack.c.l.b16 %v1900
    %v2685 = vunpack.c.h.b16 %v1900
    %v2686 = vunpack.c.l.b16 %v1901
    %v2687 = vunpack.c.h.b16 %v1901
    %v2688 = vunpack.c.l.b16 %v1902
    %v2689 = vunpack.c.h.b16 %v1902
    %v2690 = vunpack.c.l.b16 %v1903
    %v2691 = vunpack.c.h.b16 %v1903
    %v2692 = vunpack.c.l.b16 %v1904
    %v2693 = vunpack.c.h.b16 %v1904
    %v2694 = vunpack.c.l.b16 %v1905
    %v2695 = vunpack.c.h.b16 %v1905
    %v2696 = vpack.c.b16 %v2188, %v2184
    %v2697 = vpack.c.b16 %v2189, %v2185
    %v2698 = vpack.c.b16 %v2190, %v2186
    %v2699 = vpack.c.b16 %v2191, %v2187
    %v2700 = vpack.c.b16 %v2196, %v2192
    %v2701 = vpack.c.b16 %v2197, %v2193
    %v2702 = vpack.c.b16 %v2198, %v2194
    %v2703 = vpack.c.b16 %v2199, %v2195
    %v2704 = vpack.c.b16 %v2204, %v2200
    %v2705 = vpack.c.b16 %v2205, %v2201
    %v2706 = vpack.c.b16 %v2206, %v2202
    %v2707 = vpack.c.b16 %v2207, %v2203
    %v2708 = vpack.c.b16 %v2212, %v2208
    %v2709 = vpack.c.b16 %v2213, %v2209
    %v2710 = vpack.c.b16 %v2214, %v2210
    %v2711 = vpack.c.b16 %v2215, %v2211
    %v2712 = vpack.c.b16 %v2220, %v2216
    %v2713 = vpack.c.b16 %v2221, %v2217
    %v2714 = vpack.c.b16 %v2222, %v2218
    %v2715 = vpack.c.b16 %v2223, %v2219
    %v2716 = vpack.c.b16 %v2228, %v2224
    %v2717 = vpack.c.b16 %v2229, %v2225
    %v2718 = vpack.c.b16 %v2230, %v2226
    %v2719 = vpack.c.b16 %v2231, %v2227
    %v2720 = vpack.c.b16 %v2236, %v2232
    %v2721 = vpack.c.b16 %v2237, %v2233
    %v2722 = vpack.c.b16 %v2238, %v2234
    %v2723 = vpack.c.b16 %v2239, %v2235
    %v2724 = vpack.c.b16 %v2244, %v2240
    %v2725 = vpack.c.b16 %v2245, %v2241
    %v2726 = vpack.c.b16 %v2246, %v2242
    %v2727 = vpack.c.b16 %v2247, %v2243
    %v2728 = vpack.c.b16 %v2252, %v2248
    %v2729 = vpack.c.b16 %v2253, %v2249
    %v2730 = vpack.c.b16 %v2254, %v2250
    %v2731 = vpack.c.b16 %v2255, %v2251
    %v2732 = vpack.c.b16 %v2260, %v2256
    %v2733 = vpack.c.b16 %v2261, %v2257
    %v2734 = vpack.c.b16 %v2262, %v2258
    %v2735 = vpack.c.b16 %v2263, %v2259
    %v2736 = vpack.c.b16 %v2268, %v2264
    %v2737 = vpack.c.b16 %v2269, %v2265
    %v2738 = vpack.c.b16 %v2270, %v2266
    %v2739 = vpack.c.b16 %v2271, %v2267
    %v2740 = vpack.c.b16 %v2276, %v2272
    %v2741 = vpack.c.b16 %v2277, %v2273
    %v2742 = vpack.c.b16 %v2278, %v2274
    %v2743 = vpack.c.b16 %v2279, %v2275
    %v2744 = vpack.c.b16 %v2284, %v2280
    %v2745 = vpack.c.b16 %v2285, %v2281
    %v2746 = vpack.c.b16 %v2286, %v2282
    %v2747 = vpack.c.b16 %v2287, %v2283
    %v2748 = vpack.c.b16 %v2292, %v2288
    %v2749 = vpack.c.b16 %v2293, %v2289
    %v2750 = vpack.c.b16 %v2294, %v2290
    %v2751 = vpack.c.b16 %v2295, %v2291
    %v2752 = vpack.c.b16 %v2300, %v2296
    %v2753 = vpack.c.b16 %v2301, %v2297
    %v2754 = vpack.c.b16 %v2302, %v2298
    %v2755 = vpack.c.b16 %v2303, %v2299
    %v2756 = vpack.c.b16 %v2308, %v2304
    %v2757 = vpack.c.b16 %v2309, %v2305
    %v2758 = vpack.c.b16 %v2310, %v2306
    %v2759 = vpack.c.b16 %v2311, %v2307
    %v2760 = vpack.c.b16 %v2316, %v2312
    %v2761 = vpack.c.b16 %v2317, %v2313
    %v2762 = vpack.c.b16 %v2318, %v2314
    %v2763 = vpack.c.b16 %v2319, %v2315
    %v2764 = vpack.c.b16 %v2324, %v2320
    %v2765 = vpack.c.b16 %v2325, %v2321
    %v2766 = vpack.c.b16 %v2326, %v2322
    %v2767 = vpack.c.b16 %v2327, %v2323
    %v2768 = vpack.c.b16 %v2332, %v2328
    %v2769 = vpack.c.b16 %v2333, %v2329
    %v2770 = vpack.c.b16 %v2334, %v2330
    %v2771 = vpack.c.b16 %v2335, %v2331
    %v2772 = vpack.c.b16 %v2340, %v2336
    %v2773 = vpack.c.b16 %v2341, %v2337
    %v2774 = vpack.c.b16 %v2342, %v2338
    %v2775 = vpack.c.b16 %v2343, %v2339
    %v2776 = vpack.c.b16 %v2348, %v2344
    %v2777 = vpack.c.b16 %v2349, %v2345
    %v2778 = vpack.c.b16 %v2350, %v2346
    %v2779 = vpack.c.b16 %v2351, %v2347
    %v2780 = vpack.c.b16 %v2356, %v2352
    %v2781 = vpack.c.b16 %v2357, %v2353
    %v2782 = vpack.c.b16 %v2358, %v2354
    %v2783 = vpack.c.b16 %v2359, %v2355
    %v2784 = vpack.c.b16 %v2364, %v2360
    %v2785 = vpack.c.b16 %v2365, %v2361
    %v2786 = vpack.c.b16 %v2366, %v2362
    %v2787 = vpack.c.b16 %v2367, %v2363
    %v2788 = vpack.c.b16 %v2372, %v2368
    %v2789 = vpack.c.b16 %v2373, %v2369
    %v2790 = vpack.c.b16 %v2374, %v2370
    %v2791 = vpack.c.b16 %v2375, %v2371
    %v2792 = vpack.c.b16 %v2380, %v2376
    %v2793 = vpack.c.b16 %v2381, %v2377
    %v2794 = vpack.c.b16 %v2382, %v2378
    %v2795 = vpack.c.b16 %v2383, %v2379
    %v2796 = vpack.c.b16 %v2388, %v2384
    %v2797 = vpack.c.b16 %v2389, %v2385
    %v2798 = vpack.c.b16 %v2390, %v2386
    %v2799 = vpack.c.b16 %v2391, %v2387
    %v2800 = vpack.c.b16 %v2396, %v2392
    %v2801 = vpack.c.b16 %v2397, %v2393
    %v2802 = vpack.c.b16 %v2398, %v2394
    %v2803 = vpack.c.b16 %v2399, %v2395
    %v2804 = vpack.c.b16 %v2404, %v2400
    %v2805 = vpack.c.b16 %v2405, %v2401
    %v2806 = vpack.c.b16 %v2406, %v2402
    %v2807 = vpack.c.b16 %v2407, %v2403
    %v2808 = vpack.c.b16 %v2412, %v2408
    %v2809 = vpack.c.b16 %v2413, %v2409
    %v2810 = vpack.c.b16 %v2414, %v2410
    %v2811 = vpack.c.b16 %v2415, %v2411
    %v2812 = vpack.c.b16 %v2420, %v2416
    %v2813 = vpack.c.b16 %v2421, %v2417
    %v2814 = vpack.c.b16 %v2422, %v2418
    %v2815 = vpack.c.b16 %v2423, %v2419
    %v2816 = vpack.c.b16 %v2428, %v2424
    %v2817 = vpack.c.b16 %v2429, %v2425
    %v2818 = vpack.c.b16 %v2430, %v2426
    %v2819 = vpack.c.b16 %v2431, %v2427
    %v2820 = vpack.c.b16 %v2436, %v2432
    %v2821 = vpack.c.b16 %v2437, %v2433
    %v2822 = vpack.c.b16 %v2438, %v2434
    %v2823 = vpack.c.b16 %v2439, %v2435
    %v2824 = vpack.c.b16 %v2444, %v2440
    %v2825 = vpack.c.b16 %v2445, %v2441
    %v2826 = vpack.c.b16 %v2446, %v2442
    %v2827 = vpack.c.b16 %v2447, %v2443
    %v2828 = vpack.c.b16 %v2452, %v2448
    %v2829 = vpack.c.b16 %v2453, %v2449
    %v2830 = vpack.c.b16 %v2454, %v2450
    %v2831 = vpack.c.b16 %v2455, %v2451
    %v2832 = vpack.c.b16 %v2460, %v2456
    %v2833 = vpack.c.b16 %v2461, %v2457
    %v2834 = vpack.c.b16 %v2462, %v2458
    %v2835 = vpack.c.b16 %v2463, %v2459
    %v2836 = vpack.c.b16 %v2468, %v2464
    %v2837 = vpack.c.b16 %v2469, %v2465
    %v2838 = vpack.c.b16 %v2470, %v2466
    %v2839 = vpack.c.b16 %v2471, %v2467
    %v2840 = vpack.c.b16 %v2476, %v2472
    %v2841 = vpack.c.b16 %v2477, %v2473
    %v2842 = vpack.c.b16 %v2478, %v2474
    %v2843 = vpack.c.b16 %v2479, %v2475
    %v2844 = vpack.c.b16 %v2484, %v2480
    %v2845 = vpack.c.b16 %v2485, %v2481
    %v2846 = vpack.c.b16 %v2486, %v2482
    %v2847 = vpack.c.b16 %v2487, %v2483
    %v2848 = vpack.c.b16 %v2492, %v2488
    %v2849 = vpack.c.b16 %v2493, %v2489
    %v2850 = vpack.c.b16 %v2494, %v2490
    %v2851 = vpack.c.b16 %v2495, %v2491
    %v2852 = vpack.c.b16 %v2500, %v2496
    %v2853 = vpack.c.b16 %v2501, %v2497
    %v2854 = vpack.c.b16 %v2502, %v2498
    %v2855 = vpack.c.b16 %v2503, %v2499
    %v2856 = vpack.c.b16 %v2508, %v2504
    %v2857 = vpack.c.b16 %v2509, %v2505
    %v2858 = vpack.c.b16 %v2510, %v2506
    %v2859 = vpack.c.b16 %v2511, %v2507
    %v2860 = vpack.c.b16 %v2516, %v2512
    %v2861 = vpack.c.b16 %v2517, %v2513
    %v2862 = vpack.c.b16 %v2518, %v2514
    %v2863 = vpack.c.b16 %v2519, %v2515
    %v2864 = vpack.c.b16 %v2524, %v2520
    %v2865 = vpack.c.b16 %v2525, %v2521
    %v2866 = vpack.c.b16 %v2526, %v2522
    %v2867 = vpack.c.b16 %v2527, %v2523
    %v2868 = vpack.c.b16 %v2532, %v2528
    %v2869 = vpack.c.b16 %v2533, %v2529
    %v2870 = vpack.c.b16 %v2534, %v2530
    %v2871 = vpack.c.b16 %v2535, %v2531
    %v2872 = vpack.c.b16 %v2540, %v2536
    %v2873 = vpack.c.b16 %v2541, %v2537
    %v2874 = vpack.c.b16 %v2542, %v2538
    %v2875 = vpack.c.b16 %v2543, %v2539
    %v2876 = vpack.c.b16 %v2548, %v2544
    %v2877 = vpack.c.b16 %v2549, %v2545
    %v2878 = vpack.c.b16 %v2550, %v2546
    %v2879 = vpack.c.b16 %v2551, %v2547
    %v2880 = vpack.c.b16 %v2556, %v2552
    %v2881 = vpack.c.b16 %v2557, %v2553
    %v2882 = vpack.c.b16 %v2558, %v2554
    %v2883 = vpack.c.b16 %v2559, %v2555
    %v2884 = vpack.c.b16 %v2564, %v2560
    %v2885 = vpack.c.b16 %v2565, %v2561
    %v2886 = vpack.c.b16 %v2566, %v2562
    %v2887 = vpack.c.b16 %v2567, %v2563
    %v2888 = vpack.c.b16 %v2572, %v2568
    %v2889 = vpack.c.b16 %v2573, %v2569
    %v2890 = vpack.c.b16 %v2574, %v2570
    %v2891 = vpack.c.b16 %v2575, %v2571
    %v2892 = vpack.c.b16 %v2580, %v2576
    %v2893 = vpack.c.b16 %v2581, %v2577
    %v2894 = vpack.c.b16 %v2582, %v2578
    %v2895 = vpack.c.b16 %v2583, %v2579
    %v2896 = vpack.c.b16 %v2588, %v2584
    %v2897 = vpack.c.b16 %v2589, %v2585
    %v2898 = vpack.c.b16 %v2590, %v2586
    %v2899 = vpack.c.b16 %v2591, %v2587
    %v2900 = vpack.c.b16 %v2596, %v2592
    %v2901 = vpack.c.b16 %v2597, %v2593
    %v2902 = vpack.c.b16 %v2598, %v2594
    %v2903 = vpack.c.b16 %v2599, %v2595
    %v2904 = vpack.c.b16 %v2604, %v2600
    %v2905 = vpack.c.b16 %v2605, %v2601
    %v2906 = vpack.c.b16 %v2606, %v2602
    %v2907 = vpack.c.b16 %v2607, %v2603
    %v2908 = vpack.c.b16 %v2612, %v2608
    %v2909 = vpack.c.b16 %v2613, %v2609
    %v2910 = vpack.c.b16 %v2614, %v2610
    %v2911 = vpack.c.b16 %v2615, %v2611
    %v2912 = vpack.c.b16 %v2620, %v2616
    %v2913 = vpack.c.b16 %v2621, %v2617
    %v2914 = vpack.c.b16 %v2622, %v2618
    %v2915 = vpack.c.b16 %v2623, %v2619
    %v2916 = vpack.c.b16 %v2628, %v2624
    %v2917 = vpack.c.b16 %v2629, %v2625
    %v2918 = vpack.c.b16 %v2630, %v2626
    %v2919 = vpack.c.b16 %v2631, %v2627
    %v2920 = vpack.c.b16 %v2636, %v2632
    %v2921 = vpack.c.b16 %v2637, %v2633
    %v2922 = vpack.c.b16 %v2638, %v2634
    %v2923 = vpack.c.b16 %v2639, %v2635
    %v2924 = vpack.c.b16 %v2644, %v2640
    %v2925 = vpack.c.b16 %v2645, %v2641
    %v2926 = vpack.c.b16 %v2646, %v2642
    %v2927 = vpack.c.b16 %v2647, %v2643
    %v2928 = vpack.c.b16 %v2652, %v2648
    %v2929 = vpack.c.b16 %v2653, %v2649
    %v2930 = vpack.c.b16 %v2654, %v2650
    %v2931 = vpack.c.b16 %v2655, %v2651
    %v2932 = vpack.c.b16 %v2660, %v2656
    %v2933 = vpack.c.b16 %v2661, %v2657
    %v2934 = vpack.c.b16 %v2662, %v2658
    %v2935 = vpack.c.b16 %v2663, %v2659
    %v2936 = vpack.c.b16 %v2668, %v2664
    %v2937 = vpack.c.b16 %v2669, %v2665
    %v2938 = vpack.c.b16 %v2670, %v2666
    %v2939 = vpack.c.b16 %v2671, %v2667
    %v2940 = vpack.c.b16 %v2676, %v2672
    %v2941 = vpack.c.b16 %v2677, %v2673
    %v2942 = vpack.c.b16 %v2678, %v2674
    %v2943 = vpack.c.b16 %v2679, %v2675
    %v2944 = vpack.c.b16 %v2684, %v2680
    %v2945 = vpack.c.b16 %v2685, %v2681
    %v2946 = vpack.c.b16 %v2686, %v2682
    %v2947 = vpack.c.b16 %v2687, %v2683
    %v2948 = vpack.c.b16 %v2692, %v2688
    %v2949 = vpack.c.b16 %v2693, %v2689
    %v2950 = vpack.c.b16 %v2694, %v2690
    %v2951 = vpack.c.b16 %v2695, %v2691
    %3208 = vmatprep.subr.bf16.mxu0 %v2725
    %3209 = vmatpush1.bf16.msra.mxu0 %v2724
    %3210 = vmatprep.subr.bf16.mxu0 %v2721
    %3211 = vmatpush1.bf16.msra.mxu0 %v2720
    %3212 = vmatprep.subr.bf16.mxu0 %v2717
    %3213 = vmatpush1.bf16.msra.mxu0 %v2716
    %3214 = vmatprep.subr.bf16.mxu0 %v2713
    %3215 = vmatpush1.bf16.msra.mxu0 %v2712
    %3216 = vmatprep.subr.bf16.mxu0 %v2709
    %3217 = vmatpush1.bf16.msra.mxu0 %v2708
    %3218 = vmatprep.subr.bf16.mxu0 %v2705
    %3219 = vmatpush1.bf16.msra.mxu0 %v2704
    %3220 = vmatprep.subr.bf16.mxu0 %v2701
    %3221 = vmatpush1.bf16.msra.mxu0 %v2700
    %3222 = vmatprep.subr.bf16.mxu0 %v2697
    %3223 = vmatpush1.bf16.msra.mxu0 %v2696
    %3224 = vmatprep.subr.bf16.mxu0 %v2757
    %3225 = vmatpush2.bf16.msra.mxu0 %v2756
    %3226 = vmatprep.subr.bf16.mxu0 %v2753
    %3227 = vmatpush2.bf16.msra.mxu0 %v2752
    %3228 = vmatprep.subr.bf16.mxu0 %v2749
    %3229 = vmatpush2.bf16.msra.mxu0 %v2748
    %3230 = vmatprep.subr.bf16.mxu0 %v2745
    %3231 = vmatpush2.bf16.msra.mxu0 %v2744
    %3232 = vmatprep.subr.bf16.mxu0 %v2741
    %3233 = vmatpush2.bf16.msra.mxu0 %v2740
    %3234 = vmatprep.subr.bf16.mxu0 %v2737
    %3235 = vmatpush2.bf16.msra.mxu0 %v2736
    %3236 = vmatprep.subr.bf16.mxu0 %v2733
    %3237 = vmatpush2.bf16.msra.mxu0 %v2732
    %3238 = vmatprep.subr.bf16.mxu0 %v2729
    %3239 = vmatpush2.bf16.msra.mxu0 %v2728
    %3240 = vmatprep.mubr.bf16.mxu0 %v1643
    %3241 = vmatmul.mubr.bf16.gmra.mxu0 %v1642
    %v3242 = vpop.f32.mrf.mxu0
    %v3243 = vadd.f32 %v1911, %v3242
    %v3244 = vpop.f32.mrf.mxu0
    %v3245 = vadd.f32 %v1915, %v3244
    %v3246 = vpop.f32.mrf.mxu0
    %v3247 = vadd.f32 %v1911, %v3246
    %v3248 = vpop.f32.mrf.mxu0
    %v3249 = vadd.f32 %v1915, %v3248
    %3250 = vdwg.mxu0
    %3251 = vmatprep.subr.bf16.mxu0 %v2789
    %3252 = vmatpush1.bf16.msra.mxu0 %v2788
    %3253 = vmatprep.subr.bf16.mxu0 %v2785
    %3254 = vmatpush1.bf16.msra.mxu0 %v2784
    %3255 = vmatprep.subr.bf16.mxu0 %v2781
    %3256 = vmatpush1.bf16.msra.mxu0 %v2780
    %3257 = vmatprep.subr.bf16.mxu0 %v2777
    %3258 = vmatpush1.bf16.msra.mxu0 %v2776
    %3259 = vmatprep.subr.bf16.mxu0 %v2773
    %3260 = vmatpush1.bf16.msra.mxu0 %v2772
    %3261 = vmatprep.subr.bf16.mxu0 %v2769
    %3262 = vmatpush1.bf16.msra.mxu0 %v2768
    %3263 = vmatprep.subr.bf16.mxu0 %v2765
    %3264 = vmatpush1.bf16.msra.mxu0 %v2764
    %3265 = vmatprep.subr.bf16.mxu0 %v2761
    %3266 = vmatpush1.bf16.msra.mxu0 %v2760
    %3267 = vmatprep.subr.bf16.mxu0 %v2821
    %3268 = vmatpush2.bf16.msra.mxu0 %v2820
    %3269 = vmatprep.subr.bf16.mxu0 %v2817
    %3270 = vmatpush2.bf16.msra.mxu0 %v2816
    %3271 = vmatprep.subr.bf16.mxu0 %v2813
    %3272 = vmatpush2.bf16.msra.mxu0 %v2812
    %3273 = vmatprep.subr.bf16.mxu0 %v2809
    %3274 = vmatpush2.bf16.msra.mxu0 %v2808
    %3275 = vmatprep.subr.bf16.mxu0 %v2805
    %3276 = vmatpush2.bf16.msra.mxu0 %v2804
    %3277 = vmatprep.subr.bf16.mxu0 %v2801
    %3278 = vmatpush2.bf16.msra.mxu0 %v2800
    %3279 = vmatprep.subr.bf16.mxu0 %v2797
    %3280 = vmatpush2.bf16.msra.mxu0 %v2796
    %3281 = vmatprep.subr.bf16.mxu0 %v2793
    %3282 = vmatpush2.bf16.msra.mxu0 %v2792
    %3283 = vmatprep.mubr.bf16.mxu0 %v1645
    %3284 = vmatmul.mubr.bf16.gmra.mxu0 %v1644
    %v3285 = vpop.f32.mrf.mxu0
    %v3286 = vadd.f32 %v3243, %v3285
    %v3287 = vpop.f32.mrf.mxu0
    %v3288 = vadd.f32 %v3245, %v3287
    %v3289 = vpop.f32.mrf.mxu0
    %v3290 = vadd.f32 %v3247, %v3289
    %v3291 = vpop.f32.mrf.mxu0
    %v3292 = vadd.f32 %v3249, %v3291
    %3293 = vdwg.mxu0
    %3294 = vmatprep.subr.bf16.mxu0 %v2853
    %3295 = vmatpush1.bf16.msra.mxu0 %v2852
    %3296 = vmatprep.subr.bf16.mxu0 %v2849
    %3297 = vmatpush1.bf16.msra.mxu0 %v2848
    %3298 = vmatprep.subr.bf16.mxu0 %v2845
    %3299 = vmatpush1.bf16.msra.mxu0 %v2844
    %3300 = vmatprep.subr.bf16.mxu0 %v2841
    %3301 = vmatpush1.bf16.msra.mxu0 %v2840
    %3302 = vmatprep.subr.bf16.mxu0 %v2837
    %3303 = vmatpush1.bf16.msra.mxu0 %v2836
    %3304 = vmatprep.subr.bf16.mxu0 %v2833
    %3305 = vmatpush1.bf16.msra.mxu0 %v2832
    %3306 = vmatprep.subr.bf16.mxu0 %v2829
    %3307 = vmatpush1.bf16.msra.mxu0 %v2828
    %3308 = vmatprep.subr.bf16.mxu0 %v2825
    %3309 = vmatpush1.bf16.msra.mxu0 %v2824
    %3310 = vmatprep.subr.bf16.mxu0 %v2885
    %3311 = vmatpush2.bf16.msra.mxu0 %v2884
    %3312 = vmatprep.subr.bf16.mxu0 %v2881
    %3313 = vmatpush2.bf16.msra.mxu0 %v2880
    %3314 = vmatprep.subr.bf16.mxu0 %v2877
    %3315 = vmatpush2.bf16.msra.mxu0 %v2876
    %3316 = vmatprep.subr.bf16.mxu0 %v2873
    %3317 = vmatpush2.bf16.msra.mxu0 %v2872
    %3318 = vmatprep.subr.bf16.mxu0 %v2869
    %3319 = vmatpush2.bf16.msra.mxu0 %v2868
    %3320 = vmatprep.subr.bf16.mxu0 %v2865
    %3321 = vmatpush2.bf16.msra.mxu0 %v2864
    %3322 = vmatprep.subr.bf16.mxu0 %v2861
    %3323 = vmatpush2.bf16.msra.mxu0 %v2860
    %3324 = vmatprep.subr.bf16.mxu0 %v2857
    %3325 = vmatpush2.bf16.msra.mxu0 %v2856
    %3326 = vmatprep.mubr.bf16.mxu0 %v1647
    %3327 = vmatmul.mubr.bf16.gmra.mxu0 %v1646
    %v3328 = vpop.f32.mrf.mxu0
    %v3329 = vadd.f32 %v3286, %v3328
    %v3330 = vpop.f32.mrf.mxu0
    %v3331 = vadd.f32 %v3288, %v3330
    %v3332 = vpop.f32.mrf.mxu0
    %v3333 = vadd.f32 %v3290, %v3332
    %v3334 = vpop.f32.mrf.mxu0
    %v3335 = vadd.f32 %v3292, %v3334
    %3336 = vdwg.mxu0
    %3337 = vmatprep.subr.bf16.mxu0 %v2917
    %3338 = vmatpush1.bf16.msra.mxu0 %v2916
    %3339 = vmatprep.subr.bf16.mxu0 %v2913
    %3340 = vmatpush1.bf16.msra.mxu0 %v2912
    %3341 = vmatprep.subr.bf16.mxu0 %v2909
    %3342 = vmatpush1.bf16.msra.mxu0 %v2908
    %3343 = vmatprep.subr.bf16.mxu0 %v2905
    %3344 = vmatpush1.bf16.msra.mxu0 %v2904
    %3345 = vmatprep.subr.bf16.mxu0 %v2901
    %3346 = vmatpush1.bf16.msra.mxu0 %v2900
    %3347 = vmatprep.subr.bf16.mxu0 %v2897
    %3348 = vmatpush1.bf16.msra.mxu0 %v2896
    %3349 = vmatprep.subr.bf16.mxu0 %v2893
    %3350 = vmatpush1.bf16.msra.mxu0 %v2892
    %3351 = vmatprep.subr.bf16.mxu0 %v2889
    %3352 = vmatpush1.bf16.msra.mxu0 %v2888
    %3353 = vmatprep.subr.bf16.mxu0 %v2949
    %3354 = vmatpush2.bf16.msra.mxu0 %v2948
    %3355 = vmatprep.subr.bf16.mxu0 %v2945
    %3356 = vmatpush2.bf16.msra.mxu0 %v2944
    %3357 = vmatprep.subr.bf16.mxu0 %v2941
    %3358 = vmatpush2.bf16.msra.mxu0 %v2940
    %3359 = vmatprep.subr.bf16.mxu0 %v2937
    %3360 = vmatpush2.bf16.msra.mxu0 %v2936
    %3361 = vmatprep.subr.bf16.mxu0 %v2933
    %3362 = vmatpush2.bf16.msra.mxu0 %v2932
    %3363 = vmatprep.subr.bf16.mxu0 %v2929
    %3364 = vmatpush2.bf16.msra.mxu0 %v2928
    %3365 = vmatprep.subr.bf16.mxu0 %v2925
    %3366 = vmatpush2.bf16.msra.mxu0 %v2924
    %3367 = vmatprep.subr.bf16.mxu0 %v2921
    %3368 = vmatpush2.bf16.msra.mxu0 %v2920
    %3369 = vmatprep.mubr.bf16.mxu0 %v1649
    %3370 = vmatmul.mubr.bf16.gmra.mxu0 %v1648
    %v3371 = vpop.f32.mrf.mxu0
    %v3372 = vadd.f32 %v3329, %v3371
    %v3373 = vpop.f32.mrf.mxu0
    %v3374 = vadd.f32 %v3331, %v3373
    %v3375 = vpop.f32.mrf.mxu0
    %v3376 = vadd.f32 %v3333, %v3375
    %v3377 = vpop.f32.mrf.mxu0
    %v3378 = vadd.f32 %v3335, %v3377
    %3379 = vdwg.mxu0
    %3380 = vmatprep.subr.bf16.mxu0 %v2727
    %3381 = vmatpush1.bf16.msra.mxu0 %v2726
    %3382 = vmatprep.subr.bf16.mxu0 %v2723
    %3383 = vmatpush1.bf16.msra.mxu0 %v2722
    %3384 = vmatprep.subr.bf16.mxu0 %v2719
    %3385 = vmatpush1.bf16.msra.mxu0 %v2718
    %3386 = vmatprep.subr.bf16.mxu0 %v2715
    %3387 = vmatpush1.bf16.msra.mxu0 %v2714
    %3388 = vmatprep.subr.bf16.mxu0 %v2711
    %3389 = vmatpush1.bf16.msra.mxu0 %v2710
    %3390 = vmatprep.subr.bf16.mxu0 %v2707
    %3391 = vmatpush1.bf16.msra.mxu0 %v2706
    %3392 = vmatprep.subr.bf16.mxu0 %v2703
    %3393 = vmatpush1.bf16.msra.mxu0 %v2702
    %3394 = vmatprep.subr.bf16.mxu0 %v2699
    %3395 = vmatpush1.bf16.msra.mxu0 %v2698
    %3396 = vmatprep.subr.bf16.mxu0 %v2759
    %3397 = vmatpush2.bf16.msra.mxu0 %v2758
    %3398 = vmatprep.subr.bf16.mxu0 %v2755
    %3399 = vmatpush2.bf16.msra.mxu0 %v2754
    %3400 = vmatprep.subr.bf16.mxu0 %v2751
    %3401 = vmatpush2.bf16.msra.mxu0 %v2750
    %3402 = vmatprep.subr.bf16.mxu0 %v2747
    %3403 = vmatpush2.bf16.msra.mxu0 %v2746
    %3404 = vmatprep.subr.bf16.mxu0 %v2743
    %3405 = vmatpush2.bf16.msra.mxu0 %v2742
    %3406 = vmatprep.subr.bf16.mxu0 %v2739
    %3407 = vmatpush2.bf16.msra.mxu0 %v2738
    %3408 = vmatprep.subr.bf16.mxu0 %v2735
    %3409 = vmatpush2.bf16.msra.mxu0 %v2734
    %3410 = vmatprep.subr.bf16.mxu0 %v2731
    %3411 = vmatpush2.bf16.msra.mxu0 %v2730
    %3412 = vmatprep.mubr.bf16.mxu0 %v1643
    %3413 = vmatmul.mubr.bf16.gmra.mxu0 %v1642
    %v3414 = vpop.f32.mrf.mxu0
    %v3415 = vadd.f32 %v1919, %v3414
    %v3416 = vpop.f32.mrf.mxu0
    %v3417 = vadd.f32 %v1923, %v3416
    %v3418 = vpop.f32.mrf.mxu0
    %v3419 = vadd.f32 %v1919, %v3418
    %v3420 = vpop.f32.mrf.mxu0
    %v3421 = vadd.f32 %v1923, %v3420
    %3422 = vdwg.mxu0
    %3423 = vmatprep.subr.bf16.mxu0 %v2791
    %3424 = vmatpush1.bf16.msra.mxu0 %v2790
    %3425 = vmatprep.subr.bf16.mxu0 %v2787
    %3426 = vmatpush1.bf16.msra.mxu0 %v2786
    %3427 = vmatprep.subr.bf16.mxu0 %v2783
    %3428 = vmatpush1.bf16.msra.mxu0 %v2782
    %3429 = vmatprep.subr.bf16.mxu0 %v2779
    %3430 = vmatpush1.bf16.msra.mxu0 %v2778
    %3431 = vmatprep.subr.bf16.mxu0 %v2775
    %3432 = vmatpush1.bf16.msra.mxu0 %v2774
    %3433 = vmatprep.subr.bf16.mxu0 %v2771
    %3434 = vmatpush1.bf16.msra.mxu0 %v2770
    %3435 = vmatprep.subr.bf16.mxu0 %v2767
    %3436 = vmatpush1.bf16.msra.mxu0 %v2766
    %3437 = vmatprep.subr.bf16.mxu0 %v2763
    %3438 = vmatpush1.bf16.msra.mxu0 %v2762
    %3439 = vmatprep.subr.bf16.mxu0 %v2823
    %3440 = vmatpush2.bf16.msra.mxu0 %v2822
    %3441 = vmatprep.subr.bf16.mxu0 %v2819
    %3442 = vmatpush2.bf16.msra.mxu0 %v2818
    %3443 = vmatprep.subr.bf16.mxu0 %v2815
    %3444 = vmatpush2.bf16.msra.mxu0 %v2814
    %3445 = vmatprep.subr.bf16.mxu0 %v2811
    %3446 = vmatpush2.bf16.msra.mxu0 %v2810
    %3447 = vmatprep.subr.bf16.mxu0 %v2807
    %3448 = vmatpush2.bf16.msra.mxu0 %v2806
    %3449 = vmatprep.subr.bf16.mxu0 %v2803
    %3450 = vmatpush2.bf16.msra.mxu0 %v2802
    %3451 = vmatprep.subr.bf16.mxu0 %v2799
    %3452 = vmatpush2.bf16.msra.mxu0 %v2798
    %3453 = vmatprep.subr.bf16.mxu0 %v2795
    %3454 = vmatpush2.bf16.msra.mxu0 %v2794
    %3455 = vmatprep.mubr.bf16.mxu0 %v1645
    %3456 = vmatmul.mubr.bf16.gmra.mxu0 %v1644
    %v3457 = vpop.f32.mrf.mxu0
    %v3458 = vadd.f32 %v3415, %v3457
    %v3459 = vpop.f32.mrf.mxu0
    %v3460 = vadd.f32 %v3417, %v3459
    %v3461 = vpop.f32.mrf.mxu0
    %v3462 = vadd.f32 %v3419, %v3461
    %v3463 = vpop.f32.mrf.mxu0
    %v3464 = vadd.f32 %v3421, %v3463
    %3465 = vdwg.mxu0
    %3466 = vmatprep.subr.bf16.mxu0 %v2855
    %3467 = vmatpush1.bf16.msra.mxu0 %v2854
    %3468 = vmatprep.subr.bf16.mxu0 %v2851
    %3469 = vmatpush1.bf16.msra.mxu0 %v2850
    %3470 = vmatprep.subr.bf16.mxu0 %v2847
    %3471 = vmatpush1.bf16.msra.mxu0 %v2846
    %3472 = vmatprep.subr.bf16.mxu0 %v2843
    %3473 = vmatpush1.bf16.msra.mxu0 %v2842
    %3474 = vmatprep.subr.bf16.mxu0 %v2839
    %3475 = vmatpush1.bf16.msra.mxu0 %v2838
    %3476 = vmatprep.subr.bf16.mxu0 %v2835
    %3477 = vmatpush1.bf16.msra.mxu0 %v2834
    %3478 = vmatprep.subr.bf16.mxu0 %v2831
    %3479 = vmatpush1.bf16.msra.mxu0 %v2830
    %3480 = vmatprep.subr.bf16.mxu0 %v2827
    %3481 = vmatpush1.bf16.msra.mxu0 %v2826
    %3482 = vmatprep.subr.bf16.mxu0 %v2887
    %3483 = vmatpush2.bf16.msra.mxu0 %v2886
    %3484 = vmatprep.subr.bf16.mxu0 %v2883
    %3485 = vmatpush2.bf16.msra.mxu0 %v2882
    %3486 = vmatprep.subr.bf16.mxu0 %v2879
    %3487 = vmatpush2.bf16.msra.mxu0 %v2878
    %3488 = vmatprep.subr.bf16.mxu0 %v2875
    %3489 = vmatpush2.bf16.msra.mxu0 %v2874
    %3490 = vmatprep.subr.bf16.mxu0 %v2871
    %3491 = vmatpush2.bf16.msra.mxu0 %v2870
    %3492 = vmatprep.subr.bf16.mxu0 %v2867
    %3493 = vmatpush2.bf16.msra.mxu0 %v2866
    %3494 = vmatprep.subr.bf16.mxu0 %v2863
    %3495 = vmatpush2.bf16.msra.mxu0 %v2862
    %3496 = vmatprep.subr.bf16.mxu0 %v2859
    %3497 = vmatpush2.bf16.msra.mxu0 %v2858
    %3498 = vmatprep.mubr.bf16.mxu0 %v1647
    %3499 = vmatmul.mubr.bf16.gmra.mxu0 %v1646
    %v3500 = vpop.f32.mrf.mxu0
    %v3501 = vadd.f32 %v3458, %v3500
    %v3502 = vpop.f32.mrf.mxu0
    %v3503 = vadd.f32 %v3460, %v3502
    %v3504 = vpop.f32.mrf.mxu0
    %v3505 = vadd.f32 %v3462, %v3504
    %v3506 = vpop.f32.mrf.mxu0
    %v3507 = vadd.f32 %v3464, %v3506
    %3508 = vdwg.mxu0
    %3509 = vmatprep.subr.bf16.mxu0 %v2919
    %3510 = vmatpush1.bf16.msra.mxu0 %v2918
    %3511 = vmatprep.subr.bf16.mxu0 %v2915
    %3512 = vmatpush1.bf16.msra.mxu0 %v2914
    %3513 = vmatprep.subr.bf16.mxu0 %v2911
    %3514 = vmatpush1.bf16.msra.mxu0 %v2910
    %3515 = vmatprep.subr.bf16.mxu0 %v2907
    %3516 = vmatpush1.bf16.msra.mxu0 %v2906
    %3517 = vmatprep.subr.bf16.mxu0 %v2903
    %3518 = vmatpush1.bf16.msra.mxu0 %v2902
    %3519 = vmatprep.subr.bf16.mxu0 %v2899
    %3520 = vmatpush1.bf16.msra.mxu0 %v2898
    %3521 = vmatprep.subr.bf16.mxu0 %v2895
    %3522 = vmatpush1.bf16.msra.mxu0 %v2894
    %3523 = vmatprep.subr.bf16.mxu0 %v2891
    %3524 = vmatpush1.bf16.msra.mxu0 %v2890
    %3525 = vmatprep.subr.bf16.mxu0 %v2951
    %3526 = vmatpush2.bf16.msra.mxu0 %v2950
    %3527 = vmatprep.subr.bf16.mxu0 %v2947
    %3528 = vmatpush2.bf16.msra.mxu0 %v2946
    %3529 = vmatprep.subr.bf16.mxu0 %v2943
    %3530 = vmatpush2.bf16.msra.mxu0 %v2942
    %3531 = vmatprep.subr.bf16.mxu0 %v2939
    %3532 = vmatpush2.bf16.msra.mxu0 %v2938
    %3533 = vmatprep.subr.bf16.mxu0 %v2935
    %3534 = vmatpush2.bf16.msra.mxu0 %v2934
    %3535 = vmatprep.subr.bf16.mxu0 %v2931
    %3536 = vmatpush2.bf16.msra.mxu0 %v2930
    %3537 = vmatprep.subr.bf16.mxu0 %v2927
    %3538 = vmatpush2.bf16.msra.mxu0 %v2926
    %3539 = vmatprep.subr.bf16.mxu0 %v2923
    %3540 = vmatpush2.bf16.msra.mxu0 %v2922
    %3541 = vmatprep.mubr.bf16.mxu0 %v1649
    %3542 = vmatmul.mubr.bf16.gmra.mxu0 %v1648
    %v3543 = vpop.f32.mrf.mxu0
    %v3544 = vadd.f32 %v3501, %v3543
    %v3545 = vpop.f32.mrf.mxu0
    %v3546 = vadd.f32 %v3503, %v3545
    %v3547 = vpop.f32.mrf.mxu0
    %v3548 = vadd.f32 %v3505, %v3547
    %v3549 = vpop.f32.mrf.mxu0
    %v3550 = vadd.f32 %v3507, %v3549
    %3551 = vdwg.mxu0
    %v3552 = vmax.f32 %v3372, 0.0
    %v3553 = vmax.f32 %v3374, 0.0
    %v3554 = vmax.f32 %v3544, 0.0
    %v3555 = vmax.f32 %v3546, 0.0
    %v3556 = vmax.f32 %v3376, 0.0
    %v3557 = vmax.f32 %v3378, 0.0
    %v3558 = vmax.f32 %v3548, 0.0
    %v3559 = vmax.f32 %v3550, 0.0
    %v3560 = vpack.c.bf16 %v3556, %v3552
    %v3561 = vpack.c.bf16 %v3557, %v3553
    %v3562 = vpack.c.bf16 %v3558, %v3554
    %v3563 = vpack.c.bf16 %v3559, %v3555
    %v3564 = vld [vmem:[#allocation6] sm:$0xf]
    %v3565 = vld [vmem:[#allocation6 + $0x4] sm:$0xf]
    %v3566 = vld [vmem:[#allocation6 + $0x8] sm:$0xf]
    %v3567 = vld [vmem:[#allocation6 + $0xc] sm:$0xf]
    %v3568 = vld [vmem:[#allocation6 + $0x10] sm:$0xf]
    %v3569 = vld [vmem:[#allocation6 + $0x14] sm:$0xf]
    %v3570 = vld [vmem:[#allocation6 + $0x18] sm:$0xf]
    %v3571 = vld [vmem:[#allocation6 + $0x1c] sm:$0xf]
    %v3572 = vld [vmem:[#allocation6 + $0x20] sm:$0xf]
    %v3573 = vld [vmem:[#allocation6 + $0x24] sm:$0xf]
    %v3574 = vld [vmem:[#allocation6 + $0x28] sm:$0xf]
    %v3575 = vld [vmem:[#allocation6 + $0x2c] sm:$0xf]
    %v3576 = vld [vmem:[#allocation6 + $0x30] sm:$0xf]
    %v3577 = vld [vmem:[#allocation6 + $0x34] sm:$0xf]
    %v3578 = vld [vmem:[#allocation6 + $0x38] sm:$0xf]
    %v3579 = vld [vmem:[#allocation6 + $0x3c] sm:$0xf]
    %v3580 = vld [vmem:[#allocation6 + $0x40] sm:$0xf]
    %v3581 = vld [vmem:[#allocation6 + $0x44] sm:$0xf]
    %v3582 = vld [vmem:[#allocation6 + $0x48] sm:$0xf]
    %v3583 = vld [vmem:[#allocation6 + $0x4c] sm:$0xf]
    %v3584 = vld [vmem:[#allocation6 + $0x50] sm:$0xf]
    %v3585 = vld [vmem:[#allocation6 + $0x54] sm:$0xf]
    %v3586 = vld [vmem:[#allocation6 + $0x58] sm:$0xf]
    %v3587 = vld [vmem:[#allocation6 + $0x5c] sm:$0xf]
    %v3588 = vld [vmem:[#allocation6 + $0x60] sm:$0xf]
    %v3589 = vld [vmem:[#allocation6 + $0x64] sm:$0xf]
    %v3590 = vld [vmem:[#allocation6 + $0x68] sm:$0xf]
    %v3591 = vld [vmem:[#allocation6 + $0x6c] sm:$0xf]
    %v3592 = vld [vmem:[#allocation6 + $0x70] sm:$0xf]
    %v3593 = vld [vmem:[#allocation6 + $0x74] sm:$0xf]
    %v3594 = vld [vmem:[#allocation6 + $0x78] sm:$0xf]
    %v3595 = vld [vmem:[#allocation6 + $0x7c] sm:$0xf]
    %v3596 = vld [vmem:[#allocation6 + $0x80] sm:$0xf]
    %v3597 = vld [vmem:[#allocation6 + $0x84] sm:$0xf]
    %v3598 = vld [vmem:[#allocation6 + $0x88] sm:$0xf]
    %v3599 = vld [vmem:[#allocation6 + $0x8c] sm:$0xf]
    %v3600 = vld [vmem:[#allocation6 + $0x90] sm:$0xf]
    %v3601 = vld [vmem:[#allocation6 + $0x94] sm:$0xf]
    %v3602 = vld [vmem:[#allocation6 + $0x98] sm:$0xf]
    %v3603 = vld [vmem:[#allocation6 + $0x9c] sm:$0xf]
    %v3604 = vld [vmem:[#allocation6 + $0xa0] sm:$0xf]
    %v3605 = vld [vmem:[#allocation6 + $0xa4] sm:$0xf]
    %v3606 = vld [vmem:[#allocation6 + $0xa8] sm:$0xf]
    %v3607 = vld [vmem:[#allocation6 + $0xac] sm:$0xf]
    %v3608 = vld [vmem:[#allocation6 + $0xb0] sm:$0xf]
    %v3609 = vld [vmem:[#allocation6 + $0xb4] sm:$0xf]
    %v3610 = vld [vmem:[#allocation6 + $0xb8] sm:$0xf]
    %v3611 = vld [vmem:[#allocation6 + $0xbc] sm:$0xf]
    %v3612 = vld [vmem:[#allocation6 + $0xc0] sm:$0xf]
    %v3613 = vld [vmem:[#allocation6 + $0xc4] sm:$0xf]
    %v3614 = vld [vmem:[#allocation6 + $0xc8] sm:$0xf]
    %v3615 = vld [vmem:[#allocation6 + $0xcc] sm:$0xf]
    %v3616 = vld [vmem:[#allocation6 + $0xd0] sm:$0xf]
    %v3617 = vld [vmem:[#allocation6 + $0xd4] sm:$0xf]
    %v3618 = vld [vmem:[#allocation6 + $0xd8] sm:$0xf]
    %v3619 = vld [vmem:[#allocation6 + $0xdc] sm:$0xf]
    %v3620 = vld [vmem:[#allocation6 + $0xe0] sm:$0xf]
    %v3621 = vld [vmem:[#allocation6 + $0xe4] sm:$0xf]
    %v3622 = vld [vmem:[#allocation6 + $0xe8] sm:$0xf]
    %v3623 = vld [vmem:[#allocation6 + $0xec] sm:$0xf]
    %v3624 = vld [vmem:[#allocation6 + $0xf0] sm:$0xf]
    %v3625 = vld [vmem:[#allocation6 + $0xf4] sm:$0xf]
    %v3626 = vld [vmem:[#allocation6 + $0xf8] sm:$0xf]
    %v3627 = vld [vmem:[#allocation6 + $0xfc] sm:$0xf]
    %v3628 = vld [vmem:[%s6] sm:$0x1]
    %v3630 = vlaneseq
    %v3631 = vshrl.u32 %v3630, 7
    %v3632 = vsub.s32 0, %v3631
    %v3633 = vrot.slane %v3628, %v3632
    %v3699 = vunpack.c.l.b16 %v3564
    %v3700 = vunpack.c.l.b16 %v3565
    %v3701 = vunpack.c.l.b16 %v3566
    %v3702 = vunpack.c.l.b16 %v3567
    %v3703 = vunpack.c.l.b16 %v3568
    %v3704 = vunpack.c.l.b16 %v3569
    %v3705 = vunpack.c.l.b16 %v3570
    %v3706 = vunpack.c.l.b16 %v3571
    %v3707 = vunpack.c.l.b16 %v3572
    %v3708 = vunpack.c.l.b16 %v3573
    %v3709 = vunpack.c.l.b16 %v3574
    %v3710 = vunpack.c.l.b16 %v3575
    %v3711 = vunpack.c.l.b16 %v3576
    %v3712 = vunpack.c.l.b16 %v3577
    %v3713 = vunpack.c.l.b16 %v3578
    %v3714 = vunpack.c.l.b16 %v3579
    %v3715 = vunpack.c.l.b16 %v3580
    %v3716 = vunpack.c.l.b16 %v3581
    %v3717 = vunpack.c.l.b16 %v3582
    %v3718 = vunpack.c.l.b16 %v3583
    %v3719 = vunpack.c.l.b16 %v3584
    %v3720 = vunpack.c.l.b16 %v3585
    %v3721 = vunpack.c.l.b16 %v3586
    %v3722 = vunpack.c.l.b16 %v3587
    %v3723 = vunpack.c.l.b16 %v3588
    %v3724 = vunpack.c.l.b16 %v3589
    %v3725 = vunpack.c.l.b16 %v3590
    %v3726 = vunpack.c.l.b16 %v3591
    %v3727 = vunpack.c.l.b16 %v3592
    %v3728 = vunpack.c.l.b16 %v3593
    %v3729 = vunpack.c.l.b16 %v3594
    %v3730 = vunpack.c.l.b16 %v3595
    %v3731 = vunpack.c.l.b16 %v3596
    %v3732 = vunpack.c.l.b16 %v3597
    %v3733 = vunpack.c.l.b16 %v3598
    %v3734 = vunpack.c.l.b16 %v3599
    %v3735 = vunpack.c.l.b16 %v3600
    %v3736 = vunpack.c.l.b16 %v3601
    %v3737 = vunpack.c.l.b16 %v3602
    %v3738 = vunpack.c.l.b16 %v3603
    %v3739 = vunpack.c.l.b16 %v3604
    %v3740 = vunpack.c.l.b16 %v3605
    %v3741 = vunpack.c.l.b16 %v3606
    %v3742 = vunpack.c.l.b16 %v3607
    %v3743 = vunpack.c.l.b16 %v3608
    %v3744 = vunpack.c.l.b16 %v3609
    %v3745 = vunpack.c.l.b16 %v3610
    %v3746 = vunpack.c.l.b16 %v3611
    %v3747 = vunpack.c.l.b16 %v3612
    %v3748 = vunpack.c.l.b16 %v3613
    %v3749 = vunpack.c.l.b16 %v3614
    %v3750 = vunpack.c.l.b16 %v3615
    %v3751 = vunpack.c.l.b16 %v3616
    %v3752 = vunpack.c.l.b16 %v3617
    %v3753 = vunpack.c.l.b16 %v3618
    %v3754 = vunpack.c.l.b16 %v3619
    %v3755 = vunpack.c.l.b16 %v3620
    %v3756 = vunpack.c.l.b16 %v3621
    %v3757 = vunpack.c.l.b16 %v3622
    %v3758 = vunpack.c.l.b16 %v3623
    %v3759 = vunpack.c.l.b16 %v3624
    %v3760 = vunpack.c.l.b16 %v3625
    %v3761 = vunpack.c.l.b16 %v3626
    %v3762 = vunpack.c.l.b16 %v3627
    %v3763 = vpack.c.b16 %v3700, %v3699
    %v3764 = vpack.c.b16 %v3702, %v3701
    %v3765 = vpack.c.b16 %v3704, %v3703
    %v3766 = vpack.c.b16 %v3706, %v3705
    %v3767 = vpack.c.b16 %v3708, %v3707
    %v3768 = vpack.c.b16 %v3710, %v3709
    %v3769 = vpack.c.b16 %v3712, %v3711
    %v3770 = vpack.c.b16 %v3714, %v3713
    %v3771 = vpack.c.b16 %v3716, %v3715
    %v3772 = vpack.c.b16 %v3718, %v3717
    %v3773 = vpack.c.b16 %v3720, %v3719
    %v3774 = vpack.c.b16 %v3722, %v3721
    %v3775 = vpack.c.b16 %v3724, %v3723
    %v3776 = vpack.c.b16 %v3726, %v3725
    %v3777 = vpack.c.b16 %v3728, %v3727
    %v3778 = vpack.c.b16 %v3730, %v3729
    %v3779 = vpack.c.b16 %v3732, %v3731
    %v3780 = vpack.c.b16 %v3734, %v3733
    %v3781 = vpack.c.b16 %v3736, %v3735
    %v3782 = vpack.c.b16 %v3738, %v3737
    %v3783 = vpack.c.b16 %v3740, %v3739
    %v3784 = vpack.c.b16 %v3742, %v3741
    %v3785 = vpack.c.b16 %v3744, %v3743
    %v3786 = vpack.c.b16 %v3746, %v3745
    %v3787 = vpack.c.b16 %v3748, %v3747
    %v3788 = vpack.c.b16 %v3750, %v3749
    %v3789 = vpack.c.b16 %v3752, %v3751
    %v3790 = vpack.c.b16 %v3754, %v3753
    %v3791 = vpack.c.b16 %v3756, %v3755
    %v3792 = vpack.c.b16 %v3758, %v3757
    %v3793 = vpack.c.b16 %v3760, %v3759
    %v3794 = vpack.c.b16 %v3762, %v3761
    %3827 = vmatprep.subr.bf16.mxu0 0
    %3828 = vmatpush1.bf16.msra.mxu0 %v3770
    %3829 = vmatprep.subr.bf16.mxu0 0
    %3830 = vmatpush1.bf16.msra.mxu0 %v3769
    %3831 = vmatprep.subr.bf16.mxu0 0
    %3832 = vmatpush1.bf16.msra.mxu0 %v3768
    %3833 = vmatprep.subr.bf16.mxu0 0
    %3834 = vmatpush1.bf16.msra.mxu0 %v3767
    %3835 = vmatprep.subr.bf16.mxu0 0
    %3836 = vmatpush1.bf16.msra.mxu0 %v3766
    %3837 = vmatprep.subr.bf16.mxu0 0
    %3838 = vmatpush1.bf16.msra.mxu0 %v3765
    %3839 = vmatprep.subr.bf16.mxu0 0
    %3840 = vmatpush1.bf16.msra.mxu0 %v3764
    %3841 = vmatprep.subr.bf16.mxu0 0
    %3842 = vmatpush1.bf16.msra.mxu0 %v3763
    %3843 = vmatprep.subr.bf16.mxu0 0
    %3844 = vmatpush2.bf16.msra.mxu0 %v3778
    %3845 = vmatprep.subr.bf16.mxu0 0
    %3846 = vmatpush2.bf16.msra.mxu0 %v3777
    %3847 = vmatprep.subr.bf16.mxu0 0
    %3848 = vmatpush2.bf16.msra.mxu0 %v3776
    %3849 = vmatprep.subr.bf16.mxu0 0
    %3850 = vmatpush2.bf16.msra.mxu0 %v3775
    %3851 = vmatprep.subr.bf16.mxu0 0
    %3852 = vmatpush2.bf16.msra.mxu0 %v3774
    %3853 = vmatprep.subr.bf16.mxu0 0
    %3854 = vmatpush2.bf16.msra.mxu0 %v3773
    %3855 = vmatprep.subr.bf16.mxu0 0
    %3856 = vmatpush2.bf16.msra.mxu0 %v3772
    %3857 = vmatprep.subr.bf16.mxu0 0
    %3858 = vmatpush2.bf16.msra.mxu0 %v3771
    %3859 = vmatprep.mubr.bf16.mxu0 %v3561
    %3860 = vmatmul.mubr.bf16.gmra.mxu0 %v3560
    %v3861 = vpop.f32.mrf.mxu0
    %v3862 = vadd.f32 %v3633, %v3861
    %v3863 = vpop.f32.mrf.mxu0
    %v3864 = vpop.f32.mrf.mxu0
    %v3865 = vadd.f32 %v3633, %v3864
    %v3866 = vpop.f32.mrf.mxu0
    %3867 = vdwg.mxu0
    %3868 = vmatprep.subr.bf16.mxu0 0
    %3869 = vmatpush1.bf16.msra.mxu0 %v3786
    %3870 = vmatprep.subr.bf16.mxu0 0
    %3871 = vmatpush1.bf16.msra.mxu0 %v3785
    %3872 = vmatprep.subr.bf16.mxu0 0
    %3873 = vmatpush1.bf16.msra.mxu0 %v3784
    %3874 = vmatprep.subr.bf16.mxu0 0
    %3875 = vmatpush1.bf16.msra.mxu0 %v3783
    %3876 = vmatprep.subr.bf16.mxu0 0
    %3877 = vmatpush1.bf16.msra.mxu0 %v3782
    %3878 = vmatprep.subr.bf16.mxu0 0
    %3879 = vmatpush1.bf16.msra.mxu0 %v3781
    %3880 = vmatprep.subr.bf16.mxu0 0
    %3881 = vmatpush1.bf16.msra.mxu0 %v3780
    %3882 = vmatprep.subr.bf16.mxu0 0
    %3883 = vmatpush1.bf16.msra.mxu0 %v3779
    %3884 = vmatprep.subr.bf16.mxu0 0
    %3885 = vmatpush2.bf16.msra.mxu0 %v3794
    %3886 = vmatprep.subr.bf16.mxu0 0
    %3887 = vmatpush2.bf16.msra.mxu0 %v3793
    %3888 = vmatprep.subr.bf16.mxu0 0
    %3889 = vmatpush2.bf16.msra.mxu0 %v3792
    %3890 = vmatprep.subr.bf16.mxu0 0
    %3891 = vmatpush2.bf16.msra.mxu0 %v3791
    %3892 = vmatprep.subr.bf16.mxu0 0
    %3893 = vmatpush2.bf16.msra.mxu0 %v3790
    %3894 = vmatprep.subr.bf16.mxu0 0
    %3895 = vmatpush2.bf16.msra.mxu0 %v3789
    %3896 = vmatprep.subr.bf16.mxu0 0
    %3897 = vmatpush2.bf16.msra.mxu0 %v3788
    %3898 = vmatprep.subr.bf16.mxu0 0
    %3899 = vmatpush2.bf16.msra.mxu0 %v3787
    %3900 = vmatprep.mubr.bf16.mxu0 %v3563
    %3901 = vmatmul.mubr.bf16.gmra.mxu0 %v3562
    %v3902 = vpop.f32.mrf.mxu0
    %v3903 = vadd.f32 %v3862, %v3902
    %v3904 = vpop.f32.mrf.mxu0
    %v3905 = vpop.f32.mrf.mxu0
    %v3906 = vadd.f32 %v3865, %v3905
    %v3907 = vpop.f32.mrf.mxu0
    %3908 = vdwg.mxu0
    %v3909 = vtanh.pop %v3903
    %v3910 = vtanh.pop %v3906
    %3911 = vst [vmem:[%s7] sm:$0xff] %v3909
    %3912 = vst [vmem:[%s7 + $0x8] sm:$0xff] %v3910
    // Predicated region
    $region42: #{actor_forward.1} parent=1 // pred_check
      _
    $region43: #{actor_forward.1} parent=1 // pred_check_branch
      %3914 = sbr.rel (0) target = $region45
    $region44: #{actor_forward.1} parent=1 // pred_region
      _
    $region45: #{actor_forward.1} parent=1 // pred_fallthru
      _
    // Predicated region
    $region46: #{actor_forward.1} parent=1 // pred_check
      _
    $region47: #{actor_forward.1} parent=1 // pred_check_branch
      %3916 = sbr.rel (0) target = $region49
    $region48: #{actor_forward.1} parent=1 // pred_region
      _
    $region49: #{actor_forward.1} parent=1 // pred_fallthru
      _
    %3917 = vsyncpa [#allocation3], 1
    %3918 = vsyncpa [#allocation5], 1

</llo_original>
